<compile_context>
chip_gen: v5e
topology: v5e:2x2
jax: 0.10.0
libtpu: 0.0.40
codegen_flags: <defaults>
</compile_context>

<pallas_src>
import functools

import jax
import jax.numpy as jnp
from jax.experimental import pallas as pl
from jax.experimental.pallas import tpu as pltpu


FEAT_C = 1792   # EfficientNet-B4 forward_features channel count
HIDDEN = 512
EMB_DIM = 128   # emb_dim of the projection head


# --------------------------------------------------------------------------
# Kernel
# --------------------------------------------------------------------------
def _projection_kernel(inv_hw, x_ref, w1_ref, b1_ref, w2_ref, b2_ref,
                       o_ref, h_acc_ref):
    """Grid = (batch_tiles, channel_tiles); channel axis is the reduction."""
    c = pl.program_id(1)

    @pl.when(c == 0)
    def _():
        h_acc_ref[...] = jnp.zeros_like(h_acc_ref)

    # ---- Spatial sum of this channel tile (VPU chunk folds + one narrow
    #      XLU reduce, f32 accumulation) --------------------------------
    xb = x_ref[...]                                     # [tb, tc, hw] bf16
    hw = xb.shape[-1]
    n_full = hw // 128
    if n_full >= 1:
        acc = xb[:, :, 0:128].astype(jnp.float32)
        for k in range(1, n_full):                      # VPU adds (no XLU)
            acc = acc + xb[:, :, k * 128:(k + 1) * 128].astype(jnp.float32)
        part = jnp.sum(acc, axis=-1)                    # single 128-lane reduce
        if hw % 128:                                    # spatial remainder
            part = part + jnp.sum(
                xb[:, :, n_full * 128:].astype(jnp.float32), axis=-1)
    else:
        part = jnp.sum(xb.astype(jnp.float32), axis=-1)
    # part: [tb, tc] spatial SUM (mean scale applied at finalize)

    # ---- Stream W1: partial first-layer matmul for this channel tile ----
    h_acc_ref[...] += jnp.dot(part, w1_ref[...].astype(jnp.float32),
                              preferred_element_type=jnp.float32)

    # ---- Finalize on the last channel step ------------------------------
    @pl.when(c == pl.num_programs(1) - 1)
    def _():
        # AdaptiveAvgPool2d((1,1)) + Flatten == mean over spatial; then
        # Linear(1792,512) bias + ReLU.
        h = jnp.maximum(h_acc_ref[...] * inv_hw + b1_ref[...], 0.0)
        # Linear(512, emb_dim)
        e = jnp.dot(h, w2_ref[...],
                    preferred_element_type=jnp.float32) + b2_ref[...]
        # F.normalize: e / max(||e||, 1e-12) == e * rsqrt(max(||e||^2, 1e-24))
        ssq = jnp.sum(e * e, axis=-1, keepdims=True)
        o_ref[...] = e * jax.lax.rsqrt(jnp.maximum(ssq, 1e-24))


# --------------------------------------------------------------------------
# VMEM-aware tile selection
# --------------------------------------------------------------------------
def _round_up(x, m):
    return (x + m - 1) // m * m


def _vmem_budget():
    """Per-generation scoped-VMEM budget (<=48 MiB on v7x, <=96 MiB v5e/v6e)."""
    try:
        cap = pltpu.get_tpu_info().vmem_capacity_bytes
    except Exception:
        cap = 64 << 20                       # conservative (v7x-sized) fallback
    return min(int(cap * 3 // 4), 96 << 20)


def _pick_batch_tile(B):
    if B <= 8:
        return B                              # single tile == full dim (legal)
    # Keep >= 2 batch tiles (megacore on v7x) and tb a multiple of 8.
    return min(32, _round_up(pl.cdiv(B, 2), 8))


def _estimate_vmem(tb, tc, hw, hidden, emb):
    """Bytes used, including lane padding, double buffering & pool temps."""
    hw_pad = _round_up(hw, 128)
    emb_pad = _round_up(emb, 128)
    tb_pad = _round_up(tb, 8)
    x = 2 * tb * tc * hw_pad * 2              # double-buffered bf16 feature tile
    w1 = 2 * tc * hidden * 2                  # double-buffered bf16 W1 tile
    w2 = 2 * hidden * emb_pad * 4
    bias = 2 * 8 * (hidden + emb_pad) * 4
    out = 2 * tb_pad * emb_pad * 4
    acc = tb_pad * hidden * 4                 # h accumulator scratch
    interm = tb_pad * tc * (128 + 8) * 4      # pooling temporaries (f32)
    return x + w1 + w2 + bias + out + acc + interm


def _pick_tiles(B, C, hw, hidden, emb, budget):
    usable = int(budget * 0.8)
    tb = _pick_batch_tile(B)
    while True:
        for tc in (896, 448, 256, 128, 64):
            if C % tc:
                continue
            if _estimate_vmem(tb, tc, hw, hidden, emb) <= usable:
                return tb, tc
        if tb <= 8 or B <= 8:
            # Smallest reasonable fallback (keeps block-shape rules intact).
            for tc in (64, 32, 16, 8):
                if C % tc == 0:
                    return tb, tc
            return tb, C
        tb = max(8, tb // 2)


# --------------------------------------------------------------------------
# Wrapper
# --------------------------------------------------------------------------
def projection_head(feats_nchw, w1, b1, w2, b2):
    """feats_nchw: [B, 1792, H, W] float32 backbone feature maps."""
    B, C, H, W = feats_nchw.shape
    hidden = w1.shape[1]
    emb = w2.shape[1]
    hw = H * W

    # Free reshape (channels stay contiguous per sample) + bf16 cast of the
    # dominant HBM read. W1 is also streamed in bf16; W2/biases stay f32.
    x = feats_nchw.reshape(B, C, hw).astype(jnp.bfloat16)
    w1_b = w1.astype(jnp.bfloat16)
    w2_f = w2.astype(jnp.float32)
    b1_2d = b1.reshape(1, hidden).astype(jnp.float32)
    b2_2d = b2.reshape(1, emb).astype(jnp.float32)

    budget = _vmem_budget()
    tb, tc = _pick_tiles(B, C, hw, hidden, emb, budget)

    b_pad = pl.cdiv(B, tb) * tb
    if b_pad != B:
        x = jnp.pad(x, ((0, b_pad - B), (0, 0), (0, 0)))
    nb, nc = b_pad // tb, pl.cdiv(C, tc)
    assert nc * tc == C, "channel tile must divide C"

    cost = pl.CostEstimate(
        flops=(b_pad * C * hw                 # pooling adds
               + 2 * b_pad * C * hidden       # Linear(1792, 512)
               + 2 * b_pad * hidden * emb     # Linear(512, emb)
               + 4 * b_pad * emb),            # normalize
        transcendentals=b_pad,                # rsqrt per row
        bytes_accessed=(2 * b_pad * C * hw            # bf16 feature read
                        + nb * 2 * C * hidden         # W1 streamed per b-tile
                        + 4 * (hidden * emb + hidden + emb)
                        + 4 * b_pad * emb),
    )

    out = pl.pallas_call(
        functools.partial(_projection_kernel, 1.0 / hw),
        out_shape=jax.ShapeDtypeStruct((b_pad, emb), jnp.float32),
        grid=(nb, nc),
        in_specs=[
            # Feature slab: batch tile b, channel tile c, full (small) spatial.
            pl.BlockSpec((tb, tc, hw), lambda b, c: (b, c, 0)),
            # W1 streamed per channel tile.
            pl.BlockSpec((tc, hidden), lambda b, c: (c, 0)),
            # Small constant-index operands (stay VMEM-resident).
            pl.BlockSpec((1, hidden), lambda b, c: (0, 0)),
            pl.BlockSpec((hidden, emb), lambda b, c: (0, 0)),
            pl.BlockSpec((1, emb), lambda b, c: (0, 0)),
        ],
        # Output block constant across the channel (reduction) axis.
        out_specs=pl.BlockSpec((tb, emb), lambda b, c: (b, 0)),
        scratch_shapes=[pltpu.VMEM((tb, hidden), jnp.float32)],
        compiler_params=pltpu.CompilerParams(
            dimension_semantics=("parallel", "arbitrary"),
            vmem_limit_bytes=budget,
        ),
        cost_estimate=cost,
    )(x, w1_b, b1_2d, w2_f, b2_2d)

    return out[:B]


# --------------------------------------------------------------------------
# Reference + test
# --------------------------------------------------------------------------
def reference(feats_nchw, w1, b1, w2, b2):
    pooled = jnp.mean(feats_nchw, axis=(2, 3))       # [B, C]
    h = jnp.maximum(pooled @ w1 + b1, 0.0)
    e = h @ w2 + b2
    n = jnp.maximum(jnp.linalg.norm(e, axis=-1, keepdims=True), 1e-12)
    return e / n


if __name__ == "__main__":
    key = jax.random.PRNGKey(0)
    k_feat, k_w1, k_b1, k_w2, k_b2 = jax.random.split(key, 5)

    # B4 backbone at 384x384 input yields a 12x12x1792 feature map.
    B, H, W = 2, 12, 12
    feats = jax.random.normal(k_feat, (B, FEAT_C, H, W), dtype=jnp.float32)

    # Deterministic parameter init (Linear(1792,512), Linear(512,emb_dim))
    w1 = jax.random.normal(k_w1, (FEAT_C, HIDDEN), dtype=jnp.float32) * 0.02
    b1 = jax.random.normal(k_b1, (HIDDEN,), dtype=jnp.float32) * 0.02
    w2 = jax.random.normal(k_w2, (HIDDEN, EMB_DIM), dtype=jnp.float32) * 0.02
    b2 = jax.random.normal(k_b2, (EMB_DIM,), dtype=jnp.float32) * 0.02

    out = projection_head(feats, w1, b1, w2, b2)
    out = jax.block_until_ready(out)
    assert out.shape == (B, EMB_DIM)

    # Reference computed on the same bf16-rounded inputs the kernel consumes
    # (isolates kernel math from the intentional bf16 quantization).
    feats_q = feats.astype(jnp.bfloat16).astype(jnp.float32)
    w1_q = w1.astype(jnp.bfloat16).astype(jnp.float32)
    ref = reference(feats_q, w1_q, b1, w2, b2)
    assert jnp.allclose(out, ref, atol=1e-3, rtol=1e-2), "mismatch vs reference"

    print("KERNEL_OK")
</pallas_src>

<mosaic_0001>
module attributes {stable_mosaic.version = 11 : i64} {
  func.func @_projection_kernel(%arg0: i32, %arg1: i32, %arg2: memref<2x896x144xbf16, #tpu.memory_space<vmem>>, %arg3: memref<896x512xbf16, #tpu.memory_space<vmem>>, %arg4: memref<1x512xf32, #tpu.memory_space<vmem>>, %arg5: memref<512x128xf32, #tpu.memory_space<vmem>>, %arg6: memref<1x128xf32, #tpu.memory_space<vmem>>, %arg7: memref<2x128xf32, #tpu.memory_space<vmem>>, %arg8: memref<2x512xf32, #tpu.memory_space<vmem>>) attributes {dimension_semantics = [#tpu.dimension_semantics<parallel>, #tpu.dimension_semantics<arbitrary>], iteration_bounds = array<i64: 1, 2>, scalar_prefetch = 0 : i64, scratch_operands = 1 : i64, tpu.core_type = #tpu.core_type<tc>, window_params = [{transform_indices = @transform_0, window_bounds = array<i64: 2, 896, 144>}, {transform_indices = @transform_1, window_bounds = array<i64: 896, 512>}, {pipeline_mode = #tpu.pipeline_mode<synchronous>, transform_indices = @transform_2, window_bounds = array<i64: 1, 512>}, {pipeline_mode = #tpu.pipeline_mode<synchronous>, transform_indices = @transform_3, window_bounds = array<i64: 512, 128>}, {pipeline_mode = #tpu.pipeline_mode<synchronous>, transform_indices = @transform_4, window_bounds = array<i64: 1, 128>}, {transform_indices = @transform_5, window_bounds = array<i64: 2, 128>}]} {
    %c0_i32 = arith.constant 0 : i32
    %0 = arith.cmpi eq, %arg1, %c0_i32 : i32
    %1 = arith.extui %0 : i1 to i32
    %c0_i32_0 = arith.constant 0 : i32
    %2 = arith.cmpi ne, %1, %c0_i32_0 : i32
    scf.if %2 {
      %cst_12 = arith.constant 0.000000e+00 : f32
      %20 = vector.broadcast %cst_12 : f32 to vector<2x512xf32>
      %c0_13 = arith.constant 0 : index
      %c0_14 = arith.constant 0 : index
      %21 = vector.load %arg8[%c0_13, %c0_14] : memref<2x512xf32, #tpu.memory_space<vmem>>, vector<2x512xf32>
      tpu.vector_store %arg8[%c0_13, %c0_14], %20 {strides = array<i32>} : memref<2x512xf32, #tpu.memory_space<vmem>>, vector<2x512xf32>,
    } else {
    }
    %c0 = arith.constant 0 : index
    %c0_1 = arith.constant 0 : index
    %c0_2 = arith.constant 0 : index
    %3 = vector.load %arg2[%c0, %c0_1, %c0_2] : memref<2x896x144xbf16, #tpu.memory_space<vmem>>, vector<2x896x144xbf16>
    %4 = vector.extract_strided_slice %3 {offsets = [0, 0, 0], sizes = [2, 896, 128], strides = [1, 1, 1]} : vector<2x896x144xbf16> to vector<2x896x128xbf16>
    %5 = arith.extf %4 : vector<2x896x128xbf16> to vector<2x896x128xf32>
    %cst = arith.constant dense<0.000000e+00> : vector<2x896xf32>
    %6 = vector.multi_reduction <add>, %5, %cst [2] : vector<2x896x128xf32> to vector<2x896xf32>
    %7 = vector.extract_strided_slice %3 {offsets = [0, 0, 128], sizes = [2, 896, 16], strides = [1, 1, 1]} : vector<2x896x144xbf16> to vector<2x896x16xbf16>
    %8 = arith.extf %7 : vector<2x896x16xbf16> to vector<2x896x16xf32>
    %cst_3 = arith.constant dense<0.000000e+00> : vector<2x896xf32>
    %9 = vector.multi_reduction <add>, %8, %cst_3 [2] : vector<2x896x16xf32> to vector<2x896xf32>
    %10 = arith.addf %6, %9 : vector<2x896xf32>
    %c0_4 = arith.constant 0 : index
    %c0_5 = arith.constant 0 : index
    %11 = vector.load %arg8[%c0_4, %c0_5] : memref<2x512xf32, #tpu.memory_space<vmem>>, vector<2x512xf32>
    %c0_6 = arith.constant 0 : index
    %c0_7 = arith.constant 0 : index
    %12 = vector.load %arg3[%c0_6, %c0_7] : memref<896x512xbf16, #tpu.memory_space<vmem>>, vector<896x512xbf16>
    %13 = arith.extf %12 : vector<896x512xbf16> to vector<896x512xf32>
    %cst_8 = arith.constant dense<0.000000e+00> : vector<2x512xf32>
    %14 = tpu.matmul %10, %13, %cst_8 {dimension_numbers = #tpu.dot_dimension_numbers<[1], [0], [0], [1], [0, 0, 1, 1], [], []>} : vector<2x896xf32>, vector<896x512xf32>, vector<2x512xf32> -> vector<2x512xf32>
    %15 = arith.addf %11, %14 : vector<2x512xf32>
    %c0_9 = arith.constant 0 : index
    %c0_10 = arith.constant 0 : index
    %16 = vector.load %arg8[%c0_9, %c0_10] : memref<2x512xf32, #tpu.memory_space<vmem>>, vector<2x512xf32>
    tpu.vector_store %arg8[%c0_9, %c0_10], %15 {strides = array<i32>} : memref<2x512xf32, #tpu.memory_space<vmem>>, vector<2x512xf32>,
    %c1_i32 = arith.constant 1 : i32
    %17 = arith.cmpi eq, %arg1, %c1_i32 : i32
    %18 = arith.extui %17 : i1 to i32
    %c0_i32_11 = arith.constant 0 : i32
    %19 = arith.cmpi ne, %18, %c0_i32_11 : i32
    scf.if %19 {
      %c0_12 = arith.constant 0 : index
      %c0_13 = arith.constant 0 : index
      %20 = vector.load %arg8[%c0_12, %c0_13] : memref<2x512xf32, #tpu.memory_space<vmem>>, vector<2x512xf32>
      %cst_14 = arith.constant 0.0069444445 : f32
      %21 = vector.broadcast %cst_14 : f32 to vector<2x512xf32>
      %22 = arith.mulf %20, %21 : vector<2x512xf32>
      %c0_15 = arith.constant 0 : index
      %c0_16 = arith.constant 0 : index
      %23 = vector.load %arg4[%c0_15, %c0_16] : memref<1x512xf32, #tpu.memory_space<vmem>>, vector<1x512xf32>
      %24 = vector.broadcast %23 : vector<1x512xf32> to vector<2x512xf32>
      %25 = arith.addf %22, %24 : vector<2x512xf32>
      %cst_17 = arith.constant 0.000000e+00 : f32
      %26 = vector.broadcast %cst_17 : f32 to vector<2x512xf32>
      %27 = arith.maximumf %25, %26 : vector<2x512xf32>
      %c0_18 = arith.constant 0 : index
      %c0_19 = arith.constant 0 : index
      %28 = vector.load %arg5[%c0_18, %c0_19] : memref<512x128xf32, #tpu.memory_space<vmem>>, vector<512x128xf32>
      %cst_20 = arith.constant dense<0.000000e+00> : vector<2x128xf32>
      %29 = tpu.matmul %27, %28, %cst_20 {dimension_numbers = #tpu.dot_dimension_numbers<[1], [0], [0], [1], [0, 0, 1, 1], [], []>} : vector<2x512xf32>, vector<512x128xf32>, vector<2x128xf32> -> vector<2x128xf32>
      %c0_21 = arith.constant 0 : index
      %c0_22 = arith.constant 0 : index
      %30 = vector.load %arg6[%c0_21, %c0_22] : memref<1x128xf32, #tpu.memory_space<vmem>>, vector<1x128xf32>
      %31 = vector.broadcast %30 : vector<1x128xf32> to vector<2x128xf32>
      %32 = arith.addf %29, %31 : vector<2x128xf32>
      %33 = arith.mulf %32, %32 : vector<2x128xf32>
      %cst_23 = arith.constant dense<0.000000e+00> : vector<2xf32>
      %34 = vector.multi_reduction <add>, %33, %cst_23 [1] : vector<2x128xf32> to vector<2xf32>
      %35 = vector.shape_cast %34 : vector<2xf32> to vector<2x1xf32>
      %cst_24 = arith.constant 1.000000e-24 : f32
      %36 = vector.broadcast %cst_24 : f32 to vector<2x1xf32>
      %37 = arith.maximumf %35, %36 : vector<2x1xf32>
      %38 = math.rsqrt %37 : vector<2x1xf32>
      %39 = vector.broadcast %38 : vector<2x1xf32> to vector<2x128xf32>
      %40 = arith.mulf %32, %39 : vector<2x128xf32>
      %c0_25 = arith.constant 0 : index
      %c0_26 = arith.constant 0 : index
      %41 = vector.load %arg7[%c0_25, %c0_26] : memref<2x128xf32, #tpu.memory_space<vmem>>, vector<2x128xf32>
      tpu.vector_store %arg7[%c0_25, %c0_26], %40 {strides = array<i32>} : memref<2x128xf32, #tpu.memory_space<vmem>>, vector<2x128xf32>,
    } else {
    }
    return
  }
  func.func @transform_0(%arg0: i32, %arg1: i32) -> (i32, i32, i32) {
    %c0_i32 = arith.constant 0 : i32
    %c0_i32_0 = arith.constant 0 : i32
    return %arg0, %arg1, %c0_i32 : i32, i32, i32
  }
  func.func @transform_1(%arg0: i32, %arg1: i32) -> (i32, i32) {
    %c0_i32 = arith.constant 0 : i32
    %c0_i32_0 = arith.constant 0 : i32
    return %arg1, %c0_i32 : i32, i32
  }
  func.func @transform_2(%arg0: i32, %arg1: i32) -> (i32, i32) {
    %c0_i32 = arith.constant 0 : i32
    %c0_i32_0 = arith.constant 0 : i32
    %c0_i32_1 = arith.constant 0 : i32
    return %c0_i32, %c0_i32_0 : i32, i32
  }
  func.func @transform_3(%arg0: i32, %arg1: i32) -> (i32, i32) {
    %c0_i32 = arith.constant 0 : i32
    %c0_i32_0 = arith.constant 0 : i32
    %c0_i32_1 = arith.constant 0 : i32
    return %c0_i32, %c0_i32_0 : i32, i32
  }
  func.func @transform_4(%arg0: i32, %arg1: i32) -> (i32, i32) {
    %c0_i32 = arith.constant 0 : i32
    %c0_i32_0 = arith.constant 0 : i32
    %c0_i32_1 = arith.constant 0 : i32
    return %c0_i32, %c0_i32_0 : i32, i32
  }
  func.func @transform_5(%arg0: i32, %arg1: i32) -> (i32, i32) {
    %c0_i32 = arith.constant 0 : i32
    %c0_i32_0 = arith.constant 0 : i32
    return %arg0, %c0_i32 : i32, i32
  }
}

</mosaic_0001>

<llo_original>
// kernel: tpu_custom_call.1
$region0: #{tpu_custom_call.1}
  #allocation0 [shape = 'u32[]', space=smem, size = 0x4, offset = 0x4, fixed_abs, tag = 'smem constant byte address 0x4 - core index']
  #allocation1 [shape = 'u32[72,128]{1,0:T(1,128)}', space=vmem, size = 0x9000, scoped, tag = 'internal scratch']
  #allocation2 [shape = 'f32[2,512]{1,0:T(2,128)}', space=vmem, size = 0x1000, scoped, tag = 'scratch operand']
  %s0 = inlined_call_operand.vmem [shape: bf16[2,1792,144], index: 0, kind: input, shape index: {}]
  %s1 = inlined_call_operand.vmem [shape: bf16[1792,512], index: 1, kind: input, shape index: {}]
  %s2 = inlined_call_operand.vmem [shape: f32[1,512], index: 2, kind: input, shape index: {}]
  %s3 = inlined_call_operand.vmem [shape: f32[512,128], index: 3, kind: input, shape index: {}]
  %s4 = inlined_call_operand.vmem [shape: f32[1,128], index: 4, kind: input, shape index: {}]
  %s5 = inlined_call_operand.hbm [shape: f32[2,128], index: 5, kind: output, shape index: {}]
  %s6 = sld [smem:[#allocation0]]
  $region99: #{tpu_custom_call.1} parent=0
    _
  %s8 = ssub.s32 1, %s6
  %s9 = scalar_select 0, %s8, %s6
  $region1: #{tpu_custom_call.1} parent=0
    #allocation3 [shape = 'u8[1835008]{0}', space=vmem, size = 0x1c0000, scoped, tag = 'input window, operand 0']
    #allocation4 [shape = 'u8[1024]{0}', space=vmem, size = 0x400, scoped, tag = 'output window, operand 0, single buffered']
    #allocation5 [shape = 's32[2]{0}', space=sflag, size = 0x8, scoped, tag = 'scoped memory for tpu_custom_call.1']
    %10 = vsyncpa [#allocation5], 0
    loop: start=0, step=1, limit=4
    $region2: #{tpu_custom_call.1} parent=1 // loop_pre_header
      _
    $region3: #{tpu_custom_call.1} parent=1 // loop_header
      %s12 = sphi 0, %s16
      %p13 = scmp.ge.s32.totalorder %s12, 4
      %s19 = sphi 0, %s31
      %s20 = sphi 0, %s27
      %s21 = sphi 0, %s19
      %s22 = sphi 0, %s20
      %s23 = sphi 0, %s21
      %s24 = sphi 0, %s22
      %s36 = sphi 0, %s38
      %s39 = sphi 0, %s36
      %s40 = sphi 0, %s39
      %s56 = sphi 0, %s40
      %s62 = sphi 0, %s64
      %s65 = sphi 0, %s62
      %s66 = sphi 0, %s65
      %s82 = sphi 0, %s66
      %s86 = sphi 0, %s86
      %s88 = sphi 0, %s86
      %s89 = sphi 0, %s88
      %s103 = sphi 0, %s89
      %s107 = sphi 0, %s107
      %s109 = sphi 0, %s107
      %s110 = sphi 0, %s109
      %s124 = sphi 0, %s110
      %s128 = sphi 0, %s128
      %s130 = sphi 0, %s128
      %s131 = sphi 0, %s130
      %s145 = sphi 0, %s131
      %s151 = sphi 0, %s153
      %s154 = sphi 0, %s151
      %s155 = sphi 0, %s154
      %s171 = sphi 0, %s155
    $region4: #{tpu_custom_call.1} parent=1 // loop_header_branch
      %15 = sbr.rel (%p13) target = $region8
    $region5: #{tpu_custom_call.1} parent=1 // loop_body
      %s17 = ssub.s32 %s12, 1
      %s18 = ssub.s32 %s12, 2
      %s25 = sadd.s32 1, %s20
      %p26 = scmp.ge.s32.totalorder %s25, 2
      %s27 = scalar_select %p26, 0, %s25
      %s28 = sadd.s32 1, %s19
      %s29 = scalar_select %p26, %s28, %s19
      %p30 = scmp.ge.s32.totalorder %s29, 1
      %s31 = scalar_select %p30, 0, %s29
      %s32 = ssub.s32 %s19, %s31
      %s33 = ssub.s32 %s20, %s27
      %s34 = sor.u32 %s32, %s33
      %p35 = scmp.eq.s32.totalorder %s34, 0
      %s37 = sadd.s32 %s36, 1
      %s38 = scalar_select %p35, %s36, %s37
      %p41 = pneg %p35
      %p42 = scmp.eq.s32.totalorder %s12, 1
      %p43 = por %p41, %p42
      %p44 = scmp.ne.s32.totalorder %s36, %s39
      %p45 = scmp.eq.s32.totalorder %s12, 0
      %p46 = por %p44, %p45
      %p47 = scmp.ne.s32.totalorder %s36, %s39
      %p48 = scmp.eq.s32.totalorder %s17, 1
      %p49 = por %p47, %p48
      %p50 = scmp.ne.s32.totalorder %s39, %s40
      %p51 = scmp.eq.s32.totalorder %s17, 0
      %p52 = por %p50, %p51
      %p53 = scmp.ne.s32.totalorder %s39, %s40
      %p54 = scmp.eq.s32.totalorder %s18, 1
      %p55 = por %p53, %p54
      %p57 = scmp.ne.s32.totalorder %s40, %s56
      %p58 = scmp.eq.s32.totalorder %s18, 0
      %p59 = por %p57, %p58
      %s60 = ssub.s32 %s20, %s27
      %p61 = scmp.eq.s32.totalorder %s60, 0
      %s63 = sadd.s32 %s62, 1
      %s64 = scalar_select %p61, %s62, %s63
      %p67 = pneg %p61
      %p68 = scmp.eq.s32.totalorder %s12, 1
      %p69 = por %p67, %p68
      %p70 = scmp.ne.s32.totalorder %s62, %s65
      %p71 = scmp.eq.s32.totalorder %s12, 0
      %p72 = por %p70, %p71
      %p73 = scmp.ne.s32.totalorder %s62, %s65
      %p74 = scmp.eq.s32.totalorder %s17, 1
      %p75 = por %p73, %p74
      %p76 = scmp.ne.s32.totalorder %s65, %s66
      %p77 = scmp.eq.s32.totalorder %s17, 0
      %p78 = por %p76, %p77
      %p79 = scmp.ne.s32.totalorder %s65, %s66
      %p80 = scmp.eq.s32.totalorder %s18, 1
      %p81 = por %p79, %p80
      %p83 = scmp.ne.s32.totalorder %s66, %s82
      %p84 = scmp.eq.s32.totalorder %s18, 0
      %p85 = por %p83, %p84
      %s87 = sadd.s32 %s86, 1
      %p90 = scmp.eq.s32.totalorder %s12, 1
      %p91 = scmp.ne.s32.totalorder %s86, %s88
      %p92 = scmp.eq.s32.totalorder %s12, 0
      %p93 = por %p91, %p92
      %p94 = scmp.ne.s32.totalorder %s86, %s88
      %p95 = scmp.eq.s32.totalorder %s17, 1
      %p96 = por %p94, %p95
      %p97 = scmp.ne.s32.totalorder %s88, %s89
      %p98 = scmp.eq.s32.totalorder %s17, 0
      %p99 = por %p97, %p98
      %p100 = scmp.ne.s32.totalorder %s88, %s89
      %p101 = scmp.eq.s32.totalorder %s18, 1
      %p102 = por %p100, %p101
      %p104 = scmp.ne.s32.totalorder %s89, %s103
      %p105 = scmp.eq.s32.totalorder %s18, 0
      %p106 = por %p104, %p105
      %s108 = sadd.s32 %s107, 1
      %p111 = scmp.eq.s32.totalorder %s12, 1
      %p112 = scmp.ne.s32.totalorder %s107, %s109
      %p113 = scmp.eq.s32.totalorder %s12, 0
      %p114 = por %p112, %p113
      %p115 = scmp.ne.s32.totalorder %s107, %s109
      %p116 = scmp.eq.s32.totalorder %s17, 1
      %p117 = por %p115, %p116
      %p118 = scmp.ne.s32.totalorder %s109, %s110
      %p119 = scmp.eq.s32.totalorder %s17, 0
      %p120 = por %p118, %p119
      %p121 = scmp.ne.s32.totalorder %s109, %s110
      %p122 = scmp.eq.s32.totalorder %s18, 1
      %p123 = por %p121, %p122
      %p125 = scmp.ne.s32.totalorder %s110, %s124
      %p126 = scmp.eq.s32.totalorder %s18, 0
      %p127 = por %p125, %p126
      %s129 = sadd.s32 %s128, 1
      %p132 = scmp.eq.s32.totalorder %s12, 1
      %p133 = scmp.ne.s32.totalorder %s128, %s130
      %p134 = scmp.eq.s32.totalorder %s12, 0
      %p135 = por %p133, %p134
      %p136 = scmp.ne.s32.totalorder %s128, %s130
      %p137 = scmp.eq.s32.totalorder %s17, 1
      %p138 = por %p136, %p137
      %p139 = scmp.ne.s32.totalorder %s130, %s131
      %p140 = scmp.eq.s32.totalorder %s17, 0
      %p141 = por %p139, %p140
      %p142 = scmp.ne.s32.totalorder %s130, %s131
      %p143 = scmp.eq.s32.totalorder %s18, 1
      %p144 = por %p142, %p143
      %p146 = scmp.ne.s32.totalorder %s131, %s145
      %p147 = scmp.eq.s32.totalorder %s18, 0
      %p148 = por %p146, %p147
      %s149 = ssub.s32 %s19, %s31
      %p150 = scmp.eq.s32.totalorder %s149, 0
      %s152 = sadd.s32 %s151, 1
      %s153 = scalar_select %p150, %s151, %s152
      %p156 = pneg %p150
      %p157 = scmp.eq.s32.totalorder %s12, 1
      %p158 = por %p156, %p157
      %p159 = scmp.ne.s32.totalorder %s151, %s154
      %p160 = scmp.eq.s32.totalorder %s12, 0
      %p161 = por %p159, %p160
      %p162 = scmp.ne.s32.totalorder %s151, %s154
      %p163 = scmp.eq.s32.totalorder %s17, 1
      %p164 = por %p162, %p163
      %p165 = scmp.ne.s32.totalorder %s154, %s155
      %p166 = scmp.eq.s32.totalorder %s17, 0
      %p167 = por %p165, %p166
      %p168 = scmp.ne.s32.totalorder %s154, %s155
      %p169 = scmp.eq.s32.totalorder %s18, 1
      %p170 = por %p168, %p169
      %p172 = scmp.ne.s32.totalorder %s155, %s171
      %p173 = scmp.eq.s32.totalorder %s18, 0
      %p174 = por %p172, %p173
      %p175 = scmp.le.s32.totalorder 1, %s12
      %p176 = scmp.lt.s32.totalorder %s12, 3
      %p177 = pnand %p175, %p176
      %p178 = pneg %p177
      // Predicated region
      $region9: #{tpu_custom_call.1} parent=5 // pred_check
        _
      $region10: #{tpu_custom_call.1} parent=5 // pred_check_branch
        %180 = sbr.rel (%p177) target = $region12
      $region11: #{tpu_custom_call.1} parent=5 // pred_region
        %s181 = ssub.s32 %s12, 1
        // Predicated region
        $region13: #{tpu_custom_call.1} parent=11 // pred_check
          %p182 = pneg %p99
        $region14: #{tpu_custom_call.1} parent=11 // pred_check_branch
          %184 = sbr.rel (%p182) target = $region16
        $region15: #{tpu_custom_call.1} parent=11 // pred_region
          _
        $region16: #{tpu_custom_call.1} parent=11 // pred_fallthru
          _
        // Predicated region
        $region17: #{tpu_custom_call.1} parent=11 // pred_check
          %p185 = pneg %p120
        $region18: #{tpu_custom_call.1} parent=11 // pred_check_branch
          %187 = sbr.rel (%p185) target = $region20
        $region19: #{tpu_custom_call.1} parent=11 // pred_region
          _
        $region20: #{tpu_custom_call.1} parent=11 // pred_fallthru
          _
        // Predicated region
        $region21: #{tpu_custom_call.1} parent=11 // pred_check
          %p188 = pneg %p141
        $region22: #{tpu_custom_call.1} parent=11 // pred_check_branch
          %190 = sbr.rel (%p188) target = $region24
        $region23: #{tpu_custom_call.1} parent=11 // pred_region
          _
        $region24: #{tpu_custom_call.1} parent=11 // pred_fallthru
          _
      $region12: #{tpu_custom_call.1} parent=5 // pred_fallthru
        _
      %p191 = scmp.lt.s32.totalorder %s12, 2
      // Predicated region
      $region25: #{tpu_custom_call.1} parent=5 // pred_check
        %p192 = pneg %p191
      $region26: #{tpu_custom_call.1} parent=5 // pred_check_branch
        %194 = sbr.rel (%p192) target = $region28
      $region27: #{tpu_custom_call.1} parent=5 // pred_region
        // Predicated region
        $region29: #{tpu_custom_call.1} parent=27 // pred_check
          %p195 = pneg %p46
        $region30: #{tpu_custom_call.1} parent=27 // pred_check_branch
          %197 = sbr.rel (%p195) target = $region32
        $region31: #{tpu_custom_call.1} parent=27 // pred_region
          %s198 = sand.u32 %s36, 1
          %s199 = sand.u32 %s36, 1
          %s200 = smul.addr %s199, 1792
          %s201 = scalar_lea.vmem [#allocation3], %s200
          %s202 = smul.u32 2, %s19
          %s203 = smul.u32 112, %s20
          %s204 = smul.addr %s203, 2
          %s205 = smul.addr %s202, 448
          %s206 = sadd.s32 %s204, %s205
          %s207 = smul.addr %s206, 4
          %s208 = scalar_lea.vmem %s0, %s207
          // Predicated region
          $region33: #{tpu_custom_call.1} parent=31 // pred_check
            _
          $region34: #{tpu_custom_call.1} parent=31 // pred_check_branch
            %210 = sbr.rel (0) target = $region36
          $region35: #{tpu_custom_call.1} parent=31 // pred_region
            // Predicated region
            $region37: #{tpu_custom_call.1} parent=35 // pred_check
              _
            $region38: #{tpu_custom_call.1} parent=35 // pred_check_branch
              %212 = sbr.rel (0) target = $region40
            $region39: #{tpu_custom_call.1} parent=35 // pred_region
              // Predicated region
              $region52: #{tpu_custom_call.1} parent=39 // pred_check
                _
              $region53: #{tpu_custom_call.1} parent=39 // pred_check_branch
                %674 = sbr.rel (0) target = $region55
              $region54: #{tpu_custom_call.1} parent=39 // pred_region
                loop: start=0, step=1, limit=1
                $region56: #{tpu_custom_call.1} parent=54 // loop_pre_header
                  _
                $region57: #{tpu_custom_call.1} parent=54 // loop_header
                  %s676 = sphi 0, %s680
                  %p677 = scmp.ge.s32.totalorder %s676, 1
                  %s681 = sphi %s208, %s208
                  %s682 = sphi %s201, %s201
                $region58: #{tpu_custom_call.1} parent=54 // loop_header_branch
                  %679 = sbr.rel (%p677) target = $region62
                $region59: #{tpu_custom_call.1} parent=54 // loop_body
                  %v683 = vld [vmem:[%s681] sm:$0xff]
                  %684 = vst [vmem:[%s682] sm:$0xff] %v683
                  %v685 = vld [vmem:[%s681 + $0x8] sm:$0xff]
                  %686 = vst [vmem:[%s682 + $0x8] sm:$0xff] %v685
                  %v687 = vld [vmem:[%s681 + $0x10] sm:$0xff]
                  %688 = vst [vmem:[%s682 + $0x10] sm:$0xff] %v687
                  %v689 = vld [vmem:[%s681 + $0x18] sm:$0xff]
                  %690 = vst [vmem:[%s682 + $0x18] sm:$0xff] %v689
                  %v691 = vld [vmem:[%s681 + $0x20] sm:$0xff]
                  %692 = vst [vmem:[%s682 + $0x20] sm:$0xff] %v691
                  %v693 = vld [vmem:[%s681 + $0x28] sm:$0xff]
                  %694 = vst [vmem:[%s682 + $0x28] sm:$0xff] %v693
                  %v695 = vld [vmem:[%s681 + $0x30] sm:$0xff]
                  %696 = vst [vmem:[%s682 + $0x30] sm:$0xff] %v695
                  %v697 = vld [vmem:[%s681 + $0x38] sm:$0xff]
                  %698 = vst [vmem:[%s682 + $0x38] sm:$0xff] %v697
                  %v699 = vld [vmem:[%s681 + $0x40] sm:$0xff]
                  %700 = vst [vmem:[%s682 + $0x40] sm:$0xff] %v699
                  %v701 = vld [vmem:[%s681 + $0x48] sm:$0xff]
                  %702 = vst [vmem:[%s682 + $0x48] sm:$0xff] %v701
                  %v703 = vld [vmem:[%s681 + $0x50] sm:$0xff]
                  %704 = vst [vmem:[%s682 + $0x50] sm:$0xff] %v703
                  %v705 = vld [vmem:[%s681 + $0x58] sm:$0xff]
                  %706 = vst [vmem:[%s682 + $0x58] sm:$0xff] %v705
                  %v707 = vld [vmem:[%s681 + $0x60] sm:$0xff]
                  %708 = vst [vmem:[%s682 + $0x60] sm:$0xff] %v707
                  %v709 = vld [vmem:[%s681 + $0x68] sm:$0xff]
                  %710 = vst [vmem:[%s682 + $0x68] sm:$0xff] %v709
                  %v711 = vld [vmem:[%s681 + $0x70] sm:$0xff]
                  %712 = vst [vmem:[%s682 + $0x70] sm:$0xff] %v711
                  %v713 = vld [vmem:[%s681 + $0x78] sm:$0xff]
                  %714 = vst [vmem:[%s682 + $0x78] sm:$0xff] %v713
                  %v715 = vld [vmem:[%s681 + $0x80] sm:$0xff]
                  %716 = vst [vmem:[%s682 + $0x80] sm:$0xff] %v715
                  %v717 = vld [vmem:[%s681 + $0x88] sm:$0xff]
                  %718 = vst [vmem:[%s682 + $0x88] sm:$0xff] %v717
                  %v719 = vld [vmem:[%s681 + $0x90] sm:$0xff]
                  %720 = vst [vmem:[%s682 + $0x90] sm:$0xff] %v719
                  %v721 = vld [vmem:[%s681 + $0x98] sm:$0xff]
                  %722 = vst [vmem:[%s682 + $0x98] sm:$0xff] %v721
                  %v723 = vld [vmem:[%s681 + $0xa0] sm:$0xff]
                  %724 = vst [vmem:[%s682 + $0xa0] sm:$0xff] %v723
                  %v725 = vld [vmem:[%s681 + $0xa8] sm:$0xff]
                  %726 = vst [vmem:[%s682 + $0xa8] sm:$0xff] %v725
                  %v727 = vld [vmem:[%s681 + $0xb0] sm:$0xff]
                  %728 = vst [vmem:[%s682 + $0xb0] sm:$0xff] %v727
                  %v729 = vld [vmem:[%s681 + $0xb8] sm:$0xff]
                  %730 = vst [vmem:[%s682 + $0xb8] sm:$0xff] %v729
                  %v731 = vld [vmem:[%s681 + $0xc0] sm:$0xff]
                  %732 = vst [vmem:[%s682 + $0xc0] sm:$0xff] %v731
                  %v733 = vld [vmem:[%s681 + $0xc8] sm:$0xff]
                  %734 = vst [vmem:[%s682 + $0xc8] sm:$0xff] %v733
                  %v735 = vld [vmem:[%s681 + $0xd0] sm:$0xff]
                  %736 = vst [vmem:[%s682 + $0xd0] sm:$0xff] %v735
                  %v737 = vld [vmem:[%s681 + $0xd8] sm:$0xff]
                  %738 = vst [vmem:[%s682 + $0xd8] sm:$0xff] %v737
                  %v739 = vld [vmem:[%s681 + $0xe0] sm:$0xff]
                  %740 = vst [vmem:[%s682 + $0xe0] sm:$0xff] %v739
                  %v741 = vld [vmem:[%s681 + $0xe8] sm:$0xff]
                  %742 = vst [vmem:[%s682 + $0xe8] sm:$0xff] %v741
                  %v743 = vld [vmem:[%s681 + $0xf0] sm:$0xff]
                  %744 = vst [vmem:[%s682 + $0xf0] sm:$0xff] %v743
                  %v745 = vld [vmem:[%s681 + $0xf8] sm:$0xff]
                  %746 = vst [vmem:[%s682 + $0xf8] sm:$0xff] %v745
                  %v747 = vld [vmem:[%s681 + $0x100] sm:$0xff]
                  %748 = vst [vmem:[%s682 + $0x100] sm:$0xff] %v747
                  %v749 = vld [vmem:[%s681 + $0x108] sm:$0xff]
                  %750 = vst [vmem:[%s682 + $0x108] sm:$0xff] %v749
                  %v751 = vld [vmem:[%s681 + $0x110] sm:$0xff]
                  %752 = vst [vmem:[%s682 + $0x110] sm:$0xff] %v751
                  %v753 = vld [vmem:[%s681 + $0x118] sm:$0xff]
                  %754 = vst [vmem:[%s682 + $0x118] sm:$0xff] %v753
                  %v755 = vld [vmem:[%s681 + $0x120] sm:$0xff]
                  %756 = vst [vmem:[%s682 + $0x120] sm:$0xff] %v755
                  %v757 = vld [vmem:[%s681 + $0x128] sm:$0xff]
                  %758 = vst [vmem:[%s682 + $0x128] sm:$0xff] %v757
                  %v759 = vld [vmem:[%s681 + $0x130] sm:$0xff]
                  %760 = vst [vmem:[%s682 + $0x130] sm:$0xff] %v759
                  %v761 = vld [vmem:[%s681 + $0x138] sm:$0xff]
                  %762 = vst [vmem:[%s682 + $0x138] sm:$0xff] %v761
                  %v763 = vld [vmem:[%s681 + $0x140] sm:$0xff]
                  %764 = vst [vmem:[%s682 + $0x140] sm:$0xff] %v763
                  %v765 = vld [vmem:[%s681 + $0x148] sm:$0xff]
                  %766 = vst [vmem:[%s682 + $0x148] sm:$0xff] %v765
                  %v767 = vld [vmem:[%s681 + $0x150] sm:$0xff]
                  %768 = vst [vmem:[%s682 + $0x150] sm:$0xff] %v767
                  %v769 = vld [vmem:[%s681 + $0x158] sm:$0xff]
                  %770 = vst [vmem:[%s682 + $0x158] sm:$0xff] %v769
                  %v771 = vld [vmem:[%s681 + $0x160] sm:$0xff]
                  %772 = vst [vmem:[%s682 + $0x160] sm:$0xff] %v771
                  %v773 = vld [vmem:[%s681 + $0x168] sm:$0xff]
                  %774 = vst [vmem:[%s682 + $0x168] sm:$0xff] %v773
                  %v775 = vld [vmem:[%s681 + $0x170] sm:$0xff]
                  %776 = vst [vmem:[%s682 + $0x170] sm:$0xff] %v775
                  %v777 = vld [vmem:[%s681 + $0x178] sm:$0xff]
                  %778 = vst [vmem:[%s682 + $0x178] sm:$0xff] %v777
                  %v779 = vld [vmem:[%s681 + $0x180] sm:$0xff]
                  %780 = vst [vmem:[%s682 + $0x180] sm:$0xff] %v779
                  %v781 = vld [vmem:[%s681 + $0x188] sm:$0xff]
                  %782 = vst [vmem:[%s682 + $0x188] sm:$0xff] %v781
                  %v783 = vld [vmem:[%s681 + $0x190] sm:$0xff]
                  %784 = vst [vmem:[%s682 + $0x190] sm:$0xff] %v783
                  %v785 = vld [vmem:[%s681 + $0x198] sm:$0xff]
                  %786 = vst [vmem:[%s682 + $0x198] sm:$0xff] %v785
                  %v787 = vld [vmem:[%s681 + $0x1a0] sm:$0xff]
                  %788 = vst [vmem:[%s682 + $0x1a0] sm:$0xff] %v787
                  %v789 = vld [vmem:[%s681 + $0x1a8] sm:$0xff]
                  %790 = vst [vmem:[%s682 + $0x1a8] sm:$0xff] %v789
                  %v791 = vld [vmem:[%s681 + $0x1b0] sm:$0xff]
                  %792 = vst [vmem:[%s682 + $0x1b0] sm:$0xff] %v791
                  %v793 = vld [vmem:[%s681 + $0x1b8] sm:$0xff]
                  %794 = vst [vmem:[%s682 + $0x1b8] sm:$0xff] %v793
                  %v795 = vld [vmem:[%s681 + $0x1c0] sm:$0xff]
                  %796 = vst [vmem:[%s682 + $0x1c0] sm:$0xff] %v795
                  %v797 = vld [vmem:[%s681 + $0x1c8] sm:$0xff]
                  %798 = vst [vmem:[%s682 + $0x1c8] sm:$0xff] %v797
                  %v799 = vld [vmem:[%s681 + $0x1d0] sm:$0xff]
                  %800 = vst [vmem:[%s682 + $0x1d0] sm:$0xff] %v799
                  %v801 = vld [vmem:[%s681 + $0x1d8] sm:$0xff]
                  %802 = vst [vmem:[%s682 + $0x1d8] sm:$0xff] %v801
                  %v803 = vld [vmem:[%s681 + $0x1e0] sm:$0xff]
                  %804 = vst [vmem:[%s682 + $0x1e0] sm:$0xff] %v803
                  %v805 = vld [vmem:[%s681 + $0x1e8] sm:$0xff]
                  %806 = vst [vmem:[%s682 + $0x1e8] sm:$0xff] %v805
                  %v807 = vld [vmem:[%s681 + $0x1f0] sm:$0xff]
                  %808 = vst [vmem:[%s682 + $0x1f0] sm:$0xff] %v807
                  %v809 = vld [vmem:[%s681 + $0x1f8] sm:$0xff]
                  %810 = vst [vmem:[%s682 + $0x1f8] sm:$0xff] %v809
                  %v811 = vld [vmem:[%s681 + $0x200] sm:$0xff]
                  %812 = vst [vmem:[%s682 + $0x200] sm:$0xff] %v811
                  %v813 = vld [vmem:[%s681 + $0x208] sm:$0xff]
                  %814 = vst [vmem:[%s682 + $0x208] sm:$0xff] %v813
                  %v815 = vld [vmem:[%s681 + $0x210] sm:$0xff]
                  %816 = vst [vmem:[%s682 + $0x210] sm:$0xff] %v815
                  %v817 = vld [vmem:[%s681 + $0x218] sm:$0xff]
                  %818 = vst [vmem:[%s682 + $0x218] sm:$0xff] %v817
                  %v819 = vld [vmem:[%s681 + $0x220] sm:$0xff]
                  %820 = vst [vmem:[%s682 + $0x220] sm:$0xff] %v819
                  %v821 = vld [vmem:[%s681 + $0x228] sm:$0xff]
                  %822 = vst [vmem:[%s682 + $0x228] sm:$0xff] %v821
                  %v823 = vld [vmem:[%s681 + $0x230] sm:$0xff]
                  %824 = vst [vmem:[%s682 + $0x230] sm:$0xff] %v823
                  %v825 = vld [vmem:[%s681 + $0x238] sm:$0xff]
                  %826 = vst [vmem:[%s682 + $0x238] sm:$0xff] %v825
                  %v827 = vld [vmem:[%s681 + $0x240] sm:$0xff]
                  %828 = vst [vmem:[%s682 + $0x240] sm:$0xff] %v827
                  %v829 = vld [vmem:[%s681 + $0x248] sm:$0xff]
                  %830 = vst [vmem:[%s682 + $0x248] sm:$0xff] %v829
                  %v831 = vld [vmem:[%s681 + $0x250] sm:$0xff]
                  %832 = vst [vmem:[%s682 + $0x250] sm:$0xff] %v831
                  %v833 = vld [vmem:[%s681 + $0x258] sm:$0xff]
                  %834 = vst [vmem:[%s682 + $0x258] sm:$0xff] %v833
                  %v835 = vld [vmem:[%s681 + $0x260] sm:$0xff]
                  %836 = vst [vmem:[%s682 + $0x260] sm:$0xff] %v835
                  %v837 = vld [vmem:[%s681 + $0x268] sm:$0xff]
                  %838 = vst [vmem:[%s682 + $0x268] sm:$0xff] %v837
                  %v839 = vld [vmem:[%s681 + $0x270] sm:$0xff]
                  %840 = vst [vmem:[%s682 + $0x270] sm:$0xff] %v839
                  %v841 = vld [vmem:[%s681 + $0x278] sm:$0xff]
                  %842 = vst [vmem:[%s682 + $0x278] sm:$0xff] %v841
                  %v843 = vld [vmem:[%s681 + $0x280] sm:$0xff]
                  %844 = vst [vmem:[%s682 + $0x280] sm:$0xff] %v843
                  %v845 = vld [vmem:[%s681 + $0x288] sm:$0xff]
                  %846 = vst [vmem:[%s682 + $0x288] sm:$0xff] %v845
                  %v847 = vld [vmem:[%s681 + $0x290] sm:$0xff]
                  %848 = vst [vmem:[%s682 + $0x290] sm:$0xff] %v847
                  %v849 = vld [vmem:[%s681 + $0x298] sm:$0xff]
                  %850 = vst [vmem:[%s682 + $0x298] sm:$0xff] %v849
                  %v851 = vld [vmem:[%s681 + $0x2a0] sm:$0xff]
                  %852 = vst [vmem:[%s682 + $0x2a0] sm:$0xff] %v851
                  %v853 = vld [vmem:[%s681 + $0x2a8] sm:$0xff]
                  %854 = vst [vmem:[%s682 + $0x2a8] sm:$0xff] %v853
                  %v855 = vld [vmem:[%s681 + $0x2b0] sm:$0xff]
                  %856 = vst [vmem:[%s682 + $0x2b0] sm:$0xff] %v855
                  %v857 = vld [vmem:[%s681 + $0x2b8] sm:$0xff]
                  %858 = vst [vmem:[%s682 + $0x2b8] sm:$0xff] %v857
                  %v859 = vld [vmem:[%s681 + $0x2c0] sm:$0xff]
                  %860 = vst [vmem:[%s682 + $0x2c0] sm:$0xff] %v859
                  %v861 = vld [vmem:[%s681 + $0x2c8] sm:$0xff]
                  %862 = vst [vmem:[%s682 + $0x2c8] sm:$0xff] %v861
                  %v863 = vld [vmem:[%s681 + $0x2d0] sm:$0xff]
                  %864 = vst [vmem:[%s682 + $0x2d0] sm:$0xff] %v863
                  %v865 = vld [vmem:[%s681 + $0x2d8] sm:$0xff]
                  %866 = vst [vmem:[%s682 + $0x2d8] sm:$0xff] %v865
                  %v867 = vld [vmem:[%s681 + $0x2e0] sm:$0xff]
                  %868 = vst [vmem:[%s682 + $0x2e0] sm:$0xff] %v867
                  %v869 = vld [vmem:[%s681 + $0x2e8] sm:$0xff]
                  %870 = vst [vmem:[%s682 + $0x2e8] sm:$0xff] %v869
                  %v871 = vld [vmem:[%s681 + $0x2f0] sm:$0xff]
                  %872 = vst [vmem:[%s682 + $0x2f0] sm:$0xff] %v871
                  %v873 = vld [vmem:[%s681 + $0x2f8] sm:$0xff]
                  %874 = vst [vmem:[%s682 + $0x2f8] sm:$0xff] %v873
                  %v875 = vld [vmem:[%s681 + $0x300] sm:$0xff]
                  %876 = vst [vmem:[%s682 + $0x300] sm:$0xff] %v875
                  %v877 = vld [vmem:[%s681 + $0x308] sm:$0xff]
                  %878 = vst [vmem:[%s682 + $0x308] sm:$0xff] %v877
                  %v879 = vld [vmem:[%s681 + $0x310] sm:$0xff]
                  %880 = vst [vmem:[%s682 + $0x310] sm:$0xff] %v879
                  %v881 = vld [vmem:[%s681 + $0x318] sm:$0xff]
                  %882 = vst [vmem:[%s682 + $0x318] sm:$0xff] %v881
                  %v883 = vld [vmem:[%s681 + $0x320] sm:$0xff]
                  %884 = vst [vmem:[%s682 + $0x320] sm:$0xff] %v883
                  %v885 = vld [vmem:[%s681 + $0x328] sm:$0xff]
                  %886 = vst [vmem:[%s682 + $0x328] sm:$0xff] %v885
                  %v887 = vld [vmem:[%s681 + $0x330] sm:$0xff]
                  %888 = vst [vmem:[%s682 + $0x330] sm:$0xff] %v887
                  %v889 = vld [vmem:[%s681 + $0x338] sm:$0xff]
                  %890 = vst [vmem:[%s682 + $0x338] sm:$0xff] %v889
                  %v891 = vld [vmem:[%s681 + $0x340] sm:$0xff]
                  %892 = vst [vmem:[%s682 + $0x340] sm:$0xff] %v891
                  %v893 = vld [vmem:[%s681 + $0x348] sm:$0xff]
                  %894 = vst [vmem:[%s682 + $0x348] sm:$0xff] %v893
                  %v895 = vld [vmem:[%s681 + $0x350] sm:$0xff]
                  %896 = vst [vmem:[%s682 + $0x350] sm:$0xff] %v895
                  %v897 = vld [vmem:[%s681 + $0x358] sm:$0xff]
                  %898 = vst [vmem:[%s682 + $0x358] sm:$0xff] %v897
                  %v899 = vld [vmem:[%s681 + $0x360] sm:$0xff]
                  %900 = vst [vmem:[%s682 + $0x360] sm:$0xff] %v899
                  %v901 = vld [vmem:[%s681 + $0x368] sm:$0xff]
                  %902 = vst [vmem:[%s682 + $0x368] sm:$0xff] %v901
                  %v903 = vld [vmem:[%s681 + $0x370] sm:$0xff]
                  %904 = vst [vmem:[%s682 + $0x370] sm:$0xff] %v903
                  %v905 = vld [vmem:[%s681 + $0x378] sm:$0xff]
                  %906 = vst [vmem:[%s682 + $0x378] sm:$0xff] %v905
                  %v907 = vld [vmem:[%s681 + $0x700] sm:$0xff]
                  %908 = vst [vmem:[%s682 + $0x380] sm:$0xff] %v907
                  %v909 = vld [vmem:[%s681 + $0x708] sm:$0xff]
                  %910 = vst [vmem:[%s682 + $0x388] sm:$0xff] %v909
                  %v911 = vld [vmem:[%s681 + $0x710] sm:$0xff]
                  %912 = vst [vmem:[%s682 + $0x390] sm:$0xff] %v911
                  %v913 = vld [vmem:[%s681 + $0x718] sm:$0xff]
                  %914 = vst [vmem:[%s682 + $0x398] sm:$0xff] %v913
                  %v915 = vld [vmem:[%s681 + $0x720] sm:$0xff]
                  %916 = vst [vmem:[%s682 + $0x3a0] sm:$0xff] %v915
                  %v917 = vld [vmem:[%s681 + $0x728] sm:$0xff]
                  %918 = vst [vmem:[%s682 + $0x3a8] sm:$0xff] %v917
                  %v919 = vld [vmem:[%s681 + $0x730] sm:$0xff]
                  %920 = vst [vmem:[%s682 + $0x3b0] sm:$0xff] %v919
                  %v921 = vld [vmem:[%s681 + $0x738] sm:$0xff]
                  %922 = vst [vmem:[%s682 + $0x3b8] sm:$0xff] %v921
                  %v923 = vld [vmem:[%s681 + $0x740] sm:$0xff]
                  %924 = vst [vmem:[%s682 + $0x3c0] sm:$0xff] %v923
                  %v925 = vld [vmem:[%s681 + $0x748] sm:$0xff]
                  %926 = vst [vmem:[%s682 + $0x3c8] sm:$0xff] %v925
                  %v927 = vld [vmem:[%s681 + $0x750] sm:$0xff]
                  %928 = vst [vmem:[%s682 + $0x3d0] sm:$0xff] %v927
                  %v929 = vld [vmem:[%s681 + $0x758] sm:$0xff]
                  %930 = vst [vmem:[%s682 + $0x3d8] sm:$0xff] %v929
                  %v931 = vld [vmem:[%s681 + $0x760] sm:$0xff]
                  %932 = vst [vmem:[%s682 + $0x3e0] sm:$0xff] %v931
                  %v933 = vld [vmem:[%s681 + $0x768] sm:$0xff]
                  %934 = vst [vmem:[%s682 + $0x3e8] sm:$0xff] %v933
                  %v935 = vld [vmem:[%s681 + $0x770] sm:$0xff]
                  %936 = vst [vmem:[%s682 + $0x3f0] sm:$0xff] %v935
                  %v937 = vld [vmem:[%s681 + $0x778] sm:$0xff]
                  %938 = vst [vmem:[%s682 + $0x3f8] sm:$0xff] %v937
                  %v939 = vld [vmem:[%s681 + $0x780] sm:$0xff]
                  %940 = vst [vmem:[%s682 + $0x400] sm:$0xff] %v939
                  %v941 = vld [vmem:[%s681 + $0x788] sm:$0xff]
                  %942 = vst [vmem:[%s682 + $0x408] sm:$0xff] %v941
                  %v943 = vld [vmem:[%s681 + $0x790] sm:$0xff]
                  %944 = vst [vmem:[%s682 + $0x410] sm:$0xff] %v943
                  %v945 = vld [vmem:[%s681 + $0x798] sm:$0xff]
                  %946 = vst [vmem:[%s682 + $0x418] sm:$0xff] %v945
                  %v947 = vld [vmem:[%s681 + $0x7a0] sm:$0xff]
                  %948 = vst [vmem:[%s682 + $0x420] sm:$0xff] %v947
                  %v949 = vld [vmem:[%s681 + $0x7a8] sm:$0xff]
                  %950 = vst [vmem:[%s682 + $0x428] sm:$0xff] %v949
                  %v951 = vld [vmem:[%s681 + $0x7b0] sm:$0xff]
                  %952 = vst [vmem:[%s682 + $0x430] sm:$0xff] %v951
                  %v953 = vld [vmem:[%s681 + $0x7b8] sm:$0xff]
                  %954 = vst [vmem:[%s682 + $0x438] sm:$0xff] %v953
                  %v955 = vld [vmem:[%s681 + $0x7c0] sm:$0xff]
                  %956 = vst [vmem:[%s682 + $0x440] sm:$0xff] %v955
                  %v957 = vld [vmem:[%s681 + $0x7c8] sm:$0xff]
                  %958 = vst [vmem:[%s682 + $0x448] sm:$0xff] %v957
                  %v959 = vld [vmem:[%s681 + $0x7d0] sm:$0xff]
                  %960 = vst [vmem:[%s682 + $0x450] sm:$0xff] %v959
                  %v961 = vld [vmem:[%s681 + $0x7d8] sm:$0xff]
                  %962 = vst [vmem:[%s682 + $0x458] sm:$0xff] %v961
                  %v963 = vld [vmem:[%s681 + $0x7e0] sm:$0xff]
                  %964 = vst [vmem:[%s682 + $0x460] sm:$0xff] %v963
                  %v965 = vld [vmem:[%s681 + $0x7e8] sm:$0xff]
                  %966 = vst [vmem:[%s682 + $0x468] sm:$0xff] %v965
                  %v967 = vld [vmem:[%s681 + $0x7f0] sm:$0xff]
                  %968 = vst [vmem:[%s682 + $0x470] sm:$0xff] %v967
                  %v969 = vld [vmem:[%s681 + $0x7f8] sm:$0xff]
                  %970 = vst [vmem:[%s682 + $0x478] sm:$0xff] %v969
                  %v971 = vld [vmem:[%s681 + $0x800] sm:$0xff]
                  %972 = vst [vmem:[%s682 + $0x480] sm:$0xff] %v971
                  %v973 = vld [vmem:[%s681 + $0x808] sm:$0xff]
                  %974 = vst [vmem:[%s682 + $0x488] sm:$0xff] %v973
                  %v975 = vld [vmem:[%s681 + $0x810] sm:$0xff]
                  %976 = vst [vmem:[%s682 + $0x490] sm:$0xff] %v975
                  %v977 = vld [vmem:[%s681 + $0x818] sm:$0xff]
                  %978 = vst [vmem:[%s682 + $0x498] sm:$0xff] %v977
                  %v979 = vld [vmem:[%s681 + $0x820] sm:$0xff]
                  %980 = vst [vmem:[%s682 + $0x4a0] sm:$0xff] %v979
                  %v981 = vld [vmem:[%s681 + $0x828] sm:$0xff]
                  %982 = vst [vmem:[%s682 + $0x4a8] sm:$0xff] %v981
                  %v983 = vld [vmem:[%s681 + $0x830] sm:$0xff]
                  %984 = vst [vmem:[%s682 + $0x4b0] sm:$0xff] %v983
                  %v985 = vld [vmem:[%s681 + $0x838] sm:$0xff]
                  %986 = vst [vmem:[%s682 + $0x4b8] sm:$0xff] %v985
                  %v987 = vld [vmem:[%s681 + $0x840] sm:$0xff]
                  %988 = vst [vmem:[%s682 + $0x4c0] sm:$0xff] %v987
                  %v989 = vld [vmem:[%s681 + $0x848] sm:$0xff]
                  %990 = vst [vmem:[%s682 + $0x4c8] sm:$0xff] %v989
                  %v991 = vld [vmem:[%s681 + $0x850] sm:$0xff]
                  %992 = vst [vmem:[%s682 + $0x4d0] sm:$0xff] %v991
                  %v993 = vld [vmem:[%s681 + $0x858] sm:$0xff]
                  %994 = vst [vmem:[%s682 + $0x4d8] sm:$0xff] %v993
                  %v995 = vld [vmem:[%s681 + $0x860] sm:$0xff]
                  %996 = vst [vmem:[%s682 + $0x4e0] sm:$0xff] %v995
                  %v997 = vld [vmem:[%s681 + $0x868] sm:$0xff]
                  %998 = vst [vmem:[%s682 + $0x4e8] sm:$0xff] %v997
                  %v999 = vld [vmem:[%s681 + $0x870] sm:$0xff]
                  %1000 = vst [vmem:[%s682 + $0x4f0] sm:$0xff] %v999
                  %v1001 = vld [vmem:[%s681 + $0x878] sm:$0xff]
                  %1002 = vst [vmem:[%s682 + $0x4f8] sm:$0xff] %v1001
                  %v1003 = vld [vmem:[%s681 + $0x880] sm:$0xff]
                  %1004 = vst [vmem:[%s682 + $0x500] sm:$0xff] %v1003
                  %v1005 = vld [vmem:[%s681 + $0x888] sm:$0xff]
                  %1006 = vst [vmem:[%s682 + $0x508] sm:$0xff] %v1005
                  %v1007 = vld [vmem:[%s681 + $0x890] sm:$0xff]
                  %1008 = vst [vmem:[%s682 + $0x510] sm:$0xff] %v1007
                  %v1009 = vld [vmem:[%s681 + $0x898] sm:$0xff]
                  %1010 = vst [vmem:[%s682 + $0x518] sm:$0xff] %v1009
                  %v1011 = vld [vmem:[%s681 + $0x8a0] sm:$0xff]
                  %1012 = vst [vmem:[%s682 + $0x520] sm:$0xff] %v1011
                  %v1013 = vld [vmem:[%s681 + $0x8a8] sm:$0xff]
                  %1014 = vst [vmem:[%s682 + $0x528] sm:$0xff] %v1013
                  %v1015 = vld [vmem:[%s681 + $0x8b0] sm:$0xff]
                  %1016 = vst [vmem:[%s682 + $0x530] sm:$0xff] %v1015
                  %v1017 = vld [vmem:[%s681 + $0x8b8] sm:$0xff]
                  %1018 = vst [vmem:[%s682 + $0x538] sm:$0xff] %v1017
                  %v1019 = vld [vmem:[%s681 + $0x8c0] sm:$0xff]
                  %1020 = vst [vmem:[%s682 + $0x540] sm:$0xff] %v1019
                  %v1021 = vld [vmem:[%s681 + $0x8c8] sm:$0xff]
                  %1022 = vst [vmem:[%s682 + $0x548] sm:$0xff] %v1021
                  %v1023 = vld [vmem:[%s681 + $0x8d0] sm:$0xff]
                  %1024 = vst [vmem:[%s682 + $0x550] sm:$0xff] %v1023
                  %v1025 = vld [vmem:[%s681 + $0x8d8] sm:$0xff]
                  %1026 = vst [vmem:[%s682 + $0x558] sm:$0xff] %v1025
                  %v1027 = vld [vmem:[%s681 + $0x8e0] sm:$0xff]
                  %1028 = vst [vmem:[%s682 + $0x560] sm:$0xff] %v1027
                  %v1029 = vld [vmem:[%s681 + $0x8e8] sm:$0xff]
                  %1030 = vst [vmem:[%s682 + $0x568] sm:$0xff] %v1029
                  %v1031 = vld [vmem:[%s681 + $0x8f0] sm:$0xff]
                  %1032 = vst [vmem:[%s682 + $0x570] sm:$0xff] %v1031
                  %v1033 = vld [vmem:[%s681 + $0x8f8] sm:$0xff]
                  %1034 = vst [vmem:[%s682 + $0x578] sm:$0xff] %v1033
                  %v1035 = vld [vmem:[%s681 + $0x900] sm:$0xff]
                  %1036 = vst [vmem:[%s682 + $0x580] sm:$0xff] %v1035
                  %v1037 = vld [vmem:[%s681 + $0x908] sm:$0xff]
                  %1038 = vst [vmem:[%s682 + $0x588] sm:$0xff] %v1037
                  %v1039 = vld [vmem:[%s681 + $0x910] sm:$0xff]
                  %1040 = vst [vmem:[%s682 + $0x590] sm:$0xff] %v1039
                  %v1041 = vld [vmem:[%s681 + $0x918] sm:$0xff]
                  %1042 = vst [vmem:[%s682 + $0x598] sm:$0xff] %v1041
                  %v1043 = vld [vmem:[%s681 + $0x920] sm:$0xff]
                  %1044 = vst [vmem:[%s682 + $0x5a0] sm:$0xff] %v1043
                  %v1045 = vld [vmem:[%s681 + $0x928] sm:$0xff]
                  %1046 = vst [vmem:[%s682 + $0x5a8] sm:$0xff] %v1045
                  %v1047 = vld [vmem:[%s681 + $0x930] sm:$0xff]
                  %1048 = vst [vmem:[%s682 + $0x5b0] sm:$0xff] %v1047
                  %v1049 = vld [vmem:[%s681 + $0x938] sm:$0xff]
                  %1050 = vst [vmem:[%s682 + $0x5b8] sm:$0xff] %v1049
                  %v1051 = vld [vmem:[%s681 + $0x940] sm:$0xff]
                  %1052 = vst [vmem:[%s682 + $0x5c0] sm:$0xff] %v1051
                  %v1053 = vld [vmem:[%s681 + $0x948] sm:$0xff]
                  %1054 = vst [vmem:[%s682 + $0x5c8] sm:$0xff] %v1053
                  %v1055 = vld [vmem:[%s681 + $0x950] sm:$0xff]
                  %1056 = vst [vmem:[%s682 + $0x5d0] sm:$0xff] %v1055
                  %v1057 = vld [vmem:[%s681 + $0x958] sm:$0xff]
                  %1058 = vst [vmem:[%s682 + $0x5d8] sm:$0xff] %v1057
                  %v1059 = vld [vmem:[%s681 + $0x960] sm:$0xff]
                  %1060 = vst [vmem:[%s682 + $0x5e0] sm:$0xff] %v1059
                  %v1061 = vld [vmem:[%s681 + $0x968] sm:$0xff]
                  %1062 = vst [vmem:[%s682 + $0x5e8] sm:$0xff] %v1061
                  %v1063 = vld [vmem:[%s681 + $0x970] sm:$0xff]
                  %1064 = vst [vmem:[%s682 + $0x5f0] sm:$0xff] %v1063
                  %v1065 = vld [vmem:[%s681 + $0x978] sm:$0xff]
                  %1066 = vst [vmem:[%s682 + $0x5f8] sm:$0xff] %v1065
                  %v1067 = vld [vmem:[%s681 + $0x980] sm:$0xff]
                  %1068 = vst [vmem:[%s682 + $0x600] sm:$0xff] %v1067
                  %v1069 = vld [vmem:[%s681 + $0x988] sm:$0xff]
                  %1070 = vst [vmem:[%s682 + $0x608] sm:$0xff] %v1069
                  %v1071 = vld [vmem:[%s681 + $0x990] sm:$0xff]
                  %1072 = vst [vmem:[%s682 + $0x610] sm:$0xff] %v1071
                  %v1073 = vld [vmem:[%s681 + $0x998] sm:$0xff]
                  %1074 = vst [vmem:[%s682 + $0x618] sm:$0xff] %v1073
                  %v1075 = vld [vmem:[%s681 + $0x9a0] sm:$0xff]
                  %1076 = vst [vmem:[%s682 + $0x620] sm:$0xff] %v1075
                  %v1077 = vld [vmem:[%s681 + $0x9a8] sm:$0xff]
                  %1078 = vst [vmem:[%s682 + $0x628] sm:$0xff] %v1077
                  %v1079 = vld [vmem:[%s681 + $0x9b0] sm:$0xff]
                  %1080 = vst [vmem:[%s682 + $0x630] sm:$0xff] %v1079
                  %v1081 = vld [vmem:[%s681 + $0x9b8] sm:$0xff]
                  %1082 = vst [vmem:[%s682 + $0x638] sm:$0xff] %v1081
                  %v1083 = vld [vmem:[%s681 + $0x9c0] sm:$0xff]
                  %1084 = vst [vmem:[%s682 + $0x640] sm:$0xff] %v1083
                  %v1085 = vld [vmem:[%s681 + $0x9c8] sm:$0xff]
                  %1086 = vst [vmem:[%s682 + $0x648] sm:$0xff] %v1085
                  %v1087 = vld [vmem:[%s681 + $0x9d0] sm:$0xff]
                  %1088 = vst [vmem:[%s682 + $0x650] sm:$0xff] %v1087
                  %v1089 = vld [vmem:[%s681 + $0x9d8] sm:$0xff]
                  %1090 = vst [vmem:[%s682 + $0x658] sm:$0xff] %v1089
                  %v1091 = vld [vmem:[%s681 + $0x9e0] sm:$0xff]
                  %1092 = vst [vmem:[%s682 + $0x660] sm:$0xff] %v1091
                  %v1093 = vld [vmem:[%s681 + $0x9e8] sm:$0xff]
                  %1094 = vst [vmem:[%s682 + $0x668] sm:$0xff] %v1093
                  %v1095 = vld [vmem:[%s681 + $0x9f0] sm:$0xff]
                  %1096 = vst [vmem:[%s682 + $0x670] sm:$0xff] %v1095
                  %v1097 = vld [vmem:[%s681 + $0x9f8] sm:$0xff]
                  %1098 = vst [vmem:[%s682 + $0x678] sm:$0xff] %v1097
                  %v1099 = vld [vmem:[%s681 + $0xa00] sm:$0xff]
                  %1100 = vst [vmem:[%s682 + $0x680] sm:$0xff] %v1099
                  %v1101 = vld [vmem:[%s681 + $0xa08] sm:$0xff]
                  %1102 = vst [vmem:[%s682 + $0x688] sm:$0xff] %v1101
                  %v1103 = vld [vmem:[%s681 + $0xa10] sm:$0xff]
                  %1104 = vst [vmem:[%s682 + $0x690] sm:$0xff] %v1103
                  %v1105 = vld [vmem:[%s681 + $0xa18] sm:$0xff]
                  %1106 = vst [vmem:[%s682 + $0x698] sm:$0xff] %v1105
                  %v1107 = vld [vmem:[%s681 + $0xa20] sm:$0xff]
                  %1108 = vst [vmem:[%s682 + $0x6a0] sm:$0xff] %v1107
                  %v1109 = vld [vmem:[%s681 + $0xa28] sm:$0xff]
                  %1110 = vst [vmem:[%s682 + $0x6a8] sm:$0xff] %v1109
                  %v1111 = vld [vmem:[%s681 + $0xa30] sm:$0xff]
                  %1112 = vst [vmem:[%s682 + $0x6b0] sm:$0xff] %v1111
                  %v1113 = vld [vmem:[%s681 + $0xa38] sm:$0xff]
                  %1114 = vst [vmem:[%s682 + $0x6b8] sm:$0xff] %v1113
                  %v1115 = vld [vmem:[%s681 + $0xa40] sm:$0xff]
                  %1116 = vst [vmem:[%s682 + $0x6c0] sm:$0xff] %v1115
                  %v1117 = vld [vmem:[%s681 + $0xa48] sm:$0xff]
                  %1118 = vst [vmem:[%s682 + $0x6c8] sm:$0xff] %v1117
                  %v1119 = vld [vmem:[%s681 + $0xa50] sm:$0xff]
                  %1120 = vst [vmem:[%s682 + $0x6d0] sm:$0xff] %v1119
                  %v1121 = vld [vmem:[%s681 + $0xa58] sm:$0xff]
                  %1122 = vst [vmem:[%s682 + $0x6d8] sm:$0xff] %v1121
                  %v1123 = vld [vmem:[%s681 + $0xa60] sm:$0xff]
                  %1124 = vst [vmem:[%s682 + $0x6e0] sm:$0xff] %v1123
                  %v1125 = vld [vmem:[%s681 + $0xa68] sm:$0xff]
                  %1126 = vst [vmem:[%s682 + $0x6e8] sm:$0xff] %v1125
                  %v1127 = vld [vmem:[%s681 + $0xa70] sm:$0xff]
                  %1128 = vst [vmem:[%s682 + $0x6f0] sm:$0xff] %v1127
                  %v1129 = vld [vmem:[%s681 + $0xa78] sm:$0xff]
                  %1130 = vst [vmem:[%s682 + $0x6f8] sm:$0xff] %v1129
                $region60: #{tpu_custom_call.1} parent=54 // loop_footer
                  %s680 = sadd.s32 1, %s676
                $region61: #{tpu_custom_call.1} parent=54 // loop_footer_branch
                  %675 = sbr.rel target = $region57
                $region62: #{tpu_custom_call.1} parent=54 // loop_exit
                  _
              $region55: #{tpu_custom_call.1} parent=39 // pred_fallthru
                _
              // Predicated region
              $region63: #{tpu_custom_call.1} parent=39 // pred_check
                _
              $region64: #{tpu_custom_call.1} parent=39 // pred_check_branch
                %1132 = sbr.rel target = $region66
              $region65: #{tpu_custom_call.1} parent=39 // pred_region
                _
              $region66: #{tpu_custom_call.1} parent=39 // pred_fallthru
                _
            $region40: #{tpu_custom_call.1} parent=35 // pred_fallthru
              _
            // Predicated region
            $region41: #{tpu_custom_call.1} parent=35 // pred_check
              _
            $region42: #{tpu_custom_call.1} parent=35 // pred_check_branch
              %214 = sbr.rel target = $region44
            $region43: #{tpu_custom_call.1} parent=35 // pred_region
              %s216 = ssub.s32 256, 1
              loop: start=0, step=1, limit=1
              $region45: #{tpu_custom_call.1} parent=43 // loop_pre_header
                _
              $region46: #{tpu_custom_call.1} parent=43 // loop_header
                %s218 = sphi 0, %s222
                %p219 = scmp.ge.s32.totalorder %s218, 1
                %s223 = sphi %s208, %s208
                %s224 = sphi %s201, %s201
              $region47: #{tpu_custom_call.1} parent=43 // loop_header_branch
                %221 = sbr.rel (%p219) target = $region51
              $region48: #{tpu_custom_call.1} parent=43 // loop_body
                %v225 = vld [vmem:[%s223] sm:%s216]
                %226 = vst [vmem:[%s224] sm:%s216] %v225
                %v227 = vld [vmem:[%s223 + $0x8] sm:%s216]
                %228 = vst [vmem:[%s224 + $0x8] sm:%s216] %v227
                %v229 = vld [vmem:[%s223 + $0x10] sm:%s216]
                %230 = vst [vmem:[%s224 + $0x10] sm:%s216] %v229
                %v231 = vld [vmem:[%s223 + $0x18] sm:%s216]
                %232 = vst [vmem:[%s224 + $0x18] sm:%s216] %v231
                %v233 = vld [vmem:[%s223 + $0x20] sm:%s216]
                %234 = vst [vmem:[%s224 + $0x20] sm:%s216] %v233
                %v235 = vld [vmem:[%s223 + $0x28] sm:%s216]
                %236 = vst [vmem:[%s224 + $0x28] sm:%s216] %v235
                %v237 = vld [vmem:[%s223 + $0x30] sm:%s216]
                %238 = vst [vmem:[%s224 + $0x30] sm:%s216] %v237
                %v239 = vld [vmem:[%s223 + $0x38] sm:%s216]
                %240 = vst [vmem:[%s224 + $0x38] sm:%s216] %v239
                %v241 = vld [vmem:[%s223 + $0x40] sm:%s216]
                %242 = vst [vmem:[%s224 + $0x40] sm:%s216] %v241
                %v243 = vld [vmem:[%s223 + $0x48] sm:%s216]
                %244 = vst [vmem:[%s224 + $0x48] sm:%s216] %v243
                %v245 = vld [vmem:[%s223 + $0x50] sm:%s216]
                %246 = vst [vmem:[%s224 + $0x50] sm:%s216] %v245
                %v247 = vld [vmem:[%s223 + $0x58] sm:%s216]
                %248 = vst [vmem:[%s224 + $0x58] sm:%s216] %v247
                %v249 = vld [vmem:[%s223 + $0x60] sm:%s216]
                %250 = vst [vmem:[%s224 + $0x60] sm:%s216] %v249
                %v251 = vld [vmem:[%s223 + $0x68] sm:%s216]
                %252 = vst [vmem:[%s224 + $0x68] sm:%s216] %v251
                %v253 = vld [vmem:[%s223 + $0x70] sm:%s216]
                %254 = vst [vmem:[%s224 + $0x70] sm:%s216] %v253
                %v255 = vld [vmem:[%s223 + $0x78] sm:%s216]
                %256 = vst [vmem:[%s224 + $0x78] sm:%s216] %v255
                %v257 = vld [vmem:[%s223 + $0x80] sm:%s216]
                %258 = vst [vmem:[%s224 + $0x80] sm:%s216] %v257
                %v259 = vld [vmem:[%s223 + $0x88] sm:%s216]
                %260 = vst [vmem:[%s224 + $0x88] sm:%s216] %v259
                %v261 = vld [vmem:[%s223 + $0x90] sm:%s216]
                %262 = vst [vmem:[%s224 + $0x90] sm:%s216] %v261
                %v263 = vld [vmem:[%s223 + $0x98] sm:%s216]
                %264 = vst [vmem:[%s224 + $0x98] sm:%s216] %v263
                %v265 = vld [vmem:[%s223 + $0xa0] sm:%s216]
                %266 = vst [vmem:[%s224 + $0xa0] sm:%s216] %v265
                %v267 = vld [vmem:[%s223 + $0xa8] sm:%s216]
                %268 = vst [vmem:[%s224 + $0xa8] sm:%s216] %v267
                %v269 = vld [vmem:[%s223 + $0xb0] sm:%s216]
                %270 = vst [vmem:[%s224 + $0xb0] sm:%s216] %v269
                %v271 = vld [vmem:[%s223 + $0xb8] sm:%s216]
                %272 = vst [vmem:[%s224 + $0xb8] sm:%s216] %v271
                %v273 = vld [vmem:[%s223 + $0xc0] sm:%s216]
                %274 = vst [vmem:[%s224 + $0xc0] sm:%s216] %v273
                %v275 = vld [vmem:[%s223 + $0xc8] sm:%s216]
                %276 = vst [vmem:[%s224 + $0xc8] sm:%s216] %v275
                %v277 = vld [vmem:[%s223 + $0xd0] sm:%s216]
                %278 = vst [vmem:[%s224 + $0xd0] sm:%s216] %v277
                %v279 = vld [vmem:[%s223 + $0xd8] sm:%s216]
                %280 = vst [vmem:[%s224 + $0xd8] sm:%s216] %v279
                %v281 = vld [vmem:[%s223 + $0xe0] sm:%s216]
                %282 = vst [vmem:[%s224 + $0xe0] sm:%s216] %v281
                %v283 = vld [vmem:[%s223 + $0xe8] sm:%s216]
                %284 = vst [vmem:[%s224 + $0xe8] sm:%s216] %v283
                %v285 = vld [vmem:[%s223 + $0xf0] sm:%s216]
                %286 = vst [vmem:[%s224 + $0xf0] sm:%s216] %v285
                %v287 = vld [vmem:[%s223 + $0xf8] sm:%s216]
                %288 = vst [vmem:[%s224 + $0xf8] sm:%s216] %v287
                %v289 = vld [vmem:[%s223 + $0x100] sm:%s216]
                %290 = vst [vmem:[%s224 + $0x100] sm:%s216] %v289
                %v291 = vld [vmem:[%s223 + $0x108] sm:%s216]
                %292 = vst [vmem:[%s224 + $0x108] sm:%s216] %v291
                %v293 = vld [vmem:[%s223 + $0x110] sm:%s216]
                %294 = vst [vmem:[%s224 + $0x110] sm:%s216] %v293
                %v295 = vld [vmem:[%s223 + $0x118] sm:%s216]
                %296 = vst [vmem:[%s224 + $0x118] sm:%s216] %v295
                %v297 = vld [vmem:[%s223 + $0x120] sm:%s216]
                %298 = vst [vmem:[%s224 + $0x120] sm:%s216] %v297
                %v299 = vld [vmem:[%s223 + $0x128] sm:%s216]
                %300 = vst [vmem:[%s224 + $0x128] sm:%s216] %v299
                %v301 = vld [vmem:[%s223 + $0x130] sm:%s216]
                %302 = vst [vmem:[%s224 + $0x130] sm:%s216] %v301
                %v303 = vld [vmem:[%s223 + $0x138] sm:%s216]
                %304 = vst [vmem:[%s224 + $0x138] sm:%s216] %v303
                %v305 = vld [vmem:[%s223 + $0x140] sm:%s216]
                %306 = vst [vmem:[%s224 + $0x140] sm:%s216] %v305
                %v307 = vld [vmem:[%s223 + $0x148] sm:%s216]
                %308 = vst [vmem:[%s224 + $0x148] sm:%s216] %v307
                %v309 = vld [vmem:[%s223 + $0x150] sm:%s216]
                %310 = vst [vmem:[%s224 + $0x150] sm:%s216] %v309
                %v311 = vld [vmem:[%s223 + $0x158] sm:%s216]
                %312 = vst [vmem:[%s224 + $0x158] sm:%s216] %v311
                %v313 = vld [vmem:[%s223 + $0x160] sm:%s216]
                %314 = vst [vmem:[%s224 + $0x160] sm:%s216] %v313
                %v315 = vld [vmem:[%s223 + $0x168] sm:%s216]
                %316 = vst [vmem:[%s224 + $0x168] sm:%s216] %v315
                %v317 = vld [vmem:[%s223 + $0x170] sm:%s216]
                %318 = vst [vmem:[%s224 + $0x170] sm:%s216] %v317
                %v319 = vld [vmem:[%s223 + $0x178] sm:%s216]
                %320 = vst [vmem:[%s224 + $0x178] sm:%s216] %v319
                %v321 = vld [vmem:[%s223 + $0x180] sm:%s216]
                %322 = vst [vmem:[%s224 + $0x180] sm:%s216] %v321
                %v323 = vld [vmem:[%s223 + $0x188] sm:%s216]
                %324 = vst [vmem:[%s224 + $0x188] sm:%s216] %v323
                %v325 = vld [vmem:[%s223 + $0x190] sm:%s216]
                %326 = vst [vmem:[%s224 + $0x190] sm:%s216] %v325
                %v327 = vld [vmem:[%s223 + $0x198] sm:%s216]
                %328 = vst [vmem:[%s224 + $0x198] sm:%s216] %v327
                %v329 = vld [vmem:[%s223 + $0x1a0] sm:%s216]
                %330 = vst [vmem:[%s224 + $0x1a0] sm:%s216] %v329
                %v331 = vld [vmem:[%s223 + $0x1a8] sm:%s216]
                %332 = vst [vmem:[%s224 + $0x1a8] sm:%s216] %v331
                %v333 = vld [vmem:[%s223 + $0x1b0] sm:%s216]
                %334 = vst [vmem:[%s224 + $0x1b0] sm:%s216] %v333
                %v335 = vld [vmem:[%s223 + $0x1b8] sm:%s216]
                %336 = vst [vmem:[%s224 + $0x1b8] sm:%s216] %v335
                %v337 = vld [vmem:[%s223 + $0x1c0] sm:%s216]
                %338 = vst [vmem:[%s224 + $0x1c0] sm:%s216] %v337
                %v339 = vld [vmem:[%s223 + $0x1c8] sm:%s216]
                %340 = vst [vmem:[%s224 + $0x1c8] sm:%s216] %v339
                %v341 = vld [vmem:[%s223 + $0x1d0] sm:%s216]
                %342 = vst [vmem:[%s224 + $0x1d0] sm:%s216] %v341
                %v343 = vld [vmem:[%s223 + $0x1d8] sm:%s216]
                %344 = vst [vmem:[%s224 + $0x1d8] sm:%s216] %v343
                %v345 = vld [vmem:[%s223 + $0x1e0] sm:%s216]
                %346 = vst [vmem:[%s224 + $0x1e0] sm:%s216] %v345
                %v347 = vld [vmem:[%s223 + $0x1e8] sm:%s216]
                %348 = vst [vmem:[%s224 + $0x1e8] sm:%s216] %v347
                %v349 = vld [vmem:[%s223 + $0x1f0] sm:%s216]
                %350 = vst [vmem:[%s224 + $0x1f0] sm:%s216] %v349
                %v351 = vld [vmem:[%s223 + $0x1f8] sm:%s216]
                %352 = vst [vmem:[%s224 + $0x1f8] sm:%s216] %v351
                %v353 = vld [vmem:[%s223 + $0x200] sm:%s216]
                %354 = vst [vmem:[%s224 + $0x200] sm:%s216] %v353
                %v355 = vld [vmem:[%s223 + $0x208] sm:%s216]
                %356 = vst [vmem:[%s224 + $0x208] sm:%s216] %v355
                %v357 = vld [vmem:[%s223 + $0x210] sm:%s216]
                %358 = vst [vmem:[%s224 + $0x210] sm:%s216] %v357
                %v359 = vld [vmem:[%s223 + $0x218] sm:%s216]
                %360 = vst [vmem:[%s224 + $0x218] sm:%s216] %v359
                %v361 = vld [vmem:[%s223 + $0x220] sm:%s216]
                %362 = vst [vmem:[%s224 + $0x220] sm:%s216] %v361
                %v363 = vld [vmem:[%s223 + $0x228] sm:%s216]
                %364 = vst [vmem:[%s224 + $0x228] sm:%s216] %v363
                %v365 = vld [vmem:[%s223 + $0x230] sm:%s216]
                %366 = vst [vmem:[%s224 + $0x230] sm:%s216] %v365
                %v367 = vld [vmem:[%s223 + $0x238] sm:%s216]
                %368 = vst [vmem:[%s224 + $0x238] sm:%s216] %v367
                %v369 = vld [vmem:[%s223 + $0x240] sm:%s216]
                %370 = vst [vmem:[%s224 + $0x240] sm:%s216] %v369
                %v371 = vld [vmem:[%s223 + $0x248] sm:%s216]
                %372 = vst [vmem:[%s224 + $0x248] sm:%s216] %v371
                %v373 = vld [vmem:[%s223 + $0x250] sm:%s216]
                %374 = vst [vmem:[%s224 + $0x250] sm:%s216] %v373
                %v375 = vld [vmem:[%s223 + $0x258] sm:%s216]
                %376 = vst [vmem:[%s224 + $0x258] sm:%s216] %v375
                %v377 = vld [vmem:[%s223 + $0x260] sm:%s216]
                %378 = vst [vmem:[%s224 + $0x260] sm:%s216] %v377
                %v379 = vld [vmem:[%s223 + $0x268] sm:%s216]
                %380 = vst [vmem:[%s224 + $0x268] sm:%s216] %v379
                %v381 = vld [vmem:[%s223 + $0x270] sm:%s216]
                %382 = vst [vmem:[%s224 + $0x270] sm:%s216] %v381
                %v383 = vld [vmem:[%s223 + $0x278] sm:%s216]
                %384 = vst [vmem:[%s224 + $0x278] sm:%s216] %v383
                %v385 = vld [vmem:[%s223 + $0x280] sm:%s216]
                %386 = vst [vmem:[%s224 + $0x280] sm:%s216] %v385
                %v387 = vld [vmem:[%s223 + $0x288] sm:%s216]
                %388 = vst [vmem:[%s224 + $0x288] sm:%s216] %v387
                %v389 = vld [vmem:[%s223 + $0x290] sm:%s216]
                %390 = vst [vmem:[%s224 + $0x290] sm:%s216] %v389
                %v391 = vld [vmem:[%s223 + $0x298] sm:%s216]
                %392 = vst [vmem:[%s224 + $0x298] sm:%s216] %v391
                %v393 = vld [vmem:[%s223 + $0x2a0] sm:%s216]
                %394 = vst [vmem:[%s224 + $0x2a0] sm:%s216] %v393
                %v395 = vld [vmem:[%s223 + $0x2a8] sm:%s216]
                %396 = vst [vmem:[%s224 + $0x2a8] sm:%s216] %v395
                %v397 = vld [vmem:[%s223 + $0x2b0] sm:%s216]
                %398 = vst [vmem:[%s224 + $0x2b0] sm:%s216] %v397
                %v399 = vld [vmem:[%s223 + $0x2b8] sm:%s216]
                %400 = vst [vmem:[%s224 + $0x2b8] sm:%s216] %v399
                %v401 = vld [vmem:[%s223 + $0x2c0] sm:%s216]
                %402 = vst [vmem:[%s224 + $0x2c0] sm:%s216] %v401
                %v403 = vld [vmem:[%s223 + $0x2c8] sm:%s216]
                %404 = vst [vmem:[%s224 + $0x2c8] sm:%s216] %v403
                %v405 = vld [vmem:[%s223 + $0x2d0] sm:%s216]
                %406 = vst [vmem:[%s224 + $0x2d0] sm:%s216] %v405
                %v407 = vld [vmem:[%s223 + $0x2d8] sm:%s216]
                %408 = vst [vmem:[%s224 + $0x2d8] sm:%s216] %v407
                %v409 = vld [vmem:[%s223 + $0x2e0] sm:%s216]
                %410 = vst [vmem:[%s224 + $0x2e0] sm:%s216] %v409
                %v411 = vld [vmem:[%s223 + $0x2e8] sm:%s216]
                %412 = vst [vmem:[%s224 + $0x2e8] sm:%s216] %v411
                %v413 = vld [vmem:[%s223 + $0x2f0] sm:%s216]
                %414 = vst [vmem:[%s224 + $0x2f0] sm:%s216] %v413
                %v415 = vld [vmem:[%s223 + $0x2f8] sm:%s216]
                %416 = vst [vmem:[%s224 + $0x2f8] sm:%s216] %v415
                %v417 = vld [vmem:[%s223 + $0x300] sm:%s216]
                %418 = vst [vmem:[%s224 + $0x300] sm:%s216] %v417
                %v419 = vld [vmem:[%s223 + $0x308] sm:%s216]
                %420 = vst [vmem:[%s224 + $0x308] sm:%s216] %v419
                %v421 = vld [vmem:[%s223 + $0x310] sm:%s216]
                %422 = vst [vmem:[%s224 + $0x310] sm:%s216] %v421
                %v423 = vld [vmem:[%s223 + $0x318] sm:%s216]
                %424 = vst [vmem:[%s224 + $0x318] sm:%s216] %v423
                %v425 = vld [vmem:[%s223 + $0x320] sm:%s216]
                %426 = vst [vmem:[%s224 + $0x320] sm:%s216] %v425
                %v427 = vld [vmem:[%s223 + $0x328] sm:%s216]
                %428 = vst [vmem:[%s224 + $0x328] sm:%s216] %v427
                %v429 = vld [vmem:[%s223 + $0x330] sm:%s216]
                %430 = vst [vmem:[%s224 + $0x330] sm:%s216] %v429
                %v431 = vld [vmem:[%s223 + $0x338] sm:%s216]
                %432 = vst [vmem:[%s224 + $0x338] sm:%s216] %v431
                %v433 = vld [vmem:[%s223 + $0x340] sm:%s216]
                %434 = vst [vmem:[%s224 + $0x340] sm:%s216] %v433
                %v435 = vld [vmem:[%s223 + $0x348] sm:%s216]
                %436 = vst [vmem:[%s224 + $0x348] sm:%s216] %v435
                %v437 = vld [vmem:[%s223 + $0x350] sm:%s216]
                %438 = vst [vmem:[%s224 + $0x350] sm:%s216] %v437
                %v439 = vld [vmem:[%s223 + $0x358] sm:%s216]
                %440 = vst [vmem:[%s224 + $0x358] sm:%s216] %v439
                %v441 = vld [vmem:[%s223 + $0x360] sm:%s216]
                %442 = vst [vmem:[%s224 + $0x360] sm:%s216] %v441
                %v443 = vld [vmem:[%s223 + $0x368] sm:%s216]
                %444 = vst [vmem:[%s224 + $0x368] sm:%s216] %v443
                %v445 = vld [vmem:[%s223 + $0x370] sm:%s216]
                %446 = vst [vmem:[%s224 + $0x370] sm:%s216] %v445
                %v447 = vld [vmem:[%s223 + $0x378] sm:%s216]
                %448 = vst [vmem:[%s224 + $0x378] sm:%s216] %v447
                %v449 = vld [vmem:[%s223 + $0x700] sm:%s216]
                %450 = vst [vmem:[%s224 + $0x380] sm:%s216] %v449
                %v451 = vld [vmem:[%s223 + $0x708] sm:%s216]
                %452 = vst [vmem:[%s224 + $0x388] sm:%s216] %v451
                %v453 = vld [vmem:[%s223 + $0x710] sm:%s216]
                %454 = vst [vmem:[%s224 + $0x390] sm:%s216] %v453
                %v455 = vld [vmem:[%s223 + $0x718] sm:%s216]
                %456 = vst [vmem:[%s224 + $0x398] sm:%s216] %v455
                %v457 = vld [vmem:[%s223 + $0x720] sm:%s216]
                %458 = vst [vmem:[%s224 + $0x3a0] sm:%s216] %v457
                %v459 = vld [vmem:[%s223 + $0x728] sm:%s216]
                %460 = vst [vmem:[%s224 + $0x3a8] sm:%s216] %v459
                %v461 = vld [vmem:[%s223 + $0x730] sm:%s216]
                %462 = vst [vmem:[%s224 + $0x3b0] sm:%s216] %v461
                %v463 = vld [vmem:[%s223 + $0x738] sm:%s216]
                %464 = vst [vmem:[%s224 + $0x3b8] sm:%s216] %v463
                %v465 = vld [vmem:[%s223 + $0x740] sm:%s216]
                %466 = vst [vmem:[%s224 + $0x3c0] sm:%s216] %v465
                %v467 = vld [vmem:[%s223 + $0x748] sm:%s216]
                %468 = vst [vmem:[%s224 + $0x3c8] sm:%s216] %v467
                %v469 = vld [vmem:[%s223 + $0x750] sm:%s216]
                %470 = vst [vmem:[%s224 + $0x3d0] sm:%s216] %v469
                %v471 = vld [vmem:[%s223 + $0x758] sm:%s216]
                %472 = vst [vmem:[%s224 + $0x3d8] sm:%s216] %v471
                %v473 = vld [vmem:[%s223 + $0x760] sm:%s216]
                %474 = vst [vmem:[%s224 + $0x3e0] sm:%s216] %v473
                %v475 = vld [vmem:[%s223 + $0x768] sm:%s216]
                %476 = vst [vmem:[%s224 + $0x3e8] sm:%s216] %v475
                %v477 = vld [vmem:[%s223 + $0x770] sm:%s216]
                %478 = vst [vmem:[%s224 + $0x3f0] sm:%s216] %v477
                %v479 = vld [vmem:[%s223 + $0x778] sm:%s216]
                %480 = vst [vmem:[%s224 + $0x3f8] sm:%s216] %v479
                %v481 = vld [vmem:[%s223 + $0x780] sm:%s216]
                %482 = vst [vmem:[%s224 + $0x400] sm:%s216] %v481
                %v483 = vld [vmem:[%s223 + $0x788] sm:%s216]
                %484 = vst [vmem:[%s224 + $0x408] sm:%s216] %v483
                %v485 = vld [vmem:[%s223 + $0x790] sm:%s216]
                %486 = vst [vmem:[%s224 + $0x410] sm:%s216] %v485
                %v487 = vld [vmem:[%s223 + $0x798] sm:%s216]
                %488 = vst [vmem:[%s224 + $0x418] sm:%s216] %v487
                %v489 = vld [vmem:[%s223 + $0x7a0] sm:%s216]
                %490 = vst [vmem:[%s224 + $0x420] sm:%s216] %v489
                %v491 = vld [vmem:[%s223 + $0x7a8] sm:%s216]
                %492 = vst [vmem:[%s224 + $0x428] sm:%s216] %v491
                %v493 = vld [vmem:[%s223 + $0x7b0] sm:%s216]
                %494 = vst [vmem:[%s224 + $0x430] sm:%s216] %v493
                %v495 = vld [vmem:[%s223 + $0x7b8] sm:%s216]
                %496 = vst [vmem:[%s224 + $0x438] sm:%s216] %v495
                %v497 = vld [vmem:[%s223 + $0x7c0] sm:%s216]
                %498 = vst [vmem:[%s224 + $0x440] sm:%s216] %v497
                %v499 = vld [vmem:[%s223 + $0x7c8] sm:%s216]
                %500 = vst [vmem:[%s224 + $0x448] sm:%s216] %v499
                %v501 = vld [vmem:[%s223 + $0x7d0] sm:%s216]
                %502 = vst [vmem:[%s224 + $0x450] sm:%s216] %v501
                %v503 = vld [vmem:[%s223 + $0x7d8] sm:%s216]
                %504 = vst [vmem:[%s224 + $0x458] sm:%s216] %v503
                %v505 = vld [vmem:[%s223 + $0x7e0] sm:%s216]
                %506 = vst [vmem:[%s224 + $0x460] sm:%s216] %v505
                %v507 = vld [vmem:[%s223 + $0x7e8] sm:%s216]
                %508 = vst [vmem:[%s224 + $0x468] sm:%s216] %v507
                %v509 = vld [vmem:[%s223 + $0x7f0] sm:%s216]
                %510 = vst [vmem:[%s224 + $0x470] sm:%s216] %v509
                %v511 = vld [vmem:[%s223 + $0x7f8] sm:%s216]
                %512 = vst [vmem:[%s224 + $0x478] sm:%s216] %v511
                %v513 = vld [vmem:[%s223 + $0x800] sm:%s216]
                %514 = vst [vmem:[%s224 + $0x480] sm:%s216] %v513
                %v515 = vld [vmem:[%s223 + $0x808] sm:%s216]
                %516 = vst [vmem:[%s224 + $0x488] sm:%s216] %v515
                %v517 = vld [vmem:[%s223 + $0x810] sm:%s216]
                %518 = vst [vmem:[%s224 + $0x490] sm:%s216] %v517
                %v519 = vld [vmem:[%s223 + $0x818] sm:%s216]
                %520 = vst [vmem:[%s224 + $0x498] sm:%s216] %v519
                %v521 = vld [vmem:[%s223 + $0x820] sm:%s216]
                %522 = vst [vmem:[%s224 + $0x4a0] sm:%s216] %v521
                %v523 = vld [vmem:[%s223 + $0x828] sm:%s216]
                %524 = vst [vmem:[%s224 + $0x4a8] sm:%s216] %v523
                %v525 = vld [vmem:[%s223 + $0x830] sm:%s216]
                %526 = vst [vmem:[%s224 + $0x4b0] sm:%s216] %v525
                %v527 = vld [vmem:[%s223 + $0x838] sm:%s216]
                %528 = vst [vmem:[%s224 + $0x4b8] sm:%s216] %v527
                %v529 = vld [vmem:[%s223 + $0x840] sm:%s216]
                %530 = vst [vmem:[%s224 + $0x4c0] sm:%s216] %v529
                %v531 = vld [vmem:[%s223 + $0x848] sm:%s216]
                %532 = vst [vmem:[%s224 + $0x4c8] sm:%s216] %v531
                %v533 = vld [vmem:[%s223 + $0x850] sm:%s216]
                %534 = vst [vmem:[%s224 + $0x4d0] sm:%s216] %v533
                %v535 = vld [vmem:[%s223 + $0x858] sm:%s216]
                %536 = vst [vmem:[%s224 + $0x4d8] sm:%s216] %v535
                %v537 = vld [vmem:[%s223 + $0x860] sm:%s216]
                %538 = vst [vmem:[%s224 + $0x4e0] sm:%s216] %v537
                %v539 = vld [vmem:[%s223 + $0x868] sm:%s216]
                %540 = vst [vmem:[%s224 + $0x4e8] sm:%s216] %v539
                %v541 = vld [vmem:[%s223 + $0x870] sm:%s216]
                %542 = vst [vmem:[%s224 + $0x4f0] sm:%s216] %v541
                %v543 = vld [vmem:[%s223 + $0x878] sm:%s216]
                %544 = vst [vmem:[%s224 + $0x4f8] sm:%s216] %v543
                %v545 = vld [vmem:[%s223 + $0x880] sm:%s216]
                %546 = vst [vmem:[%s224 + $0x500] sm:%s216] %v545
                %v547 = vld [vmem:[%s223 + $0x888] sm:%s216]
                %548 = vst [vmem:[%s224 + $0x508] sm:%s216] %v547
                %v549 = vld [vmem:[%s223 + $0x890] sm:%s216]
                %550 = vst [vmem:[%s224 + $0x510] sm:%s216] %v549
                %v551 = vld [vmem:[%s223 + $0x898] sm:%s216]
                %552 = vst [vmem:[%s224 + $0x518] sm:%s216] %v551
                %v553 = vld [vmem:[%s223 + $0x8a0] sm:%s216]
                %554 = vst [vmem:[%s224 + $0x520] sm:%s216] %v553
                %v555 = vld [vmem:[%s223 + $0x8a8] sm:%s216]
                %556 = vst [vmem:[%s224 + $0x528] sm:%s216] %v555
                %v557 = vld [vmem:[%s223 + $0x8b0] sm:%s216]
                %558 = vst [vmem:[%s224 + $0x530] sm:%s216] %v557
                %v559 = vld [vmem:[%s223 + $0x8b8] sm:%s216]
                %560 = vst [vmem:[%s224 + $0x538] sm:%s216] %v559
                %v561 = vld [vmem:[%s223 + $0x8c0] sm:%s216]
                %562 = vst [vmem:[%s224 + $0x540] sm:%s216] %v561
                %v563 = vld [vmem:[%s223 + $0x8c8] sm:%s216]
                %564 = vst [vmem:[%s224 + $0x548] sm:%s216] %v563
                %v565 = vld [vmem:[%s223 + $0x8d0] sm:%s216]
                %566 = vst [vmem:[%s224 + $0x550] sm:%s216] %v565
                %v567 = vld [vmem:[%s223 + $0x8d8] sm:%s216]
                %568 = vst [vmem:[%s224 + $0x558] sm:%s216] %v567
                %v569 = vld [vmem:[%s223 + $0x8e0] sm:%s216]
                %570 = vst [vmem:[%s224 + $0x560] sm:%s216] %v569
                %v571 = vld [vmem:[%s223 + $0x8e8] sm:%s216]
                %572 = vst [vmem:[%s224 + $0x568] sm:%s216] %v571
                %v573 = vld [vmem:[%s223 + $0x8f0] sm:%s216]
                %574 = vst [vmem:[%s224 + $0x570] sm:%s216] %v573
                %v575 = vld [vmem:[%s223 + $0x8f8] sm:%s216]
                %576 = vst [vmem:[%s224 + $0x578] sm:%s216] %v575
                %v577 = vld [vmem:[%s223 + $0x900] sm:%s216]
                %578 = vst [vmem:[%s224 + $0x580] sm:%s216] %v577
                %v579 = vld [vmem:[%s223 + $0x908] sm:%s216]
                %580 = vst [vmem:[%s224 + $0x588] sm:%s216] %v579
                %v581 = vld [vmem:[%s223 + $0x910] sm:%s216]
                %582 = vst [vmem:[%s224 + $0x590] sm:%s216] %v581
                %v583 = vld [vmem:[%s223 + $0x918] sm:%s216]
                %584 = vst [vmem:[%s224 + $0x598] sm:%s216] %v583
                %v585 = vld [vmem:[%s223 + $0x920] sm:%s216]
                %586 = vst [vmem:[%s224 + $0x5a0] sm:%s216] %v585
                %v587 = vld [vmem:[%s223 + $0x928] sm:%s216]
                %588 = vst [vmem:[%s224 + $0x5a8] sm:%s216] %v587
                %v589 = vld [vmem:[%s223 + $0x930] sm:%s216]
                %590 = vst [vmem:[%s224 + $0x5b0] sm:%s216] %v589
                %v591 = vld [vmem:[%s223 + $0x938] sm:%s216]
                %592 = vst [vmem:[%s224 + $0x5b8] sm:%s216] %v591
                %v593 = vld [vmem:[%s223 + $0x940] sm:%s216]
                %594 = vst [vmem:[%s224 + $0x5c0] sm:%s216] %v593
                %v595 = vld [vmem:[%s223 + $0x948] sm:%s216]
                %596 = vst [vmem:[%s224 + $0x5c8] sm:%s216] %v595
                %v597 = vld [vmem:[%s223 + $0x950] sm:%s216]
                %598 = vst [vmem:[%s224 + $0x5d0] sm:%s216] %v597
                %v599 = vld [vmem:[%s223 + $0x958] sm:%s216]
                %600 = vst [vmem:[%s224 + $0x5d8] sm:%s216] %v599
                %v601 = vld [vmem:[%s223 + $0x960] sm:%s216]
                %602 = vst [vmem:[%s224 + $0x5e0] sm:%s216] %v601
                %v603 = vld [vmem:[%s223 + $0x968] sm:%s216]
                %604 = vst [vmem:[%s224 + $0x5e8] sm:%s216] %v603
                %v605 = vld [vmem:[%s223 + $0x970] sm:%s216]
                %606 = vst [vmem:[%s224 + $0x5f0] sm:%s216] %v605
                %v607 = vld [vmem:[%s223 + $0x978] sm:%s216]
                %608 = vst [vmem:[%s224 + $0x5f8] sm:%s216] %v607
                %v609 = vld [vmem:[%s223 + $0x980] sm:%s216]
                %610 = vst [vmem:[%s224 + $0x600] sm:%s216] %v609
                %v611 = vld [vmem:[%s223 + $0x988] sm:%s216]
                %612 = vst [vmem:[%s224 + $0x608] sm:%s216] %v611
                %v613 = vld [vmem:[%s223 + $0x990] sm:%s216]
                %614 = vst [vmem:[%s224 + $0x610] sm:%s216] %v613
                %v615 = vld [vmem:[%s223 + $0x998] sm:%s216]
                %616 = vst [vmem:[%s224 + $0x618] sm:%s216] %v615
                %v617 = vld [vmem:[%s223 + $0x9a0] sm:%s216]
                %618 = vst [vmem:[%s224 + $0x620] sm:%s216] %v617
                %v619 = vld [vmem:[%s223 + $0x9a8] sm:%s216]
                %620 = vst [vmem:[%s224 + $0x628] sm:%s216] %v619
                %v621 = vld [vmem:[%s223 + $0x9b0] sm:%s216]
                %622 = vst [vmem:[%s224 + $0x630] sm:%s216] %v621
                %v623 = vld [vmem:[%s223 + $0x9b8] sm:%s216]
                %624 = vst [vmem:[%s224 + $0x638] sm:%s216] %v623
                %v625 = vld [vmem:[%s223 + $0x9c0] sm:%s216]
                %626 = vst [vmem:[%s224 + $0x640] sm:%s216] %v625
                %v627 = vld [vmem:[%s223 + $0x9c8] sm:%s216]
                %628 = vst [vmem:[%s224 + $0x648] sm:%s216] %v627
                %v629 = vld [vmem:[%s223 + $0x9d0] sm:%s216]
                %630 = vst [vmem:[%s224 + $0x650] sm:%s216] %v629
                %v631 = vld [vmem:[%s223 + $0x9d8] sm:%s216]
                %632 = vst [vmem:[%s224 + $0x658] sm:%s216] %v631
                %v633 = vld [vmem:[%s223 + $0x9e0] sm:%s216]
                %634 = vst [vmem:[%s224 + $0x660] sm:%s216] %v633
                %v635 = vld [vmem:[%s223 + $0x9e8] sm:%s216]
                %636 = vst [vmem:[%s224 + $0x668] sm:%s216] %v635
                %v637 = vld [vmem:[%s223 + $0x9f0] sm:%s216]
                %638 = vst [vmem:[%s224 + $0x670] sm:%s216] %v637
                %v639 = vld [vmem:[%s223 + $0x9f8] sm:%s216]
                %640 = vst [vmem:[%s224 + $0x678] sm:%s216] %v639
                %v641 = vld [vmem:[%s223 + $0xa00] sm:%s216]
                %642 = vst [vmem:[%s224 + $0x680] sm:%s216] %v641
                %v643 = vld [vmem:[%s223 + $0xa08] sm:%s216]
                %644 = vst [vmem:[%s224 + $0x688] sm:%s216] %v643
                %v645 = vld [vmem:[%s223 + $0xa10] sm:%s216]
                %646 = vst [vmem:[%s224 + $0x690] sm:%s216] %v645
                %v647 = vld [vmem:[%s223 + $0xa18] sm:%s216]
                %648 = vst [vmem:[%s224 + $0x698] sm:%s216] %v647
                %v649 = vld [vmem:[%s223 + $0xa20] sm:%s216]
                %650 = vst [vmem:[%s224 + $0x6a0] sm:%s216] %v649
                %v651 = vld [vmem:[%s223 + $0xa28] sm:%s216]
                %652 = vst [vmem:[%s224 + $0x6a8] sm:%s216] %v651
                %v653 = vld [vmem:[%s223 + $0xa30] sm:%s216]
                %654 = vst [vmem:[%s224 + $0x6b0] sm:%s216] %v653
                %v655 = vld [vmem:[%s223 + $0xa38] sm:%s216]
                %656 = vst [vmem:[%s224 + $0x6b8] sm:%s216] %v655
                %v657 = vld [vmem:[%s223 + $0xa40] sm:%s216]
                %658 = vst [vmem:[%s224 + $0x6c0] sm:%s216] %v657
                %v659 = vld [vmem:[%s223 + $0xa48] sm:%s216]
                %660 = vst [vmem:[%s224 + $0x6c8] sm:%s216] %v659
                %v661 = vld [vmem:[%s223 + $0xa50] sm:%s216]
                %662 = vst [vmem:[%s224 + $0x6d0] sm:%s216] %v661
                %v663 = vld [vmem:[%s223 + $0xa58] sm:%s216]
                %664 = vst [vmem:[%s224 + $0x6d8] sm:%s216] %v663
                %v665 = vld [vmem:[%s223 + $0xa60] sm:%s216]
                %666 = vst [vmem:[%s224 + $0x6e0] sm:%s216] %v665
                %v667 = vld [vmem:[%s223 + $0xa68] sm:%s216]
                %668 = vst [vmem:[%s224 + $0x6e8] sm:%s216] %v667
                %v669 = vld [vmem:[%s223 + $0xa70] sm:%s216]
                %670 = vst [vmem:[%s224 + $0x6f0] sm:%s216] %v669
                %v671 = vld [vmem:[%s223 + $0xa78] sm:%s216]
                %672 = vst [vmem:[%s224 + $0x6f8] sm:%s216] %v671
              $region49: #{tpu_custom_call.1} parent=43 // loop_footer
                %s222 = sadd.s32 1, %s218
              $region50: #{tpu_custom_call.1} parent=43 // loop_footer_branch
                %217 = sbr.rel target = $region46
              $region51: #{tpu_custom_call.1} parent=43 // loop_exit
                _
            $region44: #{tpu_custom_call.1} parent=35 // pred_fallthru
              _
          $region36: #{tpu_custom_call.1} parent=31 // pred_fallthru
            _
          %1133 = vnop
        $region32: #{tpu_custom_call.1} parent=27 // pred_fallthru
          _
        // Predicated region
        $region67: #{tpu_custom_call.1} parent=27 // pred_check
          %p1134 = pneg %p72
        $region68: #{tpu_custom_call.1} parent=27 // pred_check_branch
          %1136 = sbr.rel (%p1134) target = $region70
        $region69: #{tpu_custom_call.1} parent=27 // pred_region
          %s1137 = smul.u32 112, %s20
          %p1138 = scmp.lt.s32.totalorder %s1137, 223
          %s1139 = scalar_select %p1138, %s1137, 223
          %s1140 = smul.addr %s1139, 4
          %s1141 = smul.addr %s1140, 4
          %s1142 = scalar_lea.vmem %s1, %s1141
          %s1143 = smul.u32 112, %s20
        $region70: #{tpu_custom_call.1} parent=27 // pred_fallthru
          _
      $region28: #{tpu_custom_call.1} parent=5 // pred_fallthru
        _
      %p1144 = scmp.le.s32.totalorder 1, %s12
      %p1145 = scmp.lt.s32.totalorder %s12, 3
      %p1146 = pnand %p1144, %p1145
      %p1147 = pneg %p1146
      // Predicated region
      $region71: #{tpu_custom_call.1} parent=5 // pred_check
        _
      $region72: #{tpu_custom_call.1} parent=5 // pred_check_branch
        %1149 = sbr.rel (%p1146) target = $region74
      $region73: #{tpu_custom_call.1} parent=5 // pred_region
        %s1150 = ssub.s32 %s12, 1
        %s1151 = sand.u32 %s39, 1
        %s1152 = sand.u32 %s39, 1
        %s1153 = smul.addr %s1152, 1792
        %s1154 = scalar_lea.vmem [#allocation3], %s1153
        // Predicated region
        $region75: #{tpu_custom_call.1} parent=73 // pred_check
          %p1155 = pneg %p52
        $region76: #{tpu_custom_call.1} parent=73 // pred_check_branch
          %1157 = sbr.rel (%p1155) target = $region78
        $region77: #{tpu_custom_call.1} parent=73 // pred_region
          _
        $region78: #{tpu_custom_call.1} parent=73 // pred_fallthru
          _
        %s1158 = sand.u32 %s39, 1
        %s1159 = sand.u32 %s39, 1
        %s1160 = smul.addr %s1159, 1792
        %s1161 = scalar_lea.vmem [#allocation3], %s1160
        %p1162 = pneg %p52
        %p1163 = pneg %p49
        %s1164 = smul.u32 112, %s22
        %p1165 = scmp.lt.s32.totalorder %s1164, 223
        %s1166 = scalar_select %p1165, %s1164, 223
        %s1167 = smul.addr %s1166, 4
        %s1168 = smul.addr %s1167, 4
        %s1169 = scalar_lea.vmem %s1, %s1168
        %p1170 = pneg %p78
        %p1171 = pneg %p75
        %p1172 = pneg %p99
        %p1173 = pneg %p96
        %p1174 = pneg %p120
        %p1175 = pneg %p117
        %p1176 = pneg %p141
        %p1177 = pneg %p138
        %p1178 = pneg %p167
        %p1179 = pneg %p164
        %s1180 = smul.u32 2, %s21
        %s1181 = smul.u32 112, %s22
        %s1182 = smul.u32 112, %s22
        %p1183 = scmp.lt.s32.totalorder %s1182, 223
        %s1184 = scalar_select %p1183, %s1182, 223
        %s1185 = smul.addr %s1184, 4
        %s1186 = smul.addr %s1185, 4
        %s1187 = scalar_lea.vmem %s1, %s1186
        %s1188 = smul.u32 112, %s22
        %p1189 = scmp.eq.s32.totalorder %s22, 0
        // Predicated region
        $region79: #{tpu_custom_call.1} parent=73 // pred_check
          %p1190 = pneg %p1189
        $region80: #{tpu_custom_call.1} parent=73 // pred_check_branch
          %1192 = sbr.rel (%p1190) target = $region82
        $region81: #{tpu_custom_call.1} parent=73 // pred_region
          %1193 = vst [vmem:[#allocation2] sm:$0xff] 0.0
        $region82: #{tpu_custom_call.1} parent=73 // pred_fallthru
          _
        %v1194 = vld [vmem:[%s1154] sm:$0xff]
        %v1195 = vld [vmem:[%s1154 + $0x8] sm:$0xff]
        %v1196 = vld [vmem:[%s1154 + $0x10] sm:$0xff]
        %v1197 = vld [vmem:[%s1154 + $0x18] sm:$0xff]
        %v1198 = vld [vmem:[%s1154 + $0x20] sm:$0xff]
        %v1199 = vld [vmem:[%s1154 + $0x28] sm:$0xff]
        %v1200 = vld [vmem:[%s1154 + $0x30] sm:$0xff]
        %v1201 = vld [vmem:[%s1154 + $0x38] sm:$0xff]
        %v1202 = vld [vmem:[%s1154 + $0x40] sm:$0xff]
        %v1203 = vld [vmem:[%s1154 + $0x48] sm:$0xff]
        %v1204 = vld [vmem:[%s1154 + $0x50] sm:$0xff]
        %v1205 = vld [vmem:[%s1154 + $0x58] sm:$0xff]
        %v1206 = vld [vmem:[%s1154 + $0x60] sm:$0xff]
        %v1207 = vld [vmem:[%s1154 + $0x68] sm:$0xff]
        %v1208 = vld [vmem:[%s1154 + $0x70] sm:$0xff]
        %v1209 = vld [vmem:[%s1154 + $0x78] sm:$0xff]
        %v1210 = vld [vmem:[%s1154 + $0x80] sm:$0xff]
        %v1211 = vld [vmem:[%s1154 + $0x88] sm:$0xff]
        %v1212 = vld [vmem:[%s1154 + $0x90] sm:$0xff]
        %v1213 = vld [vmem:[%s1154 + $0x98] sm:$0xff]
        %v1214 = vld [vmem:[%s1154 + $0xa0] sm:$0xff]
        %v1215 = vld [vmem:[%s1154 + $0xa8] sm:$0xff]
        %v1216 = vld [vmem:[%s1154 + $0xb0] sm:$0xff]
        %v1217 = vld [vmem:[%s1154 + $0xb8] sm:$0xff]
        %v1218 = vld [vmem:[%s1154 + $0xc0] sm:$0xff]
        %v1219 = vld [vmem:[%s1154 + $0xc8] sm:$0xff]
        %v1220 = vld [vmem:[%s1154 + $0xd0] sm:$0xff]
        %v1221 = vld [vmem:[%s1154 + $0xd8] sm:$0xff]
        %v1222 = vld [vmem:[%s1154 + $0xe0] sm:$0xff]
        %v1223 = vld [vmem:[%s1154 + $0xe8] sm:$0xff]
        %v1224 = vld [vmem:[%s1154 + $0xf0] sm:$0xff]
        %v1225 = vld [vmem:[%s1154 + $0xf8] sm:$0xff]
        %v1226 = vld [vmem:[%s1154 + $0x100] sm:$0xff]
        %v1227 = vld [vmem:[%s1154 + $0x108] sm:$0xff]
        %v1228 = vld [vmem:[%s1154 + $0x110] sm:$0xff]
        %v1229 = vld [vmem:[%s1154 + $0x118] sm:$0xff]
        %v1230 = vld [vmem:[%s1154 + $0x120] sm:$0xff]
        %v1231 = vld [vmem:[%s1154 + $0x128] sm:$0xff]
        %v1232 = vld [vmem:[%s1154 + $0x130] sm:$0xff]
        %v1233 = vld [vmem:[%s1154 + $0x138] sm:$0xff]
        %v1234 = vld [vmem:[%s1154 + $0x140] sm:$0xff]
        %v1235 = vld [vmem:[%s1154 + $0x148] sm:$0xff]
        %v1236 = vld [vmem:[%s1154 + $0x150] sm:$0xff]
        %v1237 = vld [vmem:[%s1154 + $0x158] sm:$0xff]
        %v1238 = vld [vmem:[%s1154 + $0x160] sm:$0xff]
        %v1239 = vld [vmem:[%s1154 + $0x168] sm:$0xff]
        %v1240 = vld [vmem:[%s1154 + $0x170] sm:$0xff]
        %v1241 = vld [vmem:[%s1154 + $0x178] sm:$0xff]
        %v1242 = vld [vmem:[%s1154 + $0x180] sm:$0xff]
        %v1243 = vld [vmem:[%s1154 + $0x188] sm:$0xff]
        %v1244 = vld [vmem:[%s1154 + $0x190] sm:$0xff]
        %v1245 = vld [vmem:[%s1154 + $0x198] sm:$0xff]
        %v1246 = vld [vmem:[%s1154 + $0x1a0] sm:$0xff]
        %v1247 = vld [vmem:[%s1154 + $0x1a8] sm:$0xff]
        %v1248 = vld [vmem:[%s1154 + $0x1b0] sm:$0xff]
        %v1249 = vld [vmem:[%s1154 + $0x1b8] sm:$0xff]
        %v1250 = vld [vmem:[%s1154 + $0x1c0] sm:$0xff]
        %v1251 = vld [vmem:[%s1154 + $0x1c8] sm:$0xff]
        %v1252 = vld [vmem:[%s1154 + $0x1d0] sm:$0xff]
        %v1253 = vld [vmem:[%s1154 + $0x1d8] sm:$0xff]
        %v1254 = vld [vmem:[%s1154 + $0x1e0] sm:$0xff]
        %v1255 = vld [vmem:[%s1154 + $0x1e8] sm:$0xff]
        %v1256 = vld [vmem:[%s1154 + $0x1f0] sm:$0xff]
        %v1257 = vld [vmem:[%s1154 + $0x1f8] sm:$0xff]
        %v1258 = vld [vmem:[%s1154 + $0x200] sm:$0xff]
        %v1259 = vld [vmem:[%s1154 + $0x208] sm:$0xff]
        %v1260 = vld [vmem:[%s1154 + $0x210] sm:$0xff]
        %v1261 = vld [vmem:[%s1154 + $0x218] sm:$0xff]
        %v1262 = vld [vmem:[%s1154 + $0x220] sm:$0xff]
        %v1263 = vld [vmem:[%s1154 + $0x228] sm:$0xff]
        %v1264 = vld [vmem:[%s1154 + $0x230] sm:$0xff]
        %v1265 = vld [vmem:[%s1154 + $0x238] sm:$0xff]
        %v1266 = vld [vmem:[%s1154 + $0x240] sm:$0xff]
        %v1267 = vld [vmem:[%s1154 + $0x248] sm:$0xff]
        %v1268 = vld [vmem:[%s1154 + $0x250] sm:$0xff]
        %v1269 = vld [vmem:[%s1154 + $0x258] sm:$0xff]
        %v1270 = vld [vmem:[%s1154 + $0x260] sm:$0xff]
        %v1271 = vld [vmem:[%s1154 + $0x268] sm:$0xff]
        %v1272 = vld [vmem:[%s1154 + $0x270] sm:$0xff]
        %v1273 = vld [vmem:[%s1154 + $0x278] sm:$0xff]
        %v1274 = vld [vmem:[%s1154 + $0x280] sm:$0xff]
        %v1275 = vld [vmem:[%s1154 + $0x288] sm:$0xff]
        %v1276 = vld [vmem:[%s1154 + $0x290] sm:$0xff]
        %v1277 = vld [vmem:[%s1154 + $0x298] sm:$0xff]
        %v1278 = vld [vmem:[%s1154 + $0x2a0] sm:$0xff]
        %v1279 = vld [vmem:[%s1154 + $0x2a8] sm:$0xff]
        %v1280 = vld [vmem:[%s1154 + $0x2b0] sm:$0xff]
        %v1281 = vld [vmem:[%s1154 + $0x2b8] sm:$0xff]
        %v1282 = vld [vmem:[%s1154 + $0x2c0] sm:$0xff]
        %v1283 = vld [vmem:[%s1154 + $0x2c8] sm:$0xff]
        %v1284 = vld [vmem:[%s1154 + $0x2d0] sm:$0xff]
        %v1285 = vld [vmem:[%s1154 + $0x2d8] sm:$0xff]
        %v1286 = vld [vmem:[%s1154 + $0x2e0] sm:$0xff]
        %v1287 = vld [vmem:[%s1154 + $0x2e8] sm:$0xff]
        %v1288 = vld [vmem:[%s1154 + $0x2f0] sm:$0xff]
        %v1289 = vld [vmem:[%s1154 + $0x2f8] sm:$0xff]
        %v1290 = vld [vmem:[%s1154 + $0x300] sm:$0xff]
        %v1291 = vld [vmem:[%s1154 + $0x308] sm:$0xff]
        %v1292 = vld [vmem:[%s1154 + $0x310] sm:$0xff]
        %v1293 = vld [vmem:[%s1154 + $0x318] sm:$0xff]
        %v1294 = vld [vmem:[%s1154 + $0x320] sm:$0xff]
        %v1295 = vld [vmem:[%s1154 + $0x328] sm:$0xff]
        %v1296 = vld [vmem:[%s1154 + $0x330] sm:$0xff]
        %v1297 = vld [vmem:[%s1154 + $0x338] sm:$0xff]
        %v1298 = vld [vmem:[%s1154 + $0x340] sm:$0xff]
        %v1299 = vld [vmem:[%s1154 + $0x348] sm:$0xff]
        %v1300 = vld [vmem:[%s1154 + $0x350] sm:$0xff]
        %v1301 = vld [vmem:[%s1154 + $0x358] sm:$0xff]
        %v1302 = vld [vmem:[%s1154 + $0x360] sm:$0xff]
        %v1303 = vld [vmem:[%s1154 + $0x368] sm:$0xff]
        %v1304 = vld [vmem:[%s1154 + $0x370] sm:$0xff]
        %v1305 = vld [vmem:[%s1154 + $0x378] sm:$0xff]
        %v1306 = vld [vmem:[%s1154 + $0x380] sm:$0xff]
        %v1307 = vld [vmem:[%s1154 + $0x388] sm:$0xff]
        %v1308 = vld [vmem:[%s1154 + $0x390] sm:$0xff]
        %v1309 = vld [vmem:[%s1154 + $0x398] sm:$0xff]
        %v1310 = vld [vmem:[%s1154 + $0x3a0] sm:$0xff]
        %v1311 = vld [vmem:[%s1154 + $0x3a8] sm:$0xff]
        %v1312 = vld [vmem:[%s1154 + $0x3b0] sm:$0xff]
        %v1313 = vld [vmem:[%s1154 + $0x3b8] sm:$0xff]
        %v1314 = vld [vmem:[%s1154 + $0x3c0] sm:$0xff]
        %v1315 = vld [vmem:[%s1154 + $0x3c8] sm:$0xff]
        %v1316 = vld [vmem:[%s1154 + $0x3d0] sm:$0xff]
        %v1317 = vld [vmem:[%s1154 + $0x3d8] sm:$0xff]
        %v1318 = vld [vmem:[%s1154 + $0x3e0] sm:$0xff]
        %v1319 = vld [vmem:[%s1154 + $0x3e8] sm:$0xff]
        %v1320 = vld [vmem:[%s1154 + $0x3f0] sm:$0xff]
        %v1321 = vld [vmem:[%s1154 + $0x3f8] sm:$0xff]
        %v1322 = vld [vmem:[%s1154 + $0x400] sm:$0xff]
        %v1323 = vld [vmem:[%s1154 + $0x408] sm:$0xff]
        %v1324 = vld [vmem:[%s1154 + $0x410] sm:$0xff]
        %v1325 = vld [vmem:[%s1154 + $0x418] sm:$0xff]
        %v1326 = vld [vmem:[%s1154 + $0x420] sm:$0xff]
        %v1327 = vld [vmem:[%s1154 + $0x428] sm:$0xff]
        %v1328 = vld [vmem:[%s1154 + $0x430] sm:$0xff]
        %v1329 = vld [vmem:[%s1154 + $0x438] sm:$0xff]
        %v1330 = vld [vmem:[%s1154 + $0x440] sm:$0xff]
        %v1331 = vld [vmem:[%s1154 + $0x448] sm:$0xff]
        %v1332 = vld [vmem:[%s1154 + $0x450] sm:$0xff]
        %v1333 = vld [vmem:[%s1154 + $0x458] sm:$0xff]
        %v1334 = vld [vmem:[%s1154 + $0x460] sm:$0xff]
        %v1335 = vld [vmem:[%s1154 + $0x468] sm:$0xff]
        %v1336 = vld [vmem:[%s1154 + $0x470] sm:$0xff]
        %v1337 = vld [vmem:[%s1154 + $0x478] sm:$0xff]
        %v1338 = vld [vmem:[%s1154 + $0x480] sm:$0xff]
        %v1339 = vld [vmem:[%s1154 + $0x488] sm:$0xff]
        %v1340 = vld [vmem:[%s1154 + $0x490] sm:$0xff]
        %v1341 = vld [vmem:[%s1154 + $0x498] sm:$0xff]
        %v1342 = vld [vmem:[%s1154 + $0x4a0] sm:$0xff]
        %v1343 = vld [vmem:[%s1154 + $0x4a8] sm:$0xff]
        %v1344 = vld [vmem:[%s1154 + $0x4b0] sm:$0xff]
        %v1345 = vld [vmem:[%s1154 + $0x4b8] sm:$0xff]
        %v1346 = vld [vmem:[%s1154 + $0x4c0] sm:$0xff]
        %v1347 = vld [vmem:[%s1154 + $0x4c8] sm:$0xff]
        %v1348 = vld [vmem:[%s1154 + $0x4d0] sm:$0xff]
        %v1349 = vld [vmem:[%s1154 + $0x4d8] sm:$0xff]
        %v1350 = vld [vmem:[%s1154 + $0x4e0] sm:$0xff]
        %v1351 = vld [vmem:[%s1154 + $0x4e8] sm:$0xff]
        %v1352 = vld [vmem:[%s1154 + $0x4f0] sm:$0xff]
        %v1353 = vld [vmem:[%s1154 + $0x4f8] sm:$0xff]
        %v1354 = vld [vmem:[%s1154 + $0x500] sm:$0xff]
        %v1355 = vld [vmem:[%s1154 + $0x508] sm:$0xff]
        %v1356 = vld [vmem:[%s1154 + $0x510] sm:$0xff]
        %v1357 = vld [vmem:[%s1154 + $0x518] sm:$0xff]
        %v1358 = vld [vmem:[%s1154 + $0x520] sm:$0xff]
        %v1359 = vld [vmem:[%s1154 + $0x528] sm:$0xff]
        %v1360 = vld [vmem:[%s1154 + $0x530] sm:$0xff]
        %v1361 = vld [vmem:[%s1154 + $0x538] sm:$0xff]
        %v1362 = vld [vmem:[%s1154 + $0x540] sm:$0xff]
        %v1363 = vld [vmem:[%s1154 + $0x548] sm:$0xff]
        %v1364 = vld [vmem:[%s1154 + $0x550] sm:$0xff]
        %v1365 = vld [vmem:[%s1154 + $0x558] sm:$0xff]
        %v1366 = vld [vmem:[%s1154 + $0x560] sm:$0xff]
        %v1367 = vld [vmem:[%s1154 + $0x568] sm:$0xff]
        %v1368 = vld [vmem:[%s1154 + $0x570] sm:$0xff]
        %v1369 = vld [vmem:[%s1154 + $0x578] sm:$0xff]
        %v1370 = vld [vmem:[%s1154 + $0x580] sm:$0xff]
        %v1371 = vld [vmem:[%s1154 + $0x588] sm:$0xff]
        %v1372 = vld [vmem:[%s1154 + $0x590] sm:$0xff]
        %v1373 = vld [vmem:[%s1154 + $0x598] sm:$0xff]
        %v1374 = vld [vmem:[%s1154 + $0x5a0] sm:$0xff]
        %v1375 = vld [vmem:[%s1154 + $0x5a8] sm:$0xff]
        %v1376 = vld [vmem:[%s1154 + $0x5b0] sm:$0xff]
        %v1377 = vld [vmem:[%s1154 + $0x5b8] sm:$0xff]
        %v1378 = vld [vmem:[%s1154 + $0x5c0] sm:$0xff]
        %v1379 = vld [vmem:[%s1154 + $0x5c8] sm:$0xff]
        %v1380 = vld [vmem:[%s1154 + $0x5d0] sm:$0xff]
        %v1381 = vld [vmem:[%s1154 + $0x5d8] sm:$0xff]
        %v1382 = vld [vmem:[%s1154 + $0x5e0] sm:$0xff]
        %v1383 = vld [vmem:[%s1154 + $0x5e8] sm:$0xff]
        %v1384 = vld [vmem:[%s1154 + $0x5f0] sm:$0xff]
        %v1385 = vld [vmem:[%s1154 + $0x5f8] sm:$0xff]
        %v1386 = vld [vmem:[%s1154 + $0x600] sm:$0xff]
        %v1387 = vld [vmem:[%s1154 + $0x608] sm:$0xff]
        %v1388 = vld [vmem:[%s1154 + $0x610] sm:$0xff]
        %v1389 = vld [vmem:[%s1154 + $0x618] sm:$0xff]
        %v1390 = vld [vmem:[%s1154 + $0x620] sm:$0xff]
        %v1391 = vld [vmem:[%s1154 + $0x628] sm:$0xff]
        %v1392 = vld [vmem:[%s1154 + $0x630] sm:$0xff]
        %v1393 = vld [vmem:[%s1154 + $0x638] sm:$0xff]
        %v1394 = vld [vmem:[%s1154 + $0x640] sm:$0xff]
        %v1395 = vld [vmem:[%s1154 + $0x648] sm:$0xff]
        %v1396 = vld [vmem:[%s1154 + $0x650] sm:$0xff]
        %v1397 = vld [vmem:[%s1154 + $0x658] sm:$0xff]
        %v1398 = vld [vmem:[%s1154 + $0x660] sm:$0xff]
        %v1399 = vld [vmem:[%s1154 + $0x668] sm:$0xff]
        %v1400 = vld [vmem:[%s1154 + $0x670] sm:$0xff]
        %v1401 = vld [vmem:[%s1154 + $0x678] sm:$0xff]
        %v1402 = vld [vmem:[%s1154 + $0x680] sm:$0xff]
        %v1403 = vld [vmem:[%s1154 + $0x688] sm:$0xff]
        %v1404 = vld [vmem:[%s1154 + $0x690] sm:$0xff]
        %v1405 = vld [vmem:[%s1154 + $0x698] sm:$0xff]
        %v1406 = vld [vmem:[%s1154 + $0x6a0] sm:$0xff]
        %v1407 = vld [vmem:[%s1154 + $0x6a8] sm:$0xff]
        %v1408 = vld [vmem:[%s1154 + $0x6b0] sm:$0xff]
        %v1409 = vld [vmem:[%s1154 + $0x6b8] sm:$0xff]
        %v1410 = vld [vmem:[%s1154 + $0x6c0] sm:$0xff]
        %v1411 = vld [vmem:[%s1154 + $0x6c8] sm:$0xff]
        %v1412 = vld [vmem:[%s1154 + $0x6d0] sm:$0xff]
        %v1413 = vld [vmem:[%s1154 + $0x6d8] sm:$0xff]
        %v1414 = vld [vmem:[%s1154 + $0x6e0] sm:$0xff]
        %v1415 = vld [vmem:[%s1154 + $0x6e8] sm:$0xff]
        %v1416 = vld [vmem:[%s1154 + $0x6f0] sm:$0xff]
        %v1417 = vld [vmem:[%s1154 + $0x6f8] sm:$0xff]
        %v1418 = vunpack.c.l.bf16 %v1194
        %v1419 = vunpack.c.l.bf16 %v1195
        %v1420 = vunpack.c.l.bf16 %v1196
        %v1421 = vunpack.c.l.bf16 %v1197
        %v1422 = vunpack.c.l.bf16 %v1198
        %v1423 = vunpack.c.l.bf16 %v1199
        %v1424 = vunpack.c.l.bf16 %v1200
        %v1425 = vunpack.c.l.bf16 %v1201
        %v1426 = vunpack.c.l.bf16 %v1202
        %v1427 = vunpack.c.l.bf16 %v1203
        %v1428 = vunpack.c.l.bf16 %v1204
        %v1429 = vunpack.c.l.bf16 %v1205
        %v1430 = vunpack.c.l.bf16 %v1206
        %v1431 = vunpack.c.l.bf16 %v1207
        %v1432 = vunpack.c.l.bf16 %v1208
        %v1433 = vunpack.c.l.bf16 %v1209
        %v1434 = vunpack.c.l.bf16 %v1210
        %v1435 = vunpack.c.l.bf16 %v1211
        %v1436 = vunpack.c.l.bf16 %v1212
        %v1437 = vunpack.c.l.bf16 %v1213
        %v1438 = vunpack.c.l.bf16 %v1214
        %v1439 = vunpack.c.l.bf16 %v1215
        %v1440 = vunpack.c.l.bf16 %v1216
        %v1441 = vunpack.c.l.bf16 %v1217
        %v1442 = vunpack.c.l.bf16 %v1218
        %v1443 = vunpack.c.l.bf16 %v1219
        %v1444 = vunpack.c.l.bf16 %v1220
        %v1445 = vunpack.c.l.bf16 %v1221
        %v1446 = vunpack.c.l.bf16 %v1222
        %v1447 = vunpack.c.l.bf16 %v1223
        %v1448 = vunpack.c.l.bf16 %v1224
        %v1449 = vunpack.c.l.bf16 %v1225
        %v1450 = vunpack.c.l.bf16 %v1226
        %v1451 = vunpack.c.l.bf16 %v1227
        %v1452 = vunpack.c.l.bf16 %v1228
        %v1453 = vunpack.c.l.bf16 %v1229
        %v1454 = vunpack.c.l.bf16 %v1230
        %v1455 = vunpack.c.l.bf16 %v1231
        %v1456 = vunpack.c.l.bf16 %v1232
        %v1457 = vunpack.c.l.bf16 %v1233
        %v1458 = vunpack.c.l.bf16 %v1234
        %v1459 = vunpack.c.l.bf16 %v1235
        %v1460 = vunpack.c.l.bf16 %v1236
        %v1461 = vunpack.c.l.bf16 %v1237
        %v1462 = vunpack.c.l.bf16 %v1238
        %v1463 = vunpack.c.l.bf16 %v1239
        %v1464 = vunpack.c.l.bf16 %v1240
        %v1465 = vunpack.c.l.bf16 %v1241
        %v1466 = vunpack.c.l.bf16 %v1242
        %v1467 = vunpack.c.l.bf16 %v1243
        %v1468 = vunpack.c.l.bf16 %v1244
        %v1469 = vunpack.c.l.bf16 %v1245
        %v1470 = vunpack.c.l.bf16 %v1246
        %v1471 = vunpack.c.l.bf16 %v1247
        %v1472 = vunpack.c.l.bf16 %v1248
        %v1473 = vunpack.c.l.bf16 %v1249
        %v1474 = vunpack.c.l.bf16 %v1250
        %v1475 = vunpack.c.l.bf16 %v1251
        %v1476 = vunpack.c.l.bf16 %v1252
        %v1477 = vunpack.c.l.bf16 %v1253
        %v1478 = vunpack.c.l.bf16 %v1254
        %v1479 = vunpack.c.l.bf16 %v1255
        %v1480 = vunpack.c.l.bf16 %v1256
        %v1481 = vunpack.c.l.bf16 %v1257
        %v1482 = vunpack.c.l.bf16 %v1258
        %v1483 = vunpack.c.l.bf16 %v1259
        %v1484 = vunpack.c.l.bf16 %v1260
        %v1485 = vunpack.c.l.bf16 %v1261
        %v1486 = vunpack.c.l.bf16 %v1262
        %v1487 = vunpack.c.l.bf16 %v1263
        %v1488 = vunpack.c.l.bf16 %v1264
        %v1489 = vunpack.c.l.bf16 %v1265
        %v1490 = vunpack.c.l.bf16 %v1266
        %v1491 = vunpack.c.l.bf16 %v1267
        %v1492 = vunpack.c.l.bf16 %v1268
        %v1493 = vunpack.c.l.bf16 %v1269
        %v1494 = vunpack.c.l.bf16 %v1270
        %v1495 = vunpack.c.l.bf16 %v1271
        %v1496 = vunpack.c.l.bf16 %v1272
        %v1497 = vunpack.c.l.bf16 %v1273
        %v1498 = vunpack.c.l.bf16 %v1274
        %v1499 = vunpack.c.l.bf16 %v1275
        %v1500 = vunpack.c.l.bf16 %v1276
        %v1501 = vunpack.c.l.bf16 %v1277
        %v1502 = vunpack.c.l.bf16 %v1278
        %v1503 = vunpack.c.l.bf16 %v1279
        %v1504 = vunpack.c.l.bf16 %v1280
        %v1505 = vunpack.c.l.bf16 %v1281
        %v1506 = vunpack.c.l.bf16 %v1282
        %v1507 = vunpack.c.l.bf16 %v1283
        %v1508 = vunpack.c.l.bf16 %v1284
        %v1509 = vunpack.c.l.bf16 %v1285
        %v1510 = vunpack.c.l.bf16 %v1286
        %v1511 = vunpack.c.l.bf16 %v1287
        %v1512 = vunpack.c.l.bf16 %v1288
        %v1513 = vunpack.c.l.bf16 %v1289
        %v1514 = vunpack.c.l.bf16 %v1290
        %v1515 = vunpack.c.l.bf16 %v1291
        %v1516 = vunpack.c.l.bf16 %v1292
        %v1517 = vunpack.c.l.bf16 %v1293
        %v1518 = vunpack.c.l.bf16 %v1294
        %v1519 = vunpack.c.l.bf16 %v1295
        %v1520 = vunpack.c.l.bf16 %v1296
        %v1521 = vunpack.c.l.bf16 %v1297
        %v1522 = vunpack.c.l.bf16 %v1298
        %v1523 = vunpack.c.l.bf16 %v1299
        %v1524 = vunpack.c.l.bf16 %v1300
        %v1525 = vunpack.c.l.bf16 %v1301
        %v1526 = vunpack.c.l.bf16 %v1302
        %v1527 = vunpack.c.l.bf16 %v1303
        %v1528 = vunpack.c.l.bf16 %v1304
        %v1529 = vunpack.c.l.bf16 %v1305
        %v1530 = vunpack.c.l.bf16 %v1306
        %v1531 = vunpack.c.l.bf16 %v1307
        %v1532 = vunpack.c.l.bf16 %v1308
        %v1533 = vunpack.c.l.bf16 %v1309
        %v1534 = vunpack.c.l.bf16 %v1310
        %v1535 = vunpack.c.l.bf16 %v1311
        %v1536 = vunpack.c.l.bf16 %v1312
        %v1537 = vunpack.c.l.bf16 %v1313
        %v1538 = vunpack.c.l.bf16 %v1314
        %v1539 = vunpack.c.l.bf16 %v1315
        %v1540 = vunpack.c.l.bf16 %v1316
        %v1541 = vunpack.c.l.bf16 %v1317
        %v1542 = vunpack.c.l.bf16 %v1318
        %v1543 = vunpack.c.l.bf16 %v1319
        %v1544 = vunpack.c.l.bf16 %v1320
        %v1545 = vunpack.c.l.bf16 %v1321
        %v1546 = vunpack.c.l.bf16 %v1322
        %v1547 = vunpack.c.l.bf16 %v1323
        %v1548 = vunpack.c.l.bf16 %v1324
        %v1549 = vunpack.c.l.bf16 %v1325
        %v1550 = vunpack.c.l.bf16 %v1326
        %v1551 = vunpack.c.l.bf16 %v1327
        %v1552 = vunpack.c.l.bf16 %v1328
        %v1553 = vunpack.c.l.bf16 %v1329
        %v1554 = vunpack.c.l.bf16 %v1330
        %v1555 = vunpack.c.l.bf16 %v1331
        %v1556 = vunpack.c.l.bf16 %v1332
        %v1557 = vunpack.c.l.bf16 %v1333
        %v1558 = vunpack.c.l.bf16 %v1334
        %v1559 = vunpack.c.l.bf16 %v1335
        %v1560 = vunpack.c.l.bf16 %v1336
        %v1561 = vunpack.c.l.bf16 %v1337
        %v1562 = vunpack.c.l.bf16 %v1338
        %v1563 = vunpack.c.l.bf16 %v1339
        %v1564 = vunpack.c.l.bf16 %v1340
        %v1565 = vunpack.c.l.bf16 %v1341
        %v1566 = vunpack.c.l.bf16 %v1342
        %v1567 = vunpack.c.l.bf16 %v1343
        %v1568 = vunpack.c.l.bf16 %v1344
        %v1569 = vunpack.c.l.bf16 %v1345
        %v1570 = vunpack.c.l.bf16 %v1346
        %v1571 = vunpack.c.l.bf16 %v1347
        %v1572 = vunpack.c.l.bf16 %v1348
        %v1573 = vunpack.c.l.bf16 %v1349
        %v1574 = vunpack.c.l.bf16 %v1350
        %v1575 = vunpack.c.l.bf16 %v1351
        %v1576 = vunpack.c.l.bf16 %v1352
        %v1577 = vunpack.c.l.bf16 %v1353
        %v1578 = vunpack.c.l.bf16 %v1354
        %v1579 = vunpack.c.l.bf16 %v1355
        %v1580 = vunpack.c.l.bf16 %v1356
        %v1581 = vunpack.c.l.bf16 %v1357
        %v1582 = vunpack.c.l.bf16 %v1358
        %v1583 = vunpack.c.l.bf16 %v1359
        %v1584 = vunpack.c.l.bf16 %v1360
        %v1585 = vunpack.c.l.bf16 %v1361
        %v1586 = vunpack.c.l.bf16 %v1362
        %v1587 = vunpack.c.l.bf16 %v1363
        %v1588 = vunpack.c.l.bf16 %v1364
        %v1589 = vunpack.c.l.bf16 %v1365
        %v1590 = vunpack.c.l.bf16 %v1366
        %v1591 = vunpack.c.l.bf16 %v1367
        %v1592 = vunpack.c.l.bf16 %v1368
        %v1593 = vunpack.c.l.bf16 %v1369
        %v1594 = vunpack.c.l.bf16 %v1370
        %v1595 = vunpack.c.l.bf16 %v1371
        %v1596 = vunpack.c.l.bf16 %v1372
        %v1597 = vunpack.c.l.bf16 %v1373
        %v1598 = vunpack.c.l.bf16 %v1374
        %v1599 = vunpack.c.l.bf16 %v1375
        %v1600 = vunpack.c.l.bf16 %v1376
        %v1601 = vunpack.c.l.bf16 %v1377
        %v1602 = vunpack.c.l.bf16 %v1378
        %v1603 = vunpack.c.l.bf16 %v1379
        %v1604 = vunpack.c.l.bf16 %v1380
        %v1605 = vunpack.c.l.bf16 %v1381
        %v1606 = vunpack.c.l.bf16 %v1382
        %v1607 = vunpack.c.l.bf16 %v1383
        %v1608 = vunpack.c.l.bf16 %v1384
        %v1609 = vunpack.c.l.bf16 %v1385
        %v1610 = vunpack.c.l.bf16 %v1386
        %v1611 = vunpack.c.l.bf16 %v1387
        %v1612 = vunpack.c.l.bf16 %v1388
        %v1613 = vunpack.c.l.bf16 %v1389
        %v1614 = vunpack.c.l.bf16 %v1390
        %v1615 = vunpack.c.l.bf16 %v1391
        %v1616 = vunpack.c.l.bf16 %v1392
        %v1617 = vunpack.c.l.bf16 %v1393
        %v1618 = vunpack.c.l.bf16 %v1394
        %v1619 = vunpack.c.l.bf16 %v1395
        %v1620 = vunpack.c.l.bf16 %v1396
        %v1621 = vunpack.c.l.bf16 %v1397
        %v1622 = vunpack.c.l.bf16 %v1398
        %v1623 = vunpack.c.l.bf16 %v1399
        %v1624 = vunpack.c.l.bf16 %v1400
        %v1625 = vunpack.c.l.bf16 %v1401
        %v1626 = vunpack.c.l.bf16 %v1402
        %v1627 = vunpack.c.l.bf16 %v1403
        %v1628 = vunpack.c.l.bf16 %v1404
        %v1629 = vunpack.c.l.bf16 %v1405
        %v1630 = vunpack.c.l.bf16 %v1406
        %v1631 = vunpack.c.l.bf16 %v1407
        %v1632 = vunpack.c.l.bf16 %v1408
        %v1633 = vunpack.c.l.bf16 %v1409
        %v1634 = vunpack.c.l.bf16 %v1410
        %v1635 = vunpack.c.l.bf16 %v1411
        %v1636 = vunpack.c.l.bf16 %v1412
        %v1637 = vunpack.c.l.bf16 %v1413
        %v1638 = vunpack.c.l.bf16 %v1414
        %v1639 = vunpack.c.l.bf16 %v1415
        %v1640 = vunpack.c.l.bf16 %v1416
        %v1641 = vunpack.c.l.bf16 %v1417
        %1642 = vadd.xlane.f32.xlu0 %v1418
        %v1643 = vpop.xlane.xlu0 %1642
        %1644 = vadd.xlane.f32.xlu0 %v1419
        %v1645 = vpop.xlane.xlu0 %1644
        %1646 = vadd.xlane.f32.xlu0 %v1420
        %v1647 = vpop.xlane.xlu0 %1646
        %1648 = vadd.xlane.f32.xlu0 %v1421
        %v1649 = vpop.xlane.xlu0 %1648
        %1650 = vadd.xlane.f32.xlu0 %v1422
        %v1651 = vpop.xlane.xlu0 %1650
        %1652 = vadd.xlane.f32.xlu0 %v1423
        %v1653 = vpop.xlane.xlu0 %1652
        %1654 = vadd.xlane.f32.xlu0 %v1424
        %v1655 = vpop.xlane.xlu0 %1654
        %1656 = vadd.xlane.f32.xlu0 %v1425
        %v1657 = vpop.xlane.xlu0 %1656
        %1658 = vadd.xlane.f32.xlu0 %v1426
        %v1659 = vpop.xlane.xlu0 %1658
        %1660 = vadd.xlane.f32.xlu0 %v1427
        %v1661 = vpop.xlane.xlu0 %1660
        %1662 = vadd.xlane.f32.xlu0 %v1428
        %v1663 = vpop.xlane.xlu0 %1662
        %1664 = vadd.xlane.f32.xlu0 %v1429
        %v1665 = vpop.xlane.xlu0 %1664
        %1666 = vadd.xlane.f32.xlu0 %v1430
        %v1667 = vpop.xlane.xlu0 %1666
        %1668 = vadd.xlane.f32.xlu0 %v1431
        %v1669 = vpop.xlane.xlu0 %1668
        %1670 = vadd.xlane.f32.xlu0 %v1432
        %v1671 = vpop.xlane.xlu0 %1670
        %1672 = vadd.xlane.f32.xlu0 %v1433
        %v1673 = vpop.xlane.xlu0 %1672
        %1674 = vadd.xlane.f32.xlu0 %v1434
        %v1675 = vpop.xlane.xlu0 %1674
        %1676 = vadd.xlane.f32.xlu0 %v1435
        %v1677 = vpop.xlane.xlu0 %1676
        %1678 = vadd.xlane.f32.xlu0 %v1436
        %v1679 = vpop.xlane.xlu0 %1678
        %1680 = vadd.xlane.f32.xlu0 %v1437
        %v1681 = vpop.xlane.xlu0 %1680
        %1682 = vadd.xlane.f32.xlu0 %v1438
        %v1683 = vpop.xlane.xlu0 %1682
        %1684 = vadd.xlane.f32.xlu0 %v1439
        %v1685 = vpop.xlane.xlu0 %1684
        %1686 = vadd.xlane.f32.xlu0 %v1440
        %v1687 = vpop.xlane.xlu0 %1686
        %1688 = vadd.xlane.f32.xlu0 %v1441
        %v1689 = vpop.xlane.xlu0 %1688
        %1690 = vadd.xlane.f32.xlu0 %v1442
        %v1691 = vpop.xlane.xlu0 %1690
        %1692 = vadd.xlane.f32.xlu0 %v1443
        %v1693 = vpop.xlane.xlu0 %1692
        %1694 = vadd.xlane.f32.xlu0 %v1444
        %v1695 = vpop.xlane.xlu0 %1694
        %1696 = vadd.xlane.f32.xlu0 %v1445
        %v1697 = vpop.xlane.xlu0 %1696
        %1698 = vadd.xlane.f32.xlu0 %v1446
        %v1699 = vpop.xlane.xlu0 %1698
        %1700 = vadd.xlane.f32.xlu0 %v1447
        %v1701 = vpop.xlane.xlu0 %1700
        %1702 = vadd.xlane.f32.xlu0 %v1448
        %v1703 = vpop.xlane.xlu0 %1702
        %1704 = vadd.xlane.f32.xlu0 %v1449
        %v1705 = vpop.xlane.xlu0 %1704
        %1706 = vadd.xlane.f32.xlu0 %v1450
        %v1707 = vpop.xlane.xlu0 %1706
        %1708 = vadd.xlane.f32.xlu0 %v1451
        %v1709 = vpop.xlane.xlu0 %1708
        %1710 = vadd.xlane.f32.xlu0 %v1452
        %v1711 = vpop.xlane.xlu0 %1710
        %1712 = vadd.xlane.f32.xlu0 %v1453
        %v1713 = vpop.xlane.xlu0 %1712
        %1714 = vadd.xlane.f32.xlu0 %v1454
        %v1715 = vpop.xlane.xlu0 %1714
        %1716 = vadd.xlane.f32.xlu0 %v1455
        %v1717 = vpop.xlane.xlu0 %1716
        %1718 = vadd.xlane.f32.xlu0 %v1456
        %v1719 = vpop.xlane.xlu0 %1718
        %1720 = vadd.xlane.f32.xlu0 %v1457
        %v1721 = vpop.xlane.xlu0 %1720
        %1722 = vadd.xlane.f32.xlu0 %v1458
        %v1723 = vpop.xlane.xlu0 %1722
        %1724 = vadd.xlane.f32.xlu0 %v1459
        %v1725 = vpop.xlane.xlu0 %1724
        %1726 = vadd.xlane.f32.xlu0 %v1460
        %v1727 = vpop.xlane.xlu0 %1726
        %1728 = vadd.xlane.f32.xlu0 %v1461
        %v1729 = vpop.xlane.xlu0 %1728
        %1730 = vadd.xlane.f32.xlu0 %v1462
        %v1731 = vpop.xlane.xlu0 %1730
        %1732 = vadd.xlane.f32.xlu0 %v1463
        %v1733 = vpop.xlane.xlu0 %1732
        %1734 = vadd.xlane.f32.xlu0 %v1464
        %v1735 = vpop.xlane.xlu0 %1734
        %1736 = vadd.xlane.f32.xlu0 %v1465
        %v1737 = vpop.xlane.xlu0 %1736
        %1738 = vadd.xlane.f32.xlu0 %v1466
        %v1739 = vpop.xlane.xlu0 %1738
        %1740 = vadd.xlane.f32.xlu0 %v1467
        %v1741 = vpop.xlane.xlu0 %1740
        %1742 = vadd.xlane.f32.xlu0 %v1468
        %v1743 = vpop.xlane.xlu0 %1742
        %1744 = vadd.xlane.f32.xlu0 %v1469
        %v1745 = vpop.xlane.xlu0 %1744
        %1746 = vadd.xlane.f32.xlu0 %v1470
        %v1747 = vpop.xlane.xlu0 %1746
        %1748 = vadd.xlane.f32.xlu0 %v1471
        %v1749 = vpop.xlane.xlu0 %1748
        %1750 = vadd.xlane.f32.xlu0 %v1472
        %v1751 = vpop.xlane.xlu0 %1750
        %1752 = vadd.xlane.f32.xlu0 %v1473
        %v1753 = vpop.xlane.xlu0 %1752
        %1754 = vadd.xlane.f32.xlu0 %v1474
        %v1755 = vpop.xlane.xlu0 %1754
        %1756 = vadd.xlane.f32.xlu0 %v1475
        %v1757 = vpop.xlane.xlu0 %1756
        %1758 = vadd.xlane.f32.xlu0 %v1476
        %v1759 = vpop.xlane.xlu0 %1758
        %1760 = vadd.xlane.f32.xlu0 %v1477
        %v1761 = vpop.xlane.xlu0 %1760
        %1762 = vadd.xlane.f32.xlu0 %v1478
        %v1763 = vpop.xlane.xlu0 %1762
        %1764 = vadd.xlane.f32.xlu0 %v1479
        %v1765 = vpop.xlane.xlu0 %1764
        %1766 = vadd.xlane.f32.xlu0 %v1480
        %v1767 = vpop.xlane.xlu0 %1766
        %1768 = vadd.xlane.f32.xlu0 %v1481
        %v1769 = vpop.xlane.xlu0 %1768
        %1770 = vadd.xlane.f32.xlu0 %v1482
        %v1771 = vpop.xlane.xlu0 %1770
        %1772 = vadd.xlane.f32.xlu0 %v1483
        %v1773 = vpop.xlane.xlu0 %1772
        %1774 = vadd.xlane.f32.xlu0 %v1484
        %v1775 = vpop.xlane.xlu0 %1774
        %1776 = vadd.xlane.f32.xlu0 %v1485
        %v1777 = vpop.xlane.xlu0 %1776
        %1778 = vadd.xlane.f32.xlu0 %v1486
        %v1779 = vpop.xlane.xlu0 %1778
        %1780 = vadd.xlane.f32.xlu0 %v1487
        %v1781 = vpop.xlane.xlu0 %1780
        %1782 = vadd.xlane.f32.xlu0 %v1488
        %v1783 = vpop.xlane.xlu0 %1782
        %1784 = vadd.xlane.f32.xlu0 %v1489
        %v1785 = vpop.xlane.xlu0 %1784
        %1786 = vadd.xlane.f32.xlu0 %v1490
        %v1787 = vpop.xlane.xlu0 %1786
        %1788 = vadd.xlane.f32.xlu0 %v1491
        %v1789 = vpop.xlane.xlu0 %1788
        %1790 = vadd.xlane.f32.xlu0 %v1492
        %v1791 = vpop.xlane.xlu0 %1790
        %1792 = vadd.xlane.f32.xlu0 %v1493
        %v1793 = vpop.xlane.xlu0 %1792
        %1794 = vadd.xlane.f32.xlu0 %v1494
        %v1795 = vpop.xlane.xlu0 %1794
        %1796 = vadd.xlane.f32.xlu0 %v1495
        %v1797 = vpop.xlane.xlu0 %1796
        %1798 = vadd.xlane.f32.xlu0 %v1496
        %v1799 = vpop.xlane.xlu0 %1798
        %1800 = vadd.xlane.f32.xlu0 %v1497
        %v1801 = vpop.xlane.xlu0 %1800
        %1802 = vadd.xlane.f32.xlu0 %v1498
        %v1803 = vpop.xlane.xlu0 %1802
        %1804 = vadd.xlane.f32.xlu0 %v1499
        %v1805 = vpop.xlane.xlu0 %1804
        %1806 = vadd.xlane.f32.xlu0 %v1500
        %v1807 = vpop.xlane.xlu0 %1806
        %1808 = vadd.xlane.f32.xlu0 %v1501
        %v1809 = vpop.xlane.xlu0 %1808
        %1810 = vadd.xlane.f32.xlu0 %v1502
        %v1811 = vpop.xlane.xlu0 %1810
        %1812 = vadd.xlane.f32.xlu0 %v1503
        %v1813 = vpop.xlane.xlu0 %1812
        %1814 = vadd.xlane.f32.xlu0 %v1504
        %v1815 = vpop.xlane.xlu0 %1814
        %1816 = vadd.xlane.f32.xlu0 %v1505
        %v1817 = vpop.xlane.xlu0 %1816
        %1818 = vadd.xlane.f32.xlu0 %v1506
        %v1819 = vpop.xlane.xlu0 %1818
        %1820 = vadd.xlane.f32.xlu0 %v1507
        %v1821 = vpop.xlane.xlu0 %1820
        %1822 = vadd.xlane.f32.xlu0 %v1508
        %v1823 = vpop.xlane.xlu0 %1822
        %1824 = vadd.xlane.f32.xlu0 %v1509
        %v1825 = vpop.xlane.xlu0 %1824
        %1826 = vadd.xlane.f32.xlu0 %v1510
        %v1827 = vpop.xlane.xlu0 %1826
        %1828 = vadd.xlane.f32.xlu0 %v1511
        %v1829 = vpop.xlane.xlu0 %1828
        %1830 = vadd.xlane.f32.xlu0 %v1512
        %v1831 = vpop.xlane.xlu0 %1830
        %1832 = vadd.xlane.f32.xlu0 %v1513
        %v1833 = vpop.xlane.xlu0 %1832
        %1834 = vadd.xlane.f32.xlu0 %v1514
        %v1835 = vpop.xlane.xlu0 %1834
        %1836 = vadd.xlane.f32.xlu0 %v1515
        %v1837 = vpop.xlane.xlu0 %1836
        %1838 = vadd.xlane.f32.xlu0 %v1516
        %v1839 = vpop.xlane.xlu0 %1838
        %1840 = vadd.xlane.f32.xlu0 %v1517
        %v1841 = vpop.xlane.xlu0 %1840
        %1842 = vadd.xlane.f32.xlu0 %v1518
        %v1843 = vpop.xlane.xlu0 %1842
        %1844 = vadd.xlane.f32.xlu0 %v1519
        %v1845 = vpop.xlane.xlu0 %1844
        %1846 = vadd.xlane.f32.xlu0 %v1520
        %v1847 = vpop.xlane.xlu0 %1846
        %1848 = vadd.xlane.f32.xlu0 %v1521
        %v1849 = vpop.xlane.xlu0 %1848
        %1850 = vadd.xlane.f32.xlu0 %v1522
        %v1851 = vpop.xlane.xlu0 %1850
        %1852 = vadd.xlane.f32.xlu0 %v1523
        %v1853 = vpop.xlane.xlu0 %1852
        %1854 = vadd.xlane.f32.xlu0 %v1524
        %v1855 = vpop.xlane.xlu0 %1854
        %1856 = vadd.xlane.f32.xlu0 %v1525
        %v1857 = vpop.xlane.xlu0 %1856
        %1858 = vadd.xlane.f32.xlu0 %v1526
        %v1859 = vpop.xlane.xlu0 %1858
        %1860 = vadd.xlane.f32.xlu0 %v1527
        %v1861 = vpop.xlane.xlu0 %1860
        %1862 = vadd.xlane.f32.xlu0 %v1528
        %v1863 = vpop.xlane.xlu0 %1862
        %1864 = vadd.xlane.f32.xlu0 %v1529
        %v1865 = vpop.xlane.xlu0 %1864
        %1866 = vadd.xlane.f32.xlu0 %v1530
        %v1867 = vpop.xlane.xlu0 %1866
        %1868 = vadd.xlane.f32.xlu0 %v1531
        %v1869 = vpop.xlane.xlu0 %1868
        %1870 = vadd.xlane.f32.xlu0 %v1532
        %v1871 = vpop.xlane.xlu0 %1870
        %1872 = vadd.xlane.f32.xlu0 %v1533
        %v1873 = vpop.xlane.xlu0 %1872
        %1874 = vadd.xlane.f32.xlu0 %v1534
        %v1875 = vpop.xlane.xlu0 %1874
        %1876 = vadd.xlane.f32.xlu0 %v1535
        %v1877 = vpop.xlane.xlu0 %1876
        %1878 = vadd.xlane.f32.xlu0 %v1536
        %v1879 = vpop.xlane.xlu0 %1878
        %1880 = vadd.xlane.f32.xlu0 %v1537
        %v1881 = vpop.xlane.xlu0 %1880
        %1882 = vadd.xlane.f32.xlu0 %v1538
        %v1883 = vpop.xlane.xlu0 %1882
        %1884 = vadd.xlane.f32.xlu0 %v1539
        %v1885 = vpop.xlane.xlu0 %1884
        %1886 = vadd.xlane.f32.xlu0 %v1540
        %v1887 = vpop.xlane.xlu0 %1886
        %1888 = vadd.xlane.f32.xlu0 %v1541
        %v1889 = vpop.xlane.xlu0 %1888
        %1890 = vadd.xlane.f32.xlu0 %v1542
        %v1891 = vpop.xlane.xlu0 %1890
        %1892 = vadd.xlane.f32.xlu0 %v1543
        %v1893 = vpop.xlane.xlu0 %1892
        %1894 = vadd.xlane.f32.xlu0 %v1544
        %v1895 = vpop.xlane.xlu0 %1894
        %1896 = vadd.xlane.f32.xlu0 %v1545
        %v1897 = vpop.xlane.xlu0 %1896
        %1898 = vadd.xlane.f32.xlu0 %v1546
        %v1899 = vpop.xlane.xlu0 %1898
        %1900 = vadd.xlane.f32.xlu0 %v1547
        %v1901 = vpop.xlane.xlu0 %1900
        %1902 = vadd.xlane.f32.xlu0 %v1548
        %v1903 = vpop.xlane.xlu0 %1902
        %1904 = vadd.xlane.f32.xlu0 %v1549
        %v1905 = vpop.xlane.xlu0 %1904
        %1906 = vadd.xlane.f32.xlu0 %v1550
        %v1907 = vpop.xlane.xlu0 %1906
        %1908 = vadd.xlane.f32.xlu0 %v1551
        %v1909 = vpop.xlane.xlu0 %1908
        %1910 = vadd.xlane.f32.xlu0 %v1552
        %v1911 = vpop.xlane.xlu0 %1910
        %1912 = vadd.xlane.f32.xlu0 %v1553
        %v1913 = vpop.xlane.xlu0 %1912
        %1914 = vadd.xlane.f32.xlu0 %v1554
        %v1915 = vpop.xlane.xlu0 %1914
        %1916 = vadd.xlane.f32.xlu0 %v1555
        %v1917 = vpop.xlane.xlu0 %1916
        %1918 = vadd.xlane.f32.xlu0 %v1556
        %v1919 = vpop.xlane.xlu0 %1918
        %1920 = vadd.xlane.f32.xlu0 %v1557
        %v1921 = vpop.xlane.xlu0 %1920
        %1922 = vadd.xlane.f32.xlu0 %v1558
        %v1923 = vpop.xlane.xlu0 %1922
        %1924 = vadd.xlane.f32.xlu0 %v1559
        %v1925 = vpop.xlane.xlu0 %1924
        %1926 = vadd.xlane.f32.xlu0 %v1560
        %v1927 = vpop.xlane.xlu0 %1926
        %1928 = vadd.xlane.f32.xlu0 %v1561
        %v1929 = vpop.xlane.xlu0 %1928
        %1930 = vadd.xlane.f32.xlu0 %v1562
        %v1931 = vpop.xlane.xlu0 %1930
        %1932 = vadd.xlane.f32.xlu0 %v1563
        %v1933 = vpop.xlane.xlu0 %1932
        %1934 = vadd.xlane.f32.xlu0 %v1564
        %v1935 = vpop.xlane.xlu0 %1934
        %1936 = vadd.xlane.f32.xlu0 %v1565
        %v1937 = vpop.xlane.xlu0 %1936
        %1938 = vadd.xlane.f32.xlu0 %v1566
        %v1939 = vpop.xlane.xlu0 %1938
        %1940 = vadd.xlane.f32.xlu0 %v1567
        %v1941 = vpop.xlane.xlu0 %1940
        %1942 = vadd.xlane.f32.xlu0 %v1568
        %v1943 = vpop.xlane.xlu0 %1942
        %1944 = vadd.xlane.f32.xlu0 %v1569
        %v1945 = vpop.xlane.xlu0 %1944
        %1946 = vadd.xlane.f32.xlu0 %v1570
        %v1947 = vpop.xlane.xlu0 %1946
        %1948 = vadd.xlane.f32.xlu0 %v1571
        %v1949 = vpop.xlane.xlu0 %1948
        %1950 = vadd.xlane.f32.xlu0 %v1572
        %v1951 = vpop.xlane.xlu0 %1950
        %1952 = vadd.xlane.f32.xlu0 %v1573
        %v1953 = vpop.xlane.xlu0 %1952
        %1954 = vadd.xlane.f32.xlu0 %v1574
        %v1955 = vpop.xlane.xlu0 %1954
        %1956 = vadd.xlane.f32.xlu0 %v1575
        %v1957 = vpop.xlane.xlu0 %1956
        %1958 = vadd.xlane.f32.xlu0 %v1576
        %v1959 = vpop.xlane.xlu0 %1958
        %1960 = vadd.xlane.f32.xlu0 %v1577
        %v1961 = vpop.xlane.xlu0 %1960
        %1962 = vadd.xlane.f32.xlu0 %v1578
        %v1963 = vpop.xlane.xlu0 %1962
        %1964 = vadd.xlane.f32.xlu0 %v1579
        %v1965 = vpop.xlane.xlu0 %1964
        %1966 = vadd.xlane.f32.xlu0 %v1580
        %v1967 = vpop.xlane.xlu0 %1966
        %1968 = vadd.xlane.f32.xlu0 %v1581
        %v1969 = vpop.xlane.xlu0 %1968
        %1970 = vadd.xlane.f32.xlu0 %v1582
        %v1971 = vpop.xlane.xlu0 %1970
        %1972 = vadd.xlane.f32.xlu0 %v1583
        %v1973 = vpop.xlane.xlu0 %1972
        %1974 = vadd.xlane.f32.xlu0 %v1584
        %v1975 = vpop.xlane.xlu0 %1974
        %1976 = vadd.xlane.f32.xlu0 %v1585
        %v1977 = vpop.xlane.xlu0 %1976
        %1978 = vadd.xlane.f32.xlu0 %v1586
        %v1979 = vpop.xlane.xlu0 %1978
        %1980 = vadd.xlane.f32.xlu0 %v1587
        %v1981 = vpop.xlane.xlu0 %1980
        %1982 = vadd.xlane.f32.xlu0 %v1588
        %v1983 = vpop.xlane.xlu0 %1982
        %1984 = vadd.xlane.f32.xlu0 %v1589
        %v1985 = vpop.xlane.xlu0 %1984
        %1986 = vadd.xlane.f32.xlu0 %v1590
        %v1987 = vpop.xlane.xlu0 %1986
        %1988 = vadd.xlane.f32.xlu0 %v1591
        %v1989 = vpop.xlane.xlu0 %1988
        %1990 = vadd.xlane.f32.xlu0 %v1592
        %v1991 = vpop.xlane.xlu0 %1990
        %1992 = vadd.xlane.f32.xlu0 %v1593
        %v1993 = vpop.xlane.xlu0 %1992
        %1994 = vadd.xlane.f32.xlu0 %v1594
        %v1995 = vpop.xlane.xlu0 %1994
        %1996 = vadd.xlane.f32.xlu0 %v1595
        %v1997 = vpop.xlane.xlu0 %1996
        %1998 = vadd.xlane.f32.xlu0 %v1596
        %v1999 = vpop.xlane.xlu0 %1998
        %2000 = vadd.xlane.f32.xlu0 %v1597
        %v2001 = vpop.xlane.xlu0 %2000
        %2002 = vadd.xlane.f32.xlu0 %v1598
        %v2003 = vpop.xlane.xlu0 %2002
        %2004 = vadd.xlane.f32.xlu0 %v1599
        %v2005 = vpop.xlane.xlu0 %2004
        %2006 = vadd.xlane.f32.xlu0 %v1600
        %v2007 = vpop.xlane.xlu0 %2006
        %2008 = vadd.xlane.f32.xlu0 %v1601
        %v2009 = vpop.xlane.xlu0 %2008
        %2010 = vadd.xlane.f32.xlu0 %v1602
        %v2011 = vpop.xlane.xlu0 %2010
        %2012 = vadd.xlane.f32.xlu0 %v1603
        %v2013 = vpop.xlane.xlu0 %2012
        %2014 = vadd.xlane.f32.xlu0 %v1604
        %v2015 = vpop.xlane.xlu0 %2014
        %2016 = vadd.xlane.f32.xlu0 %v1605
        %v2017 = vpop.xlane.xlu0 %2016
        %2018 = vadd.xlane.f32.xlu0 %v1606
        %v2019 = vpop.xlane.xlu0 %2018
        %2020 = vadd.xlane.f32.xlu0 %v1607
        %v2021 = vpop.xlane.xlu0 %2020
        %2022 = vadd.xlane.f32.xlu0 %v1608
        %v2023 = vpop.xlane.xlu0 %2022
        %2024 = vadd.xlane.f32.xlu0 %v1609
        %v2025 = vpop.xlane.xlu0 %2024
        %2026 = vadd.xlane.f32.xlu0 %v1610
        %v2027 = vpop.xlane.xlu0 %2026
        %2028 = vadd.xlane.f32.xlu0 %v1611
        %v2029 = vpop.xlane.xlu0 %2028
        %2030 = vadd.xlane.f32.xlu0 %v1612
        %v2031 = vpop.xlane.xlu0 %2030
        %2032 = vadd.xlane.f32.xlu0 %v1613
        %v2033 = vpop.xlane.xlu0 %2032
        %2034 = vadd.xlane.f32.xlu0 %v1614
        %v2035 = vpop.xlane.xlu0 %2034
        %2036 = vadd.xlane.f32.xlu0 %v1615
        %v2037 = vpop.xlane.xlu0 %2036
        %2038 = vadd.xlane.f32.xlu0 %v1616
        %v2039 = vpop.xlane.xlu0 %2038
        %2040 = vadd.xlane.f32.xlu0 %v1617
        %v2041 = vpop.xlane.xlu0 %2040
        %2042 = vadd.xlane.f32.xlu0 %v1618
        %v2043 = vpop.xlane.xlu0 %2042
        %2044 = vadd.xlane.f32.xlu0 %v1619
        %v2045 = vpop.xlane.xlu0 %2044
        %2046 = vadd.xlane.f32.xlu0 %v1620
        %v2047 = vpop.xlane.xlu0 %2046
        %2048 = vadd.xlane.f32.xlu0 %v1621
        %v2049 = vpop.xlane.xlu0 %2048
        %2050 = vadd.xlane.f32.xlu0 %v1622
        %v2051 = vpop.xlane.xlu0 %2050
        %2052 = vadd.xlane.f32.xlu0 %v1623
        %v2053 = vpop.xlane.xlu0 %2052
        %2054 = vadd.xlane.f32.xlu0 %v1624
        %v2055 = vpop.xlane.xlu0 %2054
        %2056 = vadd.xlane.f32.xlu0 %v1625
        %v2057 = vpop.xlane.xlu0 %2056
        %2058 = vadd.xlane.f32.xlu0 %v1626
        %v2059 = vpop.xlane.xlu0 %2058
        %2060 = vadd.xlane.f32.xlu0 %v1627
        %v2061 = vpop.xlane.xlu0 %2060
        %2062 = vadd.xlane.f32.xlu0 %v1628
        %v2063 = vpop.xlane.xlu0 %2062
        %2064 = vadd.xlane.f32.xlu0 %v1629
        %v2065 = vpop.xlane.xlu0 %2064
        %2066 = vadd.xlane.f32.xlu0 %v1630
        %v2067 = vpop.xlane.xlu0 %2066
        %2068 = vadd.xlane.f32.xlu0 %v1631
        %v2069 = vpop.xlane.xlu0 %2068
        %2070 = vadd.xlane.f32.xlu0 %v1632
        %v2071 = vpop.xlane.xlu0 %2070
        %2072 = vadd.xlane.f32.xlu0 %v1633
        %v2073 = vpop.xlane.xlu0 %2072
        %2074 = vadd.xlane.f32.xlu0 %v1634
        %v2075 = vpop.xlane.xlu0 %2074
        %2076 = vadd.xlane.f32.xlu0 %v1635
        %v2077 = vpop.xlane.xlu0 %2076
        %2078 = vadd.xlane.f32.xlu0 %v1636
        %v2079 = vpop.xlane.xlu0 %2078
        %2080 = vadd.xlane.f32.xlu0 %v1637
        %v2081 = vpop.xlane.xlu0 %2080
        %2082 = vadd.xlane.f32.xlu0 %v1638
        %v2083 = vpop.xlane.xlu0 %2082
        %2084 = vadd.xlane.f32.xlu0 %v1639
        %v2085 = vpop.xlane.xlu0 %2084
        %2086 = vadd.xlane.f32.xlu0 %v1640
        %v2087 = vpop.xlane.xlu0 %2086
        %2088 = vadd.xlane.f32.xlu0 %v1641
        %v2089 = vpop.xlane.xlu0 %2088
        %v2314 = vrot.slane %v1194, 4
        %v2315 = vrot.slane %v1195, 4
        %v2316 = vrot.slane %v1196, 4
        %v2317 = vrot.slane %v1197, 4
        %v2318 = vrot.slane %v1198, 4
        %v2319 = vrot.slane %v1199, 4
        %v2320 = vrot.slane %v1200, 4
        %v2321 = vrot.slane %v1201, 4
        %v2322 = vrot.slane %v1202, 4
        %v2323 = vrot.slane %v1203, 4
        %v2324 = vrot.slane %v1204, 4
        %v2325 = vrot.slane %v1205, 4
        %v2326 = vrot.slane %v1206, 4
        %v2327 = vrot.slane %v1207, 4
        %v2328 = vrot.slane %v1208, 4
        %v2329 = vrot.slane %v1209, 4
        %v2330 = vrot.slane %v1210, 4
        %v2331 = vrot.slane %v1211, 4
        %v2332 = vrot.slane %v1212, 4
        %v2333 = vrot.slane %v1213, 4
        %v2334 = vrot.slane %v1214, 4
        %v2335 = vrot.slane %v1215, 4
        %v2336 = vrot.slane %v1216, 4
        %v2337 = vrot.slane %v1217, 4
        %v2338 = vrot.slane %v1218, 4
        %v2339 = vrot.slane %v1219, 4
        %v2340 = vrot.slane %v1220, 4
        %v2341 = vrot.slane %v1221, 4
        %v2342 = vrot.slane %v1222, 4
        %v2343 = vrot.slane %v1223, 4
        %v2344 = vrot.slane %v1224, 4
        %v2345 = vrot.slane %v1225, 4
        %v2346 = vrot.slane %v1226, 4
        %v2347 = vrot.slane %v1227, 4
        %v2348 = vrot.slane %v1228, 4
        %v2349 = vrot.slane %v1229, 4
        %v2350 = vrot.slane %v1230, 4
        %v2351 = vrot.slane %v1231, 4
        %v2352 = vrot.slane %v1232, 4
        %v2353 = vrot.slane %v1233, 4
        %v2354 = vrot.slane %v1234, 4
        %v2355 = vrot.slane %v1235, 4
        %v2356 = vrot.slane %v1236, 4
        %v2357 = vrot.slane %v1237, 4
        %v2358 = vrot.slane %v1238, 4
        %v2359 = vrot.slane %v1239, 4
        %v2360 = vrot.slane %v1240, 4
        %v2361 = vrot.slane %v1241, 4
        %v2362 = vrot.slane %v1242, 4
        %v2363 = vrot.slane %v1243, 4
        %v2364 = vrot.slane %v1244, 4
        %v2365 = vrot.slane %v1245, 4
        %v2366 = vrot.slane %v1246, 4
        %v2367 = vrot.slane %v1247, 4
        %v2368 = vrot.slane %v1248, 4
        %v2369 = vrot.slane %v1249, 4
        %v2370 = vrot.slane %v1250, 4
        %v2371 = vrot.slane %v1251, 4
        %v2372 = vrot.slane %v1252, 4
        %v2373 = vrot.slane %v1253, 4
        %v2374 = vrot.slane %v1254, 4
        %v2375 = vrot.slane %v1255, 4
        %v2376 = vrot.slane %v1256, 4
        %v2377 = vrot.slane %v1257, 4
        %v2378 = vrot.slane %v1258, 4
        %v2379 = vrot.slane %v1259, 4
        %v2380 = vrot.slane %v1260, 4
        %v2381 = vrot.slane %v1261, 4
        %v2382 = vrot.slane %v1262, 4
        %v2383 = vrot.slane %v1263, 4
        %v2384 = vrot.slane %v1264, 4
        %v2385 = vrot.slane %v1265, 4
        %v2386 = vrot.slane %v1266, 4
        %v2387 = vrot.slane %v1267, 4
        %v2388 = vrot.slane %v1268, 4
        %v2389 = vrot.slane %v1269, 4
        %v2390 = vrot.slane %v1270, 4
        %v2391 = vrot.slane %v1271, 4
        %v2392 = vrot.slane %v1272, 4
        %v2393 = vrot.slane %v1273, 4
        %v2394 = vrot.slane %v1274, 4
        %v2395 = vrot.slane %v1275, 4
        %v2396 = vrot.slane %v1276, 4
        %v2397 = vrot.slane %v1277, 4
        %v2398 = vrot.slane %v1278, 4
        %v2399 = vrot.slane %v1279, 4
        %v2400 = vrot.slane %v1280, 4
        %v2401 = vrot.slane %v1281, 4
        %v2402 = vrot.slane %v1282, 4
        %v2403 = vrot.slane %v1283, 4
        %v2404 = vrot.slane %v1284, 4
        %v2405 = vrot.slane %v1285, 4
        %v2406 = vrot.slane %v1286, 4
        %v2407 = vrot.slane %v1287, 4
        %v2408 = vrot.slane %v1288, 4
        %v2409 = vrot.slane %v1289, 4
        %v2410 = vrot.slane %v1290, 4
        %v2411 = vrot.slane %v1291, 4
        %v2412 = vrot.slane %v1292, 4
        %v2413 = vrot.slane %v1293, 4
        %v2414 = vrot.slane %v1294, 4
        %v2415 = vrot.slane %v1295, 4
        %v2416 = vrot.slane %v1296, 4
        %v2417 = vrot.slane %v1297, 4
        %v2418 = vrot.slane %v1298, 4
        %v2419 = vrot.slane %v1299, 4
        %v2420 = vrot.slane %v1300, 4
        %v2421 = vrot.slane %v1301, 4
        %v2422 = vrot.slane %v1302, 4
        %v2423 = vrot.slane %v1303, 4
        %v2424 = vrot.slane %v1304, 4
        %v2425 = vrot.slane %v1305, 4
        %v2426 = vrot.slane %v1306, 4
        %v2427 = vrot.slane %v1307, 4
        %v2428 = vrot.slane %v1308, 4
        %v2429 = vrot.slane %v1309, 4
        %v2430 = vrot.slane %v1310, 4
        %v2431 = vrot.slane %v1311, 4
        %v2432 = vrot.slane %v1312, 4
        %v2433 = vrot.slane %v1313, 4
        %v2434 = vrot.slane %v1314, 4
        %v2435 = vrot.slane %v1315, 4
        %v2436 = vrot.slane %v1316, 4
        %v2437 = vrot.slane %v1317, 4
        %v2438 = vrot.slane %v1318, 4
        %v2439 = vrot.slane %v1319, 4
        %v2440 = vrot.slane %v1320, 4
        %v2441 = vrot.slane %v1321, 4
        %v2442 = vrot.slane %v1322, 4
        %v2443 = vrot.slane %v1323, 4
        %v2444 = vrot.slane %v1324, 4
        %v2445 = vrot.slane %v1325, 4
        %v2446 = vrot.slane %v1326, 4
        %v2447 = vrot.slane %v1327, 4
        %v2448 = vrot.slane %v1328, 4
        %v2449 = vrot.slane %v1329, 4
        %v2450 = vrot.slane %v1330, 4
        %v2451 = vrot.slane %v1331, 4
        %v2452 = vrot.slane %v1332, 4
        %v2453 = vrot.slane %v1333, 4
        %v2454 = vrot.slane %v1334, 4
        %v2455 = vrot.slane %v1335, 4
        %v2456 = vrot.slane %v1336, 4
        %v2457 = vrot.slane %v1337, 4
        %v2458 = vrot.slane %v1338, 4
        %v2459 = vrot.slane %v1339, 4
        %v2460 = vrot.slane %v1340, 4
        %v2461 = vrot.slane %v1341, 4
        %v2462 = vrot.slane %v1342, 4
        %v2463 = vrot.slane %v1343, 4
        %v2464 = vrot.slane %v1344, 4
        %v2465 = vrot.slane %v1345, 4
        %v2466 = vrot.slane %v1346, 4
        %v2467 = vrot.slane %v1347, 4
        %v2468 = vrot.slane %v1348, 4
        %v2469 = vrot.slane %v1349, 4
        %v2470 = vrot.slane %v1350, 4
        %v2471 = vrot.slane %v1351, 4
        %v2472 = vrot.slane %v1352, 4
        %v2473 = vrot.slane %v1353, 4
        %v2474 = vrot.slane %v1354, 4
        %v2475 = vrot.slane %v1355, 4
        %v2476 = vrot.slane %v1356, 4
        %v2477 = vrot.slane %v1357, 4
        %v2478 = vrot.slane %v1358, 4
        %v2479 = vrot.slane %v1359, 4
        %v2480 = vrot.slane %v1360, 4
        %v2481 = vrot.slane %v1361, 4
        %v2482 = vrot.slane %v1362, 4
        %v2483 = vrot.slane %v1363, 4
        %v2484 = vrot.slane %v1364, 4
        %v2485 = vrot.slane %v1365, 4
        %v2486 = vrot.slane %v1366, 4
        %v2487 = vrot.slane %v1367, 4
        %v2488 = vrot.slane %v1368, 4
        %v2489 = vrot.slane %v1369, 4
        %v2490 = vrot.slane %v1370, 4
        %v2491 = vrot.slane %v1371, 4
        %v2492 = vrot.slane %v1372, 4
        %v2493 = vrot.slane %v1373, 4
        %v2494 = vrot.slane %v1374, 4
        %v2495 = vrot.slane %v1375, 4
        %v2496 = vrot.slane %v1376, 4
        %v2497 = vrot.slane %v1377, 4
        %v2498 = vrot.slane %v1378, 4
        %v2499 = vrot.slane %v1379, 4
        %v2500 = vrot.slane %v1380, 4
        %v2501 = vrot.slane %v1381, 4
        %v2502 = vrot.slane %v1382, 4
        %v2503 = vrot.slane %v1383, 4
        %v2504 = vrot.slane %v1384, 4
        %v2505 = vrot.slane %v1385, 4
        %v2506 = vrot.slane %v1386, 4
        %v2507 = vrot.slane %v1387, 4
        %v2508 = vrot.slane %v1388, 4
        %v2509 = vrot.slane %v1389, 4
        %v2510 = vrot.slane %v1390, 4
        %v2511 = vrot.slane %v1391, 4
        %v2512 = vrot.slane %v1392, 4
        %v2513 = vrot.slane %v1393, 4
        %v2514 = vrot.slane %v1394, 4
        %v2515 = vrot.slane %v1395, 4
        %v2516 = vrot.slane %v1396, 4
        %v2517 = vrot.slane %v1397, 4
        %v2518 = vrot.slane %v1398, 4
        %v2519 = vrot.slane %v1399, 4
        %v2520 = vrot.slane %v1400, 4
        %v2521 = vrot.slane %v1401, 4
        %v2522 = vrot.slane %v1402, 4
        %v2523 = vrot.slane %v1403, 4
        %v2524 = vrot.slane %v1404, 4
        %v2525 = vrot.slane %v1405, 4
        %v2526 = vrot.slane %v1406, 4
        %v2527 = vrot.slane %v1407, 4
        %v2528 = vrot.slane %v1408, 4
        %v2529 = vrot.slane %v1409, 4
        %v2530 = vrot.slane %v1410, 4
        %v2531 = vrot.slane %v1411, 4
        %v2532 = vrot.slane %v1412, 4
        %v2533 = vrot.slane %v1413, 4
        %v2534 = vrot.slane %v1414, 4
        %v2535 = vrot.slane %v1415, 4
        %v2536 = vrot.slane %v1416, 4
        %v2537 = vrot.slane %v1417, 4
        %v2762 = vunpack.c.l.bf16 %v2314
        %v2763 = vunpack.c.l.bf16 %v2315
        %v2764 = vunpack.c.l.bf16 %v2316
        %v2765 = vunpack.c.l.bf16 %v2317
        %v2766 = vunpack.c.l.bf16 %v2318
        %v2767 = vunpack.c.l.bf16 %v2319
        %v2768 = vunpack.c.l.bf16 %v2320
        %v2769 = vunpack.c.l.bf16 %v2321
        %v2770 = vunpack.c.l.bf16 %v2322
        %v2771 = vunpack.c.l.bf16 %v2323
        %v2772 = vunpack.c.l.bf16 %v2324
        %v2773 = vunpack.c.l.bf16 %v2325
        %v2774 = vunpack.c.l.bf16 %v2326
        %v2775 = vunpack.c.l.bf16 %v2327
        %v2776 = vunpack.c.l.bf16 %v2328
        %v2777 = vunpack.c.l.bf16 %v2329
        %v2778 = vunpack.c.l.bf16 %v2330
        %v2779 = vunpack.c.l.bf16 %v2331
        %v2780 = vunpack.c.l.bf16 %v2332
        %v2781 = vunpack.c.l.bf16 %v2333
        %v2782 = vunpack.c.l.bf16 %v2334
        %v2783 = vunpack.c.l.bf16 %v2335
        %v2784 = vunpack.c.l.bf16 %v2336
        %v2785 = vunpack.c.l.bf16 %v2337
        %v2786 = vunpack.c.l.bf16 %v2338
        %v2787 = vunpack.c.l.bf16 %v2339
        %v2788 = vunpack.c.l.bf16 %v2340
        %v2789 = vunpack.c.l.bf16 %v2341
        %v2790 = vunpack.c.l.bf16 %v2342
        %v2791 = vunpack.c.l.bf16 %v2343
        %v2792 = vunpack.c.l.bf16 %v2344
        %v2793 = vunpack.c.l.bf16 %v2345
        %v2794 = vunpack.c.l.bf16 %v2346
        %v2795 = vunpack.c.l.bf16 %v2347
        %v2796 = vunpack.c.l.bf16 %v2348
        %v2797 = vunpack.c.l.bf16 %v2349
        %v2798 = vunpack.c.l.bf16 %v2350
        %v2799 = vunpack.c.l.bf16 %v2351
        %v2800 = vunpack.c.l.bf16 %v2352
        %v2801 = vunpack.c.l.bf16 %v2353
        %v2802 = vunpack.c.l.bf16 %v2354
        %v2803 = vunpack.c.l.bf16 %v2355
        %v2804 = vunpack.c.l.bf16 %v2356
        %v2805 = vunpack.c.l.bf16 %v2357
        %v2806 = vunpack.c.l.bf16 %v2358
        %v2807 = vunpack.c.l.bf16 %v2359
        %v2808 = vunpack.c.l.bf16 %v2360
        %v2809 = vunpack.c.l.bf16 %v2361
        %v2810 = vunpack.c.l.bf16 %v2362
        %v2811 = vunpack.c.l.bf16 %v2363
        %v2812 = vunpack.c.l.bf16 %v2364
        %v2813 = vunpack.c.l.bf16 %v2365
        %v2814 = vunpack.c.l.bf16 %v2366
        %v2815 = vunpack.c.l.bf16 %v2367
        %v2816 = vunpack.c.l.bf16 %v2368
        %v2817 = vunpack.c.l.bf16 %v2369
        %v2818 = vunpack.c.l.bf16 %v2370
        %v2819 = vunpack.c.l.bf16 %v2371
        %v2820 = vunpack.c.l.bf16 %v2372
        %v2821 = vunpack.c.l.bf16 %v2373
        %v2822 = vunpack.c.l.bf16 %v2374
        %v2823 = vunpack.c.l.bf16 %v2375
        %v2824 = vunpack.c.l.bf16 %v2376
        %v2825 = vunpack.c.l.bf16 %v2377
        %v2826 = vunpack.c.l.bf16 %v2378
        %v2827 = vunpack.c.l.bf16 %v2379
        %v2828 = vunpack.c.l.bf16 %v2380
        %v2829 = vunpack.c.l.bf16 %v2381
        %v2830 = vunpack.c.l.bf16 %v2382
        %v2831 = vunpack.c.l.bf16 %v2383
        %v2832 = vunpack.c.l.bf16 %v2384
        %v2833 = vunpack.c.l.bf16 %v2385
        %v2834 = vunpack.c.l.bf16 %v2386
        %v2835 = vunpack.c.l.bf16 %v2387
        %v2836 = vunpack.c.l.bf16 %v2388
        %v2837 = vunpack.c.l.bf16 %v2389
        %v2838 = vunpack.c.l.bf16 %v2390
        %v2839 = vunpack.c.l.bf16 %v2391
        %v2840 = vunpack.c.l.bf16 %v2392
        %v2841 = vunpack.c.l.bf16 %v2393
        %v2842 = vunpack.c.l.bf16 %v2394
        %v2843 = vunpack.c.l.bf16 %v2395
        %v2844 = vunpack.c.l.bf16 %v2396
        %v2845 = vunpack.c.l.bf16 %v2397
        %v2846 = vunpack.c.l.bf16 %v2398
        %v2847 = vunpack.c.l.bf16 %v2399
        %v2848 = vunpack.c.l.bf16 %v2400
        %v2849 = vunpack.c.l.bf16 %v2401
        %v2850 = vunpack.c.l.bf16 %v2402
        %v2851 = vunpack.c.l.bf16 %v2403
        %v2852 = vunpack.c.l.bf16 %v2404
        %v2853 = vunpack.c.l.bf16 %v2405
        %v2854 = vunpack.c.l.bf16 %v2406
        %v2855 = vunpack.c.l.bf16 %v2407
        %v2856 = vunpack.c.l.bf16 %v2408
        %v2857 = vunpack.c.l.bf16 %v2409
        %v2858 = vunpack.c.l.bf16 %v2410
        %v2859 = vunpack.c.l.bf16 %v2411
        %v2860 = vunpack.c.l.bf16 %v2412
        %v2861 = vunpack.c.l.bf16 %v2413
        %v2862 = vunpack.c.l.bf16 %v2414
        %v2863 = vunpack.c.l.bf16 %v2415
        %v2864 = vunpack.c.l.bf16 %v2416
        %v2865 = vunpack.c.l.bf16 %v2417
        %v2866 = vunpack.c.l.bf16 %v2418
        %v2867 = vunpack.c.l.bf16 %v2419
        %v2868 = vunpack.c.l.bf16 %v2420
        %v2869 = vunpack.c.l.bf16 %v2421
        %v2870 = vunpack.c.l.bf16 %v2422
        %v2871 = vunpack.c.l.bf16 %v2423
        %v2872 = vunpack.c.l.bf16 %v2424
        %v2873 = vunpack.c.l.bf16 %v2425
        %v2874 = vunpack.c.l.bf16 %v2426
        %v2875 = vunpack.c.l.bf16 %v2427
        %v2876 = vunpack.c.l.bf16 %v2428
        %v2877 = vunpack.c.l.bf16 %v2429
        %v2878 = vunpack.c.l.bf16 %v2430
        %v2879 = vunpack.c.l.bf16 %v2431
        %v2880 = vunpack.c.l.bf16 %v2432
        %v2881 = vunpack.c.l.bf16 %v2433
        %v2882 = vunpack.c.l.bf16 %v2434
        %v2883 = vunpack.c.l.bf16 %v2435
        %v2884 = vunpack.c.l.bf16 %v2436
        %v2885 = vunpack.c.l.bf16 %v2437
        %v2886 = vunpack.c.l.bf16 %v2438
        %v2887 = vunpack.c.l.bf16 %v2439
        %v2888 = vunpack.c.l.bf16 %v2440
        %v2889 = vunpack.c.l.bf16 %v2441
        %v2890 = vunpack.c.l.bf16 %v2442
        %v2891 = vunpack.c.l.bf16 %v2443
        %v2892 = vunpack.c.l.bf16 %v2444
        %v2893 = vunpack.c.l.bf16 %v2445
        %v2894 = vunpack.c.l.bf16 %v2446
        %v2895 = vunpack.c.l.bf16 %v2447
        %v2896 = vunpack.c.l.bf16 %v2448
        %v2897 = vunpack.c.l.bf16 %v2449
        %v2898 = vunpack.c.l.bf16 %v2450
        %v2899 = vunpack.c.l.bf16 %v2451
        %v2900 = vunpack.c.l.bf16 %v2452
        %v2901 = vunpack.c.l.bf16 %v2453
        %v2902 = vunpack.c.l.bf16 %v2454
        %v2903 = vunpack.c.l.bf16 %v2455
        %v2904 = vunpack.c.l.bf16 %v2456
        %v2905 = vunpack.c.l.bf16 %v2457
        %v2906 = vunpack.c.l.bf16 %v2458
        %v2907 = vunpack.c.l.bf16 %v2459
        %v2908 = vunpack.c.l.bf16 %v2460
        %v2909 = vunpack.c.l.bf16 %v2461
        %v2910 = vunpack.c.l.bf16 %v2462
        %v2911 = vunpack.c.l.bf16 %v2463
        %v2912 = vunpack.c.l.bf16 %v2464
        %v2913 = vunpack.c.l.bf16 %v2465
        %v2914 = vunpack.c.l.bf16 %v2466
        %v2915 = vunpack.c.l.bf16 %v2467
        %v2916 = vunpack.c.l.bf16 %v2468
        %v2917 = vunpack.c.l.bf16 %v2469
        %v2918 = vunpack.c.l.bf16 %v2470
        %v2919 = vunpack.c.l.bf16 %v2471
        %v2920 = vunpack.c.l.bf16 %v2472
        %v2921 = vunpack.c.l.bf16 %v2473
        %v2922 = vunpack.c.l.bf16 %v2474
        %v2923 = vunpack.c.l.bf16 %v2475
        %v2924 = vunpack.c.l.bf16 %v2476
        %v2925 = vunpack.c.l.bf16 %v2477
        %v2926 = vunpack.c.l.bf16 %v2478
        %v2927 = vunpack.c.l.bf16 %v2479
        %v2928 = vunpack.c.l.bf16 %v2480
        %v2929 = vunpack.c.l.bf16 %v2481
        %v2930 = vunpack.c.l.bf16 %v2482
        %v2931 = vunpack.c.l.bf16 %v2483
        %v2932 = vunpack.c.l.bf16 %v2484
        %v2933 = vunpack.c.l.bf16 %v2485
        %v2934 = vunpack.c.l.bf16 %v2486
        %v2935 = vunpack.c.l.bf16 %v2487
        %v2936 = vunpack.c.l.bf16 %v2488
        %v2937 = vunpack.c.l.bf16 %v2489
        %v2938 = vunpack.c.l.bf16 %v2490
        %v2939 = vunpack.c.l.bf16 %v2491
        %v2940 = vunpack.c.l.bf16 %v2492
        %v2941 = vunpack.c.l.bf16 %v2493
        %v2942 = vunpack.c.l.bf16 %v2494
        %v2943 = vunpack.c.l.bf16 %v2495
        %v2944 = vunpack.c.l.bf16 %v2496
        %v2945 = vunpack.c.l.bf16 %v2497
        %v2946 = vunpack.c.l.bf16 %v2498
        %v2947 = vunpack.c.l.bf16 %v2499
        %v2948 = vunpack.c.l.bf16 %v2500
        %v2949 = vunpack.c.l.bf16 %v2501
        %v2950 = vunpack.c.l.bf16 %v2502
        %v2951 = vunpack.c.l.bf16 %v2503
        %v2952 = vunpack.c.l.bf16 %v2504
        %v2953 = vunpack.c.l.bf16 %v2505
        %v2954 = vunpack.c.l.bf16 %v2506
        %v2955 = vunpack.c.l.bf16 %v2507
        %v2956 = vunpack.c.l.bf16 %v2508
        %v2957 = vunpack.c.l.bf16 %v2509
        %v2958 = vunpack.c.l.bf16 %v2510
        %v2959 = vunpack.c.l.bf16 %v2511
        %v2960 = vunpack.c.l.bf16 %v2512
        %v2961 = vunpack.c.l.bf16 %v2513
        %v2962 = vunpack.c.l.bf16 %v2514
        %v2963 = vunpack.c.l.bf16 %v2515
        %v2964 = vunpack.c.l.bf16 %v2516
        %v2965 = vunpack.c.l.bf16 %v2517
        %v2966 = vunpack.c.l.bf16 %v2518
        %v2967 = vunpack.c.l.bf16 %v2519
        %v2968 = vunpack.c.l.bf16 %v2520
        %v2969 = vunpack.c.l.bf16 %v2521
        %v2970 = vunpack.c.l.bf16 %v2522
        %v2971 = vunpack.c.l.bf16 %v2523
        %v2972 = vunpack.c.l.bf16 %v2524
        %v2973 = vunpack.c.l.bf16 %v2525
        %v2974 = vunpack.c.l.bf16 %v2526
        %v2975 = vunpack.c.l.bf16 %v2527
        %v2976 = vunpack.c.l.bf16 %v2528
        %v2977 = vunpack.c.l.bf16 %v2529
        %v2978 = vunpack.c.l.bf16 %v2530
        %v2979 = vunpack.c.l.bf16 %v2531
        %v2980 = vunpack.c.l.bf16 %v2532
        %v2981 = vunpack.c.l.bf16 %v2533
        %v2982 = vunpack.c.l.bf16 %v2534
        %v2983 = vunpack.c.l.bf16 %v2535
        %v2984 = vunpack.c.l.bf16 %v2536
        %v2985 = vunpack.c.l.bf16 %v2537
        %vm2986 = vcmask 130048
        %v2987 = vsel %vm2986, %v2762, 0.0
        %2988 = vadd.xlane.f32.xlu0 %v2987
        %v2989 = vpop.xlane.xlu0 %2988
        %v2990 = vsel %vm2986, %v2763, 0.0
        %2991 = vadd.xlane.f32.xlu0 %v2990
        %v2992 = vpop.xlane.xlu0 %2991
        %v2993 = vsel %vm2986, %v2764, 0.0
        %2994 = vadd.xlane.f32.xlu0 %v2993
        %v2995 = vpop.xlane.xlu0 %2994
        %v2996 = vsel %vm2986, %v2765, 0.0
        %2997 = vadd.xlane.f32.xlu0 %v2996
        %v2998 = vpop.xlane.xlu0 %2997
        %v2999 = vsel %vm2986, %v2766, 0.0
        %3000 = vadd.xlane.f32.xlu0 %v2999
        %v3001 = vpop.xlane.xlu0 %3000
        %v3002 = vsel %vm2986, %v2767, 0.0
        %3003 = vadd.xlane.f32.xlu0 %v3002
        %v3004 = vpop.xlane.xlu0 %3003
        %v3005 = vsel %vm2986, %v2768, 0.0
        %3006 = vadd.xlane.f32.xlu0 %v3005
        %v3007 = vpop.xlane.xlu0 %3006
        %v3008 = vsel %vm2986, %v2769, 0.0
        %3009 = vadd.xlane.f32.xlu0 %v3008
        %v3010 = vpop.xlane.xlu0 %3009
        %v3011 = vsel %vm2986, %v2770, 0.0
        %3012 = vadd.xlane.f32.xlu0 %v3011
        %v3013 = vpop.xlane.xlu0 %3012
        %v3014 = vsel %vm2986, %v2771, 0.0
        %3015 = vadd.xlane.f32.xlu0 %v3014
        %v3016 = vpop.xlane.xlu0 %3015
        %v3017 = vsel %vm2986, %v2772, 0.0
        %3018 = vadd.xlane.f32.xlu0 %v3017
        %v3019 = vpop.xlane.xlu0 %3018
        %v3020 = vsel %vm2986, %v2773, 0.0
        %3021 = vadd.xlane.f32.xlu0 %v3020
        %v3022 = vpop.xlane.xlu0 %3021
        %v3023 = vsel %vm2986, %v2774, 0.0
        %3024 = vadd.xlane.f32.xlu0 %v3023
        %v3025 = vpop.xlane.xlu0 %3024
        %v3026 = vsel %vm2986, %v2775, 0.0
        %3027 = vadd.xlane.f32.xlu0 %v3026
        %v3028 = vpop.xlane.xlu0 %3027
        %v3029 = vsel %vm2986, %v2776, 0.0
        %3030 = vadd.xlane.f32.xlu0 %v3029
        %v3031 = vpop.xlane.xlu0 %3030
        %v3032 = vsel %vm2986, %v2777, 0.0
        %3033 = vadd.xlane.f32.xlu0 %v3032
        %v3034 = vpop.xlane.xlu0 %3033
        %v3035 = vsel %vm2986, %v2778, 0.0
        %3036 = vadd.xlane.f32.xlu0 %v3035
        %v3037 = vpop.xlane.xlu0 %3036
        %v3038 = vsel %vm2986, %v2779, 0.0
        %3039 = vadd.xlane.f32.xlu0 %v3038
        %v3040 = vpop.xlane.xlu0 %3039
        %v3041 = vsel %vm2986, %v2780, 0.0
        %3042 = vadd.xlane.f32.xlu0 %v3041
        %v3043 = vpop.xlane.xlu0 %3042
        %v3044 = vsel %vm2986, %v2781, 0.0
        %3045 = vadd.xlane.f32.xlu0 %v3044
        %v3046 = vpop.xlane.xlu0 %3045
        %v3047 = vsel %vm2986, %v2782, 0.0
        %3048 = vadd.xlane.f32.xlu0 %v3047
        %v3049 = vpop.xlane.xlu0 %3048
        %v3050 = vsel %vm2986, %v2783, 0.0
        %3051 = vadd.xlane.f32.xlu0 %v3050
        %v3052 = vpop.xlane.xlu0 %3051
        %v3053 = vsel %vm2986, %v2784, 0.0
        %3054 = vadd.xlane.f32.xlu0 %v3053
        %v3055 = vpop.xlane.xlu0 %3054
        %v3056 = vsel %vm2986, %v2785, 0.0
        %3057 = vadd.xlane.f32.xlu0 %v3056
        %v3058 = vpop.xlane.xlu0 %3057
        %v3059 = vsel %vm2986, %v2786, 0.0
        %3060 = vadd.xlane.f32.xlu0 %v3059
        %v3061 = vpop.xlane.xlu0 %3060
        %v3062 = vsel %vm2986, %v2787, 0.0
        %3063 = vadd.xlane.f32.xlu0 %v3062
        %v3064 = vpop.xlane.xlu0 %3063
        %v3065 = vsel %vm2986, %v2788, 0.0
        %3066 = vadd.xlane.f32.xlu0 %v3065
        %v3067 = vpop.xlane.xlu0 %3066
        %v3068 = vsel %vm2986, %v2789, 0.0
        %3069 = vadd.xlane.f32.xlu0 %v3068
        %v3070 = vpop.xlane.xlu0 %3069
        %v3071 = vsel %vm2986, %v2790, 0.0
        %3072 = vadd.xlane.f32.xlu0 %v3071
        %v3073 = vpop.xlane.xlu0 %3072
        %v3074 = vsel %vm2986, %v2791, 0.0
        %3075 = vadd.xlane.f32.xlu0 %v3074
        %v3076 = vpop.xlane.xlu0 %3075
        %v3077 = vsel %vm2986, %v2792, 0.0
        %3078 = vadd.xlane.f32.xlu0 %v3077
        %v3079 = vpop.xlane.xlu0 %3078
        %v3080 = vsel %vm2986, %v2793, 0.0
        %3081 = vadd.xlane.f32.xlu0 %v3080
        %v3082 = vpop.xlane.xlu0 %3081
        %v3083 = vsel %vm2986, %v2794, 0.0
        %3084 = vadd.xlane.f32.xlu0 %v3083
        %v3085 = vpop.xlane.xlu0 %3084
        %v3086 = vsel %vm2986, %v2795, 0.0
        %3087 = vadd.xlane.f32.xlu0 %v3086
        %v3088 = vpop.xlane.xlu0 %3087
        %v3089 = vsel %vm2986, %v2796, 0.0
        %3090 = vadd.xlane.f32.xlu0 %v3089
        %v3091 = vpop.xlane.xlu0 %3090
        %v3092 = vsel %vm2986, %v2797, 0.0
        %3093 = vadd.xlane.f32.xlu0 %v3092
        %v3094 = vpop.xlane.xlu0 %3093
        %v3095 = vsel %vm2986, %v2798, 0.0
        %3096 = vadd.xlane.f32.xlu0 %v3095
        %v3097 = vpop.xlane.xlu0 %3096
        %v3098 = vsel %vm2986, %v2799, 0.0
        %3099 = vadd.xlane.f32.xlu0 %v3098
        %v3100 = vpop.xlane.xlu0 %3099
        %v3101 = vsel %vm2986, %v2800, 0.0
        %3102 = vadd.xlane.f32.xlu0 %v3101
        %v3103 = vpop.xlane.xlu0 %3102
        %v3104 = vsel %vm2986, %v2801, 0.0
        %3105 = vadd.xlane.f32.xlu0 %v3104
        %v3106 = vpop.xlane.xlu0 %3105
        %v3107 = vsel %vm2986, %v2802, 0.0
        %3108 = vadd.xlane.f32.xlu0 %v3107
        %v3109 = vpop.xlane.xlu0 %3108
        %v3110 = vsel %vm2986, %v2803, 0.0
        %3111 = vadd.xlane.f32.xlu0 %v3110
        %v3112 = vpop.xlane.xlu0 %3111
        %v3113 = vsel %vm2986, %v2804, 0.0
        %3114 = vadd.xlane.f32.xlu0 %v3113
        %v3115 = vpop.xlane.xlu0 %3114
        %v3116 = vsel %vm2986, %v2805, 0.0
        %3117 = vadd.xlane.f32.xlu0 %v3116
        %v3118 = vpop.xlane.xlu0 %3117
        %v3119 = vsel %vm2986, %v2806, 0.0
        %3120 = vadd.xlane.f32.xlu0 %v3119
        %v3121 = vpop.xlane.xlu0 %3120
        %v3122 = vsel %vm2986, %v2807, 0.0
        %3123 = vadd.xlane.f32.xlu0 %v3122
        %v3124 = vpop.xlane.xlu0 %3123
        %v3125 = vsel %vm2986, %v2808, 0.0
        %3126 = vadd.xlane.f32.xlu0 %v3125
        %v3127 = vpop.xlane.xlu0 %3126
        %v3128 = vsel %vm2986, %v2809, 0.0
        %3129 = vadd.xlane.f32.xlu0 %v3128
        %v3130 = vpop.xlane.xlu0 %3129
        %v3131 = vsel %vm2986, %v2810, 0.0
        %3132 = vadd.xlane.f32.xlu0 %v3131
        %v3133 = vpop.xlane.xlu0 %3132
        %v3134 = vsel %vm2986, %v2811, 0.0
        %3135 = vadd.xlane.f32.xlu0 %v3134
        %v3136 = vpop.xlane.xlu0 %3135
        %v3137 = vsel %vm2986, %v2812, 0.0
        %3138 = vadd.xlane.f32.xlu0 %v3137
        %v3139 = vpop.xlane.xlu0 %3138
        %v3140 = vsel %vm2986, %v2813, 0.0
        %3141 = vadd.xlane.f32.xlu0 %v3140
        %v3142 = vpop.xlane.xlu0 %3141
        %v3143 = vsel %vm2986, %v2814, 0.0
        %3144 = vadd.xlane.f32.xlu0 %v3143
        %v3145 = vpop.xlane.xlu0 %3144
        %v3146 = vsel %vm2986, %v2815, 0.0
        %3147 = vadd.xlane.f32.xlu0 %v3146
        %v3148 = vpop.xlane.xlu0 %3147
        %v3149 = vsel %vm2986, %v2816, 0.0
        %3150 = vadd.xlane.f32.xlu0 %v3149
        %v3151 = vpop.xlane.xlu0 %3150
        %v3152 = vsel %vm2986, %v2817, 0.0
        %3153 = vadd.xlane.f32.xlu0 %v3152
        %v3154 = vpop.xlane.xlu0 %3153
        %v3155 = vsel %vm2986, %v2818, 0.0
        %3156 = vadd.xlane.f32.xlu0 %v3155
        %v3157 = vpop.xlane.xlu0 %3156
        %v3158 = vsel %vm2986, %v2819, 0.0
        %3159 = vadd.xlane.f32.xlu0 %v3158
        %v3160 = vpop.xlane.xlu0 %3159
        %v3161 = vsel %vm2986, %v2820, 0.0
        %3162 = vadd.xlane.f32.xlu0 %v3161
        %v3163 = vpop.xlane.xlu0 %3162
        %v3164 = vsel %vm2986, %v2821, 0.0
        %3165 = vadd.xlane.f32.xlu0 %v3164
        %v3166 = vpop.xlane.xlu0 %3165
        %v3167 = vsel %vm2986, %v2822, 0.0
        %3168 = vadd.xlane.f32.xlu0 %v3167
        %v3169 = vpop.xlane.xlu0 %3168
        %v3170 = vsel %vm2986, %v2823, 0.0
        %3171 = vadd.xlane.f32.xlu0 %v3170
        %v3172 = vpop.xlane.xlu0 %3171
        %v3173 = vsel %vm2986, %v2824, 0.0
        %3174 = vadd.xlane.f32.xlu0 %v3173
        %v3175 = vpop.xlane.xlu0 %3174
        %v3176 = vsel %vm2986, %v2825, 0.0
        %3177 = vadd.xlane.f32.xlu0 %v3176
        %v3178 = vpop.xlane.xlu0 %3177
        %v3179 = vsel %vm2986, %v2826, 0.0
        %3180 = vadd.xlane.f32.xlu0 %v3179
        %v3181 = vpop.xlane.xlu0 %3180
        %v3182 = vsel %vm2986, %v2827, 0.0
        %3183 = vadd.xlane.f32.xlu0 %v3182
        %v3184 = vpop.xlane.xlu0 %3183
        %v3185 = vsel %vm2986, %v2828, 0.0
        %3186 = vadd.xlane.f32.xlu0 %v3185
        %v3187 = vpop.xlane.xlu0 %3186
        %v3188 = vsel %vm2986, %v2829, 0.0
        %3189 = vadd.xlane.f32.xlu0 %v3188
        %v3190 = vpop.xlane.xlu0 %3189
        %v3191 = vsel %vm2986, %v2830, 0.0
        %3192 = vadd.xlane.f32.xlu0 %v3191
        %v3193 = vpop.xlane.xlu0 %3192
        %v3194 = vsel %vm2986, %v2831, 0.0
        %3195 = vadd.xlane.f32.xlu0 %v3194
        %v3196 = vpop.xlane.xlu0 %3195
        %v3197 = vsel %vm2986, %v2832, 0.0
        %3198 = vadd.xlane.f32.xlu0 %v3197
        %v3199 = vpop.xlane.xlu0 %3198
        %v3200 = vsel %vm2986, %v2833, 0.0
        %3201 = vadd.xlane.f32.xlu0 %v3200
        %v3202 = vpop.xlane.xlu0 %3201
        %v3203 = vsel %vm2986, %v2834, 0.0
        %3204 = vadd.xlane.f32.xlu0 %v3203
        %v3205 = vpop.xlane.xlu0 %3204
        %v3206 = vsel %vm2986, %v2835, 0.0
        %3207 = vadd.xlane.f32.xlu0 %v3206
        %v3208 = vpop.xlane.xlu0 %3207
        %v3209 = vsel %vm2986, %v2836, 0.0
        %3210 = vadd.xlane.f32.xlu0 %v3209
        %v3211 = vpop.xlane.xlu0 %3210
        %v3212 = vsel %vm2986, %v2837, 0.0
        %3213 = vadd.xlane.f32.xlu0 %v3212
        %v3214 = vpop.xlane.xlu0 %3213
        %v3215 = vsel %vm2986, %v2838, 0.0
        %3216 = vadd.xlane.f32.xlu0 %v3215
        %v3217 = vpop.xlane.xlu0 %3216
        %v3218 = vsel %vm2986, %v2839, 0.0
        %3219 = vadd.xlane.f32.xlu0 %v3218
        %v3220 = vpop.xlane.xlu0 %3219
        %v3221 = vsel %vm2986, %v2840, 0.0
        %3222 = vadd.xlane.f32.xlu0 %v3221
        %v3223 = vpop.xlane.xlu0 %3222
        %v3224 = vsel %vm2986, %v2841, 0.0
        %3225 = vadd.xlane.f32.xlu0 %v3224
        %v3226 = vpop.xlane.xlu0 %3225
        %v3227 = vsel %vm2986, %v2842, 0.0
        %3228 = vadd.xlane.f32.xlu0 %v3227
        %v3229 = vpop.xlane.xlu0 %3228
        %v3230 = vsel %vm2986, %v2843, 0.0
        %3231 = vadd.xlane.f32.xlu0 %v3230
        %v3232 = vpop.xlane.xlu0 %3231
        %v3233 = vsel %vm2986, %v2844, 0.0
        %3234 = vadd.xlane.f32.xlu0 %v3233
        %v3235 = vpop.xlane.xlu0 %3234
        %v3236 = vsel %vm2986, %v2845, 0.0
        %3237 = vadd.xlane.f32.xlu0 %v3236
        %v3238 = vpop.xlane.xlu0 %3237
        %v3239 = vsel %vm2986, %v2846, 0.0
        %3240 = vadd.xlane.f32.xlu0 %v3239
        %v3241 = vpop.xlane.xlu0 %3240
        %v3242 = vsel %vm2986, %v2847, 0.0
        %3243 = vadd.xlane.f32.xlu0 %v3242
        %v3244 = vpop.xlane.xlu0 %3243
        %v3245 = vsel %vm2986, %v2848, 0.0
        %3246 = vadd.xlane.f32.xlu0 %v3245
        %v3247 = vpop.xlane.xlu0 %3246
        %v3248 = vsel %vm2986, %v2849, 0.0
        %3249 = vadd.xlane.f32.xlu0 %v3248
        %v3250 = vpop.xlane.xlu0 %3249
        %v3251 = vsel %vm2986, %v2850, 0.0
        %3252 = vadd.xlane.f32.xlu0 %v3251
        %v3253 = vpop.xlane.xlu0 %3252
        %v3254 = vsel %vm2986, %v2851, 0.0
        %3255 = vadd.xlane.f32.xlu0 %v3254
        %v3256 = vpop.xlane.xlu0 %3255
        %v3257 = vsel %vm2986, %v2852, 0.0
        %3258 = vadd.xlane.f32.xlu0 %v3257
        %v3259 = vpop.xlane.xlu0 %3258
        %v3260 = vsel %vm2986, %v2853, 0.0
        %3261 = vadd.xlane.f32.xlu0 %v3260
        %v3262 = vpop.xlane.xlu0 %3261
        %v3263 = vsel %vm2986, %v2854, 0.0
        %3264 = vadd.xlane.f32.xlu0 %v3263
        %v3265 = vpop.xlane.xlu0 %3264
        %v3266 = vsel %vm2986, %v2855, 0.0
        %3267 = vadd.xlane.f32.xlu0 %v3266
        %v3268 = vpop.xlane.xlu0 %3267
        %v3269 = vsel %vm2986, %v2856, 0.0
        %3270 = vadd.xlane.f32.xlu0 %v3269
        %v3271 = vpop.xlane.xlu0 %3270
        %v3272 = vsel %vm2986, %v2857, 0.0
        %3273 = vadd.xlane.f32.xlu0 %v3272
        %v3274 = vpop.xlane.xlu0 %3273
        %v3275 = vsel %vm2986, %v2858, 0.0
        %3276 = vadd.xlane.f32.xlu0 %v3275
        %v3277 = vpop.xlane.xlu0 %3276
        %v3278 = vsel %vm2986, %v2859, 0.0
        %3279 = vadd.xlane.f32.xlu0 %v3278
        %v3280 = vpop.xlane.xlu0 %3279
        %v3281 = vsel %vm2986, %v2860, 0.0
        %3282 = vadd.xlane.f32.xlu0 %v3281
        %v3283 = vpop.xlane.xlu0 %3282
        %v3284 = vsel %vm2986, %v2861, 0.0
        %3285 = vadd.xlane.f32.xlu0 %v3284
        %v3286 = vpop.xlane.xlu0 %3285
        %v3287 = vsel %vm2986, %v2862, 0.0
        %3288 = vadd.xlane.f32.xlu0 %v3287
        %v3289 = vpop.xlane.xlu0 %3288
        %v3290 = vsel %vm2986, %v2863, 0.0
        %3291 = vadd.xlane.f32.xlu0 %v3290
        %v3292 = vpop.xlane.xlu0 %3291
        %v3293 = vsel %vm2986, %v2864, 0.0
        %3294 = vadd.xlane.f32.xlu0 %v3293
        %v3295 = vpop.xlane.xlu0 %3294
        %v3296 = vsel %vm2986, %v2865, 0.0
        %3297 = vadd.xlane.f32.xlu0 %v3296
        %v3298 = vpop.xlane.xlu0 %3297
        %v3299 = vsel %vm2986, %v2866, 0.0
        %3300 = vadd.xlane.f32.xlu0 %v3299
        %v3301 = vpop.xlane.xlu0 %3300
        %v3302 = vsel %vm2986, %v2867, 0.0
        %3303 = vadd.xlane.f32.xlu0 %v3302
        %v3304 = vpop.xlane.xlu0 %3303
        %v3305 = vsel %vm2986, %v2868, 0.0
        %3306 = vadd.xlane.f32.xlu0 %v3305
        %v3307 = vpop.xlane.xlu0 %3306
        %v3308 = vsel %vm2986, %v2869, 0.0
        %3309 = vadd.xlane.f32.xlu0 %v3308
        %v3310 = vpop.xlane.xlu0 %3309
        %v3311 = vsel %vm2986, %v2870, 0.0
        %3312 = vadd.xlane.f32.xlu0 %v3311
        %v3313 = vpop.xlane.xlu0 %3312
        %v3314 = vsel %vm2986, %v2871, 0.0
        %3315 = vadd.xlane.f32.xlu0 %v3314
        %v3316 = vpop.xlane.xlu0 %3315
        %v3317 = vsel %vm2986, %v2872, 0.0
        %3318 = vadd.xlane.f32.xlu0 %v3317
        %v3319 = vpop.xlane.xlu0 %3318
        %v3320 = vsel %vm2986, %v2873, 0.0
        %3321 = vadd.xlane.f32.xlu0 %v3320
        %v3322 = vpop.xlane.xlu0 %3321
        %v3323 = vsel %vm2986, %v2874, 0.0
        %3324 = vadd.xlane.f32.xlu0 %v3323
        %v3325 = vpop.xlane.xlu0 %3324
        %v3326 = vsel %vm2986, %v2875, 0.0
        %3327 = vadd.xlane.f32.xlu0 %v3326
        %v3328 = vpop.xlane.xlu0 %3327
        %v3329 = vsel %vm2986, %v2876, 0.0
        %3330 = vadd.xlane.f32.xlu0 %v3329
        %v3331 = vpop.xlane.xlu0 %3330
        %v3332 = vsel %vm2986, %v2877, 0.0
        %3333 = vadd.xlane.f32.xlu0 %v3332
        %v3334 = vpop.xlane.xlu0 %3333
        %v3335 = vsel %vm2986, %v2878, 0.0
        %3336 = vadd.xlane.f32.xlu0 %v3335
        %v3337 = vpop.xlane.xlu0 %3336
        %v3338 = vsel %vm2986, %v2879, 0.0
        %3339 = vadd.xlane.f32.xlu0 %v3338
        %v3340 = vpop.xlane.xlu0 %3339
        %v3341 = vsel %vm2986, %v2880, 0.0
        %3342 = vadd.xlane.f32.xlu0 %v3341
        %v3343 = vpop.xlane.xlu0 %3342
        %v3344 = vsel %vm2986, %v2881, 0.0
        %3345 = vadd.xlane.f32.xlu0 %v3344
        %v3346 = vpop.xlane.xlu0 %3345
        %v3347 = vsel %vm2986, %v2882, 0.0
        %3348 = vadd.xlane.f32.xlu0 %v3347
        %v3349 = vpop.xlane.xlu0 %3348
        %v3350 = vsel %vm2986, %v2883, 0.0
        %3351 = vadd.xlane.f32.xlu0 %v3350
        %v3352 = vpop.xlane.xlu0 %3351
        %v3353 = vsel %vm2986, %v2884, 0.0
        %3354 = vadd.xlane.f32.xlu0 %v3353
        %v3355 = vpop.xlane.xlu0 %3354
        %v3356 = vsel %vm2986, %v2885, 0.0
        %3357 = vadd.xlane.f32.xlu0 %v3356
        %v3358 = vpop.xlane.xlu0 %3357
        %v3359 = vsel %vm2986, %v2886, 0.0
        %3360 = vadd.xlane.f32.xlu0 %v3359
        %v3361 = vpop.xlane.xlu0 %3360
        %v3362 = vsel %vm2986, %v2887, 0.0
        %3363 = vadd.xlane.f32.xlu0 %v3362
        %v3364 = vpop.xlane.xlu0 %3363
        %v3365 = vsel %vm2986, %v2888, 0.0
        %3366 = vadd.xlane.f32.xlu0 %v3365
        %v3367 = vpop.xlane.xlu0 %3366
        %v3368 = vsel %vm2986, %v2889, 0.0
        %3369 = vadd.xlane.f32.xlu0 %v3368
        %v3370 = vpop.xlane.xlu0 %3369
        %v3371 = vsel %vm2986, %v2890, 0.0
        %3372 = vadd.xlane.f32.xlu0 %v3371
        %v3373 = vpop.xlane.xlu0 %3372
        %v3374 = vsel %vm2986, %v2891, 0.0
        %3375 = vadd.xlane.f32.xlu0 %v3374
        %v3376 = vpop.xlane.xlu0 %3375
        %v3377 = vsel %vm2986, %v2892, 0.0
        %3378 = vadd.xlane.f32.xlu0 %v3377
        %v3379 = vpop.xlane.xlu0 %3378
        %v3380 = vsel %vm2986, %v2893, 0.0
        %3381 = vadd.xlane.f32.xlu0 %v3380
        %v3382 = vpop.xlane.xlu0 %3381
        %v3383 = vsel %vm2986, %v2894, 0.0
        %3384 = vadd.xlane.f32.xlu0 %v3383
        %v3385 = vpop.xlane.xlu0 %3384
        %v3386 = vsel %vm2986, %v2895, 0.0
        %3387 = vadd.xlane.f32.xlu0 %v3386
        %v3388 = vpop.xlane.xlu0 %3387
        %v3389 = vsel %vm2986, %v2896, 0.0
        %3390 = vadd.xlane.f32.xlu0 %v3389
        %v3391 = vpop.xlane.xlu0 %3390
        %v3392 = vsel %vm2986, %v2897, 0.0
        %3393 = vadd.xlane.f32.xlu0 %v3392
        %v3394 = vpop.xlane.xlu0 %3393
        %v3395 = vsel %vm2986, %v2898, 0.0
        %3396 = vadd.xlane.f32.xlu0 %v3395
        %v3397 = vpop.xlane.xlu0 %3396
        %v3398 = vsel %vm2986, %v2899, 0.0
        %3399 = vadd.xlane.f32.xlu0 %v3398
        %v3400 = vpop.xlane.xlu0 %3399
        %v3401 = vsel %vm2986, %v2900, 0.0
        %3402 = vadd.xlane.f32.xlu0 %v3401
        %v3403 = vpop.xlane.xlu0 %3402
        %v3404 = vsel %vm2986, %v2901, 0.0
        %3405 = vadd.xlane.f32.xlu0 %v3404
        %v3406 = vpop.xlane.xlu0 %3405
        %v3407 = vsel %vm2986, %v2902, 0.0
        %3408 = vadd.xlane.f32.xlu0 %v3407
        %v3409 = vpop.xlane.xlu0 %3408
        %v3410 = vsel %vm2986, %v2903, 0.0
        %3411 = vadd.xlane.f32.xlu0 %v3410
        %v3412 = vpop.xlane.xlu0 %3411
        %v3413 = vsel %vm2986, %v2904, 0.0
        %3414 = vadd.xlane.f32.xlu0 %v3413
        %v3415 = vpop.xlane.xlu0 %3414
        %v3416 = vsel %vm2986, %v2905, 0.0
        %3417 = vadd.xlane.f32.xlu0 %v3416
        %v3418 = vpop.xlane.xlu0 %3417
        %v3419 = vsel %vm2986, %v2906, 0.0
        %3420 = vadd.xlane.f32.xlu0 %v3419
        %v3421 = vpop.xlane.xlu0 %3420
        %v3422 = vsel %vm2986, %v2907, 0.0
        %3423 = vadd.xlane.f32.xlu0 %v3422
        %v3424 = vpop.xlane.xlu0 %3423
        %v3425 = vsel %vm2986, %v2908, 0.0
        %3426 = vadd.xlane.f32.xlu0 %v3425
        %v3427 = vpop.xlane.xlu0 %3426
        %v3428 = vsel %vm2986, %v2909, 0.0
        %3429 = vadd.xlane.f32.xlu0 %v3428
        %v3430 = vpop.xlane.xlu0 %3429
        %v3431 = vsel %vm2986, %v2910, 0.0
        %3432 = vadd.xlane.f32.xlu0 %v3431
        %v3433 = vpop.xlane.xlu0 %3432
        %v3434 = vsel %vm2986, %v2911, 0.0
        %3435 = vadd.xlane.f32.xlu0 %v3434
        %v3436 = vpop.xlane.xlu0 %3435
        %v3437 = vsel %vm2986, %v2912, 0.0
        %3438 = vadd.xlane.f32.xlu0 %v3437
        %v3439 = vpop.xlane.xlu0 %3438
        %v3440 = vsel %vm2986, %v2913, 0.0
        %3441 = vadd.xlane.f32.xlu0 %v3440
        %v3442 = vpop.xlane.xlu0 %3441
        %v3443 = vsel %vm2986, %v2914, 0.0
        %3444 = vadd.xlane.f32.xlu0 %v3443
        %v3445 = vpop.xlane.xlu0 %3444
        %v3446 = vsel %vm2986, %v2915, 0.0
        %3447 = vadd.xlane.f32.xlu0 %v3446
        %v3448 = vpop.xlane.xlu0 %3447
        %v3449 = vsel %vm2986, %v2916, 0.0
        %3450 = vadd.xlane.f32.xlu0 %v3449
        %v3451 = vpop.xlane.xlu0 %3450
        %v3452 = vsel %vm2986, %v2917, 0.0
        %3453 = vadd.xlane.f32.xlu0 %v3452
        %v3454 = vpop.xlane.xlu0 %3453
        %v3455 = vsel %vm2986, %v2918, 0.0
        %3456 = vadd.xlane.f32.xlu0 %v3455
        %v3457 = vpop.xlane.xlu0 %3456
        %v3458 = vsel %vm2986, %v2919, 0.0
        %3459 = vadd.xlane.f32.xlu0 %v3458
        %v3460 = vpop.xlane.xlu0 %3459
        %v3461 = vsel %vm2986, %v2920, 0.0
        %3462 = vadd.xlane.f32.xlu0 %v3461
        %v3463 = vpop.xlane.xlu0 %3462
        %v3464 = vsel %vm2986, %v2921, 0.0
        %3465 = vadd.xlane.f32.xlu0 %v3464
        %v3466 = vpop.xlane.xlu0 %3465
        %v3467 = vsel %vm2986, %v2922, 0.0
        %3468 = vadd.xlane.f32.xlu0 %v3467
        %v3469 = vpop.xlane.xlu0 %3468
        %v3470 = vsel %vm2986, %v2923, 0.0
        %3471 = vadd.xlane.f32.xlu0 %v3470
        %v3472 = vpop.xlane.xlu0 %3471
        %v3473 = vsel %vm2986, %v2924, 0.0
        %3474 = vadd.xlane.f32.xlu0 %v3473
        %v3475 = vpop.xlane.xlu0 %3474
        %v3476 = vsel %vm2986, %v2925, 0.0
        %3477 = vadd.xlane.f32.xlu0 %v3476
        %v3478 = vpop.xlane.xlu0 %3477
        %v3479 = vsel %vm2986, %v2926, 0.0
        %3480 = vadd.xlane.f32.xlu0 %v3479
        %v3481 = vpop.xlane.xlu0 %3480
        %v3482 = vsel %vm2986, %v2927, 0.0
        %3483 = vadd.xlane.f32.xlu0 %v3482
        %v3484 = vpop.xlane.xlu0 %3483
        %v3485 = vsel %vm2986, %v2928, 0.0
        %3486 = vadd.xlane.f32.xlu0 %v3485
        %v3487 = vpop.xlane.xlu0 %3486
        %v3488 = vsel %vm2986, %v2929, 0.0
        %3489 = vadd.xlane.f32.xlu0 %v3488
        %v3490 = vpop.xlane.xlu0 %3489
        %v3491 = vsel %vm2986, %v2930, 0.0
        %3492 = vadd.xlane.f32.xlu0 %v3491
        %v3493 = vpop.xlane.xlu0 %3492
        %v3494 = vsel %vm2986, %v2931, 0.0
        %3495 = vadd.xlane.f32.xlu0 %v3494
        %v3496 = vpop.xlane.xlu0 %3495
        %v3497 = vsel %vm2986, %v2932, 0.0
        %3498 = vadd.xlane.f32.xlu0 %v3497
        %v3499 = vpop.xlane.xlu0 %3498
        %v3500 = vsel %vm2986, %v2933, 0.0
        %3501 = vadd.xlane.f32.xlu0 %v3500
        %v3502 = vpop.xlane.xlu0 %3501
        %v3503 = vsel %vm2986, %v2934, 0.0
        %3504 = vadd.xlane.f32.xlu0 %v3503
        %v3505 = vpop.xlane.xlu0 %3504
        %v3506 = vsel %vm2986, %v2935, 0.0
        %3507 = vadd.xlane.f32.xlu0 %v3506
        %v3508 = vpop.xlane.xlu0 %3507
        %v3509 = vsel %vm2986, %v2936, 0.0
        %3510 = vadd.xlane.f32.xlu0 %v3509
        %v3511 = vpop.xlane.xlu0 %3510
        %v3512 = vsel %vm2986, %v2937, 0.0
        %3513 = vadd.xlane.f32.xlu0 %v3512
        %v3514 = vpop.xlane.xlu0 %3513
        %v3515 = vsel %vm2986, %v2938, 0.0
        %3516 = vadd.xlane.f32.xlu0 %v3515
        %v3517 = vpop.xlane.xlu0 %3516
        %v3518 = vsel %vm2986, %v2939, 0.0
        %3519 = vadd.xlane.f32.xlu0 %v3518
        %v3520 = vpop.xlane.xlu0 %3519
        %v3521 = vsel %vm2986, %v2940, 0.0
        %3522 = vadd.xlane.f32.xlu0 %v3521
        %v3523 = vpop.xlane.xlu0 %3522
        %v3524 = vsel %vm2986, %v2941, 0.0
        %3525 = vadd.xlane.f32.xlu0 %v3524
        %v3526 = vpop.xlane.xlu0 %3525
        %v3527 = vsel %vm2986, %v2942, 0.0
        %3528 = vadd.xlane.f32.xlu0 %v3527
        %v3529 = vpop.xlane.xlu0 %3528
        %v3530 = vsel %vm2986, %v2943, 0.0
        %3531 = vadd.xlane.f32.xlu0 %v3530
        %v3532 = vpop.xlane.xlu0 %3531
        %v3533 = vsel %vm2986, %v2944, 0.0
        %3534 = vadd.xlane.f32.xlu0 %v3533
        %v3535 = vpop.xlane.xlu0 %3534
        %v3536 = vsel %vm2986, %v2945, 0.0
        %3537 = vadd.xlane.f32.xlu0 %v3536
        %v3538 = vpop.xlane.xlu0 %3537
        %v3539 = vsel %vm2986, %v2946, 0.0
        %3540 = vadd.xlane.f32.xlu0 %v3539
        %v3541 = vpop.xlane.xlu0 %3540
        %v3542 = vsel %vm2986, %v2947, 0.0
        %3543 = vadd.xlane.f32.xlu0 %v3542
        %v3544 = vpop.xlane.xlu0 %3543
        %v3545 = vsel %vm2986, %v2948, 0.0
        %3546 = vadd.xlane.f32.xlu0 %v3545
        %v3547 = vpop.xlane.xlu0 %3546
        %v3548 = vsel %vm2986, %v2949, 0.0
        %3549 = vadd.xlane.f32.xlu0 %v3548
        %v3550 = vpop.xlane.xlu0 %3549
        %v3551 = vsel %vm2986, %v2950, 0.0
        %3552 = vadd.xlane.f32.xlu0 %v3551
        %v3553 = vpop.xlane.xlu0 %3552
        %v3554 = vsel %vm2986, %v2951, 0.0
        %3555 = vadd.xlane.f32.xlu0 %v3554
        %v3556 = vpop.xlane.xlu0 %3555
        %v3557 = vsel %vm2986, %v2952, 0.0
        %3558 = vadd.xlane.f32.xlu0 %v3557
        %v3559 = vpop.xlane.xlu0 %3558
        %v3560 = vsel %vm2986, %v2953, 0.0
        %3561 = vadd.xlane.f32.xlu0 %v3560
        %v3562 = vpop.xlane.xlu0 %3561
        %v3563 = vsel %vm2986, %v2954, 0.0
        %3564 = vadd.xlane.f32.xlu0 %v3563
        %v3565 = vpop.xlane.xlu0 %3564
        %v3566 = vsel %vm2986, %v2955, 0.0
        %3567 = vadd.xlane.f32.xlu0 %v3566
        %v3568 = vpop.xlane.xlu0 %3567
        %v3569 = vsel %vm2986, %v2956, 0.0
        %3570 = vadd.xlane.f32.xlu0 %v3569
        %v3571 = vpop.xlane.xlu0 %3570
        %v3572 = vsel %vm2986, %v2957, 0.0
        %3573 = vadd.xlane.f32.xlu0 %v3572
        %v3574 = vpop.xlane.xlu0 %3573
        %v3575 = vsel %vm2986, %v2958, 0.0
        %3576 = vadd.xlane.f32.xlu0 %v3575
        %v3577 = vpop.xlane.xlu0 %3576
        %v3578 = vsel %vm2986, %v2959, 0.0
        %3579 = vadd.xlane.f32.xlu0 %v3578
        %v3580 = vpop.xlane.xlu0 %3579
        %v3581 = vsel %vm2986, %v2960, 0.0
        %3582 = vadd.xlane.f32.xlu0 %v3581
        %v3583 = vpop.xlane.xlu0 %3582
        %v3584 = vsel %vm2986, %v2961, 0.0
        %3585 = vadd.xlane.f32.xlu0 %v3584
        %v3586 = vpop.xlane.xlu0 %3585
        %v3587 = vsel %vm2986, %v2962, 0.0
        %3588 = vadd.xlane.f32.xlu0 %v3587
        %v3589 = vpop.xlane.xlu0 %3588
        %v3590 = vsel %vm2986, %v2963, 0.0
        %3591 = vadd.xlane.f32.xlu0 %v3590
        %v3592 = vpop.xlane.xlu0 %3591
        %v3593 = vsel %vm2986, %v2964, 0.0
        %3594 = vadd.xlane.f32.xlu0 %v3593
        %v3595 = vpop.xlane.xlu0 %3594
        %v3596 = vsel %vm2986, %v2965, 0.0
        %3597 = vadd.xlane.f32.xlu0 %v3596
        %v3598 = vpop.xlane.xlu0 %3597
        %v3599 = vsel %vm2986, %v2966, 0.0
        %3600 = vadd.xlane.f32.xlu0 %v3599
        %v3601 = vpop.xlane.xlu0 %3600
        %v3602 = vsel %vm2986, %v2967, 0.0
        %3603 = vadd.xlane.f32.xlu0 %v3602
        %v3604 = vpop.xlane.xlu0 %3603
        %v3605 = vsel %vm2986, %v2968, 0.0
        %3606 = vadd.xlane.f32.xlu0 %v3605
        %v3607 = vpop.xlane.xlu0 %3606
        %v3608 = vsel %vm2986, %v2969, 0.0
        %3609 = vadd.xlane.f32.xlu0 %v3608
        %v3610 = vpop.xlane.xlu0 %3609
        %v3611 = vsel %vm2986, %v2970, 0.0
        %3612 = vadd.xlane.f32.xlu0 %v3611
        %v3613 = vpop.xlane.xlu0 %3612
        %v3614 = vsel %vm2986, %v2971, 0.0
        %3615 = vadd.xlane.f32.xlu0 %v3614
        %v3616 = vpop.xlane.xlu0 %3615
        %v3617 = vsel %vm2986, %v2972, 0.0
        %3618 = vadd.xlane.f32.xlu0 %v3617
        %v3619 = vpop.xlane.xlu0 %3618
        %v3620 = vsel %vm2986, %v2973, 0.0
        %3621 = vadd.xlane.f32.xlu0 %v3620
        %v3622 = vpop.xlane.xlu0 %3621
        %v3623 = vsel %vm2986, %v2974, 0.0
        %3624 = vadd.xlane.f32.xlu0 %v3623
        %v3625 = vpop.xlane.xlu0 %3624
        %v3626 = vsel %vm2986, %v2975, 0.0
        %3627 = vadd.xlane.f32.xlu0 %v3626
        %v3628 = vpop.xlane.xlu0 %3627
        %v3629 = vsel %vm2986, %v2976, 0.0
        %3630 = vadd.xlane.f32.xlu0 %v3629
        %v3631 = vpop.xlane.xlu0 %3630
        %v3632 = vsel %vm2986, %v2977, 0.0
        %3633 = vadd.xlane.f32.xlu0 %v3632
        %v3634 = vpop.xlane.xlu0 %3633
        %v3635 = vsel %vm2986, %v2978, 0.0
        %3636 = vadd.xlane.f32.xlu0 %v3635
        %v3637 = vpop.xlane.xlu0 %3636
        %v3638 = vsel %vm2986, %v2979, 0.0
        %3639 = vadd.xlane.f32.xlu0 %v3638
        %v3640 = vpop.xlane.xlu0 %3639
        %v3641 = vsel %vm2986, %v2980, 0.0
        %3642 = vadd.xlane.f32.xlu0 %v3641
        %v3643 = vpop.xlane.xlu0 %3642
        %v3644 = vsel %vm2986, %v2981, 0.0
        %3645 = vadd.xlane.f32.xlu0 %v3644
        %v3646 = vpop.xlane.xlu0 %3645
        %v3647 = vsel %vm2986, %v2982, 0.0
        %3648 = vadd.xlane.f32.xlu0 %v3647
        %v3649 = vpop.xlane.xlu0 %3648
        %v3650 = vsel %vm2986, %v2983, 0.0
        %3651 = vadd.xlane.f32.xlu0 %v3650
        %v3652 = vpop.xlane.xlu0 %3651
        %v3653 = vsel %vm2986, %v2984, 0.0
        %3654 = vadd.xlane.f32.xlu0 %v3653
        %v3655 = vpop.xlane.xlu0 %3654
        %v3656 = vsel %vm2986, %v2985, 0.0
        %3657 = vadd.xlane.f32.xlu0 %v3656
        %v3658 = vpop.xlane.xlu0 %3657
        %v3659 = vadd.f32 %v1643, %v2989
        %v3660 = vadd.f32 %v1645, %v2992
        %v3661 = vadd.f32 %v1647, %v2995
        %v3662 = vadd.f32 %v1649, %v2998
        %v3663 = vadd.f32 %v1651, %v3001
        %v3664 = vadd.f32 %v1653, %v3004
        %v3665 = vadd.f32 %v1655, %v3007
        %v3666 = vadd.f32 %v1657, %v3010
        %v3667 = vadd.f32 %v1659, %v3013
        %v3668 = vadd.f32 %v1661, %v3016
        %v3669 = vadd.f32 %v1663, %v3019
        %v3670 = vadd.f32 %v1665, %v3022
        %v3671 = vadd.f32 %v1667, %v3025
        %v3672 = vadd.f32 %v1669, %v3028
        %v3673 = vadd.f32 %v1671, %v3031
        %v3674 = vadd.f32 %v1673, %v3034
        %v3675 = vadd.f32 %v1675, %v3037
        %v3676 = vadd.f32 %v1677, %v3040
        %v3677 = vadd.f32 %v1679, %v3043
        %v3678 = vadd.f32 %v1681, %v3046
        %v3679 = vadd.f32 %v1683, %v3049
        %v3680 = vadd.f32 %v1685, %v3052
        %v3681 = vadd.f32 %v1687, %v3055
        %v3682 = vadd.f32 %v1689, %v3058
        %v3683 = vadd.f32 %v1691, %v3061
        %v3684 = vadd.f32 %v1693, %v3064
        %v3685 = vadd.f32 %v1695, %v3067
        %v3686 = vadd.f32 %v1697, %v3070
        %v3687 = vadd.f32 %v1699, %v3073
        %v3688 = vadd.f32 %v1701, %v3076
        %v3689 = vadd.f32 %v1703, %v3079
        %v3690 = vadd.f32 %v1705, %v3082
        %v3691 = vadd.f32 %v1707, %v3085
        %v3692 = vadd.f32 %v1709, %v3088
        %v3693 = vadd.f32 %v1711, %v3091
        %v3694 = vadd.f32 %v1713, %v3094
        %v3695 = vadd.f32 %v1715, %v3097
        %v3696 = vadd.f32 %v1717, %v3100
        %v3697 = vadd.f32 %v1719, %v3103
        %v3698 = vadd.f32 %v1721, %v3106
        %v3699 = vadd.f32 %v1723, %v3109
        %v3700 = vadd.f32 %v1725, %v3112
        %v3701 = vadd.f32 %v1727, %v3115
        %v3702 = vadd.f32 %v1729, %v3118
        %v3703 = vadd.f32 %v1731, %v3121
        %v3704 = vadd.f32 %v1733, %v3124
        %v3705 = vadd.f32 %v1735, %v3127
        %v3706 = vadd.f32 %v1737, %v3130
        %v3707 = vadd.f32 %v1739, %v3133
        %v3708 = vadd.f32 %v1741, %v3136
        %v3709 = vadd.f32 %v1743, %v3139
        %v3710 = vadd.f32 %v1745, %v3142
        %v3711 = vadd.f32 %v1747, %v3145
        %v3712 = vadd.f32 %v1749, %v3148
        %v3713 = vadd.f32 %v1751, %v3151
        %v3714 = vadd.f32 %v1753, %v3154
        %v3715 = vadd.f32 %v1755, %v3157
        %v3716 = vadd.f32 %v1757, %v3160
        %v3717 = vadd.f32 %v1759, %v3163
        %v3718 = vadd.f32 %v1761, %v3166
        %v3719 = vadd.f32 %v1763, %v3169
        %v3720 = vadd.f32 %v1765, %v3172
        %v3721 = vadd.f32 %v1767, %v3175
        %v3722 = vadd.f32 %v1769, %v3178
        %v3723 = vadd.f32 %v1771, %v3181
        %v3724 = vadd.f32 %v1773, %v3184
        %v3725 = vadd.f32 %v1775, %v3187
        %v3726 = vadd.f32 %v1777, %v3190
        %v3727 = vadd.f32 %v1779, %v3193
        %v3728 = vadd.f32 %v1781, %v3196
        %v3729 = vadd.f32 %v1783, %v3199
        %v3730 = vadd.f32 %v1785, %v3202
        %v3731 = vadd.f32 %v1787, %v3205
        %v3732 = vadd.f32 %v1789, %v3208
        %v3733 = vadd.f32 %v1791, %v3211
        %v3734 = vadd.f32 %v1793, %v3214
        %v3735 = vadd.f32 %v1795, %v3217
        %v3736 = vadd.f32 %v1797, %v3220
        %v3737 = vadd.f32 %v1799, %v3223
        %v3738 = vadd.f32 %v1801, %v3226
        %v3739 = vadd.f32 %v1803, %v3229
        %v3740 = vadd.f32 %v1805, %v3232
        %v3741 = vadd.f32 %v1807, %v3235
        %v3742 = vadd.f32 %v1809, %v3238
        %v3743 = vadd.f32 %v1811, %v3241
        %v3744 = vadd.f32 %v1813, %v3244
        %v3745 = vadd.f32 %v1815, %v3247
        %v3746 = vadd.f32 %v1817, %v3250
        %v3747 = vadd.f32 %v1819, %v3253
        %v3748 = vadd.f32 %v1821, %v3256
        %v3749 = vadd.f32 %v1823, %v3259
        %v3750 = vadd.f32 %v1825, %v3262
        %v3751 = vadd.f32 %v1827, %v3265
        %v3752 = vadd.f32 %v1829, %v3268
        %v3753 = vadd.f32 %v1831, %v3271
        %v3754 = vadd.f32 %v1833, %v3274
        %v3755 = vadd.f32 %v1835, %v3277
        %v3756 = vadd.f32 %v1837, %v3280
        %v3757 = vadd.f32 %v1839, %v3283
        %v3758 = vadd.f32 %v1841, %v3286
        %v3759 = vadd.f32 %v1843, %v3289
        %v3760 = vadd.f32 %v1845, %v3292
        %v3761 = vadd.f32 %v1847, %v3295
        %v3762 = vadd.f32 %v1849, %v3298
        %v3763 = vadd.f32 %v1851, %v3301
        %v3764 = vadd.f32 %v1853, %v3304
        %v3765 = vadd.f32 %v1855, %v3307
        %v3766 = vadd.f32 %v1857, %v3310
        %v3767 = vadd.f32 %v1859, %v3313
        %v3768 = vadd.f32 %v1861, %v3316
        %v3769 = vadd.f32 %v1863, %v3319
        %v3770 = vadd.f32 %v1865, %v3322
        %v3771 = vadd.f32 %v1867, %v3325
        %v3772 = vadd.f32 %v1869, %v3328
        %v3773 = vadd.f32 %v1871, %v3331
        %v3774 = vadd.f32 %v1873, %v3334
        %v3775 = vadd.f32 %v1875, %v3337
        %v3776 = vadd.f32 %v1877, %v3340
        %v3777 = vadd.f32 %v1879, %v3343
        %v3778 = vadd.f32 %v1881, %v3346
        %v3779 = vadd.f32 %v1883, %v3349
        %v3780 = vadd.f32 %v1885, %v3352
        %v3781 = vadd.f32 %v1887, %v3355
        %v3782 = vadd.f32 %v1889, %v3358
        %v3783 = vadd.f32 %v1891, %v3361
        %v3784 = vadd.f32 %v1893, %v3364
        %v3785 = vadd.f32 %v1895, %v3367
        %v3786 = vadd.f32 %v1897, %v3370
        %v3787 = vadd.f32 %v1899, %v3373
        %v3788 = vadd.f32 %v1901, %v3376
        %v3789 = vadd.f32 %v1903, %v3379
        %v3790 = vadd.f32 %v1905, %v3382
        %v3791 = vadd.f32 %v1907, %v3385
        %v3792 = vadd.f32 %v1909, %v3388
        %v3793 = vadd.f32 %v1911, %v3391
        %v3794 = vadd.f32 %v1913, %v3394
        %v3795 = vadd.f32 %v1915, %v3397
        %v3796 = vadd.f32 %v1917, %v3400
        %v3797 = vadd.f32 %v1919, %v3403
        %v3798 = vadd.f32 %v1921, %v3406
        %v3799 = vadd.f32 %v1923, %v3409
        %v3800 = vadd.f32 %v1925, %v3412
        %v3801 = vadd.f32 %v1927, %v3415
        %v3802 = vadd.f32 %v1929, %v3418
        %v3803 = vadd.f32 %v1931, %v3421
        %v3804 = vadd.f32 %v1933, %v3424
        %v3805 = vadd.f32 %v1935, %v3427
        %v3806 = vadd.f32 %v1937, %v3430
        %v3807 = vadd.f32 %v1939, %v3433
        %v3808 = vadd.f32 %v1941, %v3436
        %v3809 = vadd.f32 %v1943, %v3439
        %v3810 = vadd.f32 %v1945, %v3442
        %v3811 = vadd.f32 %v1947, %v3445
        %v3812 = vadd.f32 %v1949, %v3448
        %v3813 = vadd.f32 %v1951, %v3451
        %v3814 = vadd.f32 %v1953, %v3454
        %v3815 = vadd.f32 %v1955, %v3457
        %v3816 = vadd.f32 %v1957, %v3460
        %v3817 = vadd.f32 %v1959, %v3463
        %v3818 = vadd.f32 %v1961, %v3466
        %v3819 = vadd.f32 %v1963, %v3469
        %v3820 = vadd.f32 %v1965, %v3472
        %v3821 = vadd.f32 %v1967, %v3475
        %v3822 = vadd.f32 %v1969, %v3478
        %v3823 = vadd.f32 %v1971, %v3481
        %v3824 = vadd.f32 %v1973, %v3484
        %v3825 = vadd.f32 %v1975, %v3487
        %v3826 = vadd.f32 %v1977, %v3490
        %v3827 = vadd.f32 %v1979, %v3493
        %v3828 = vadd.f32 %v1981, %v3496
        %v3829 = vadd.f32 %v1983, %v3499
        %v3830 = vadd.f32 %v1985, %v3502
        %v3831 = vadd.f32 %v1987, %v3505
        %v3832 = vadd.f32 %v1989, %v3508
        %v3833 = vadd.f32 %v1991, %v3511
        %v3834 = vadd.f32 %v1993, %v3514
        %v3835 = vadd.f32 %v1995, %v3517
        %v3836 = vadd.f32 %v1997, %v3520
        %v3837 = vadd.f32 %v1999, %v3523
        %v3838 = vadd.f32 %v2001, %v3526
        %v3839 = vadd.f32 %v2003, %v3529
        %v3840 = vadd.f32 %v2005, %v3532
        %v3841 = vadd.f32 %v2007, %v3535
        %v3842 = vadd.f32 %v2009, %v3538
        %v3843 = vadd.f32 %v2011, %v3541
        %v3844 = vadd.f32 %v2013, %v3544
        %v3845 = vadd.f32 %v2015, %v3547
        %v3846 = vadd.f32 %v2017, %v3550
        %v3847 = vadd.f32 %v2019, %v3553
        %v3848 = vadd.f32 %v2021, %v3556
        %v3849 = vadd.f32 %v2023, %v3559
        %v3850 = vadd.f32 %v2025, %v3562
        %v3851 = vadd.f32 %v2027, %v3565
        %v3852 = vadd.f32 %v2029, %v3568
        %v3853 = vadd.f32 %v2031, %v3571
        %v3854 = vadd.f32 %v2033, %v3574
        %v3855 = vadd.f32 %v2035, %v3577
        %v3856 = vadd.f32 %v2037, %v3580
        %v3857 = vadd.f32 %v2039, %v3583
        %v3858 = vadd.f32 %v2041, %v3586
        %v3859 = vadd.f32 %v2043, %v3589
        %v3860 = vadd.f32 %v2045, %v3592
        %v3861 = vadd.f32 %v2047, %v3595
        %v3862 = vadd.f32 %v2049, %v3598
        %v3863 = vadd.f32 %v2051, %v3601
        %v3864 = vadd.f32 %v2053, %v3604
        %v3865 = vadd.f32 %v2055, %v3607
        %v3866 = vadd.f32 %v2057, %v3610
        %v3867 = vadd.f32 %v2059, %v3613
        %v3868 = vadd.f32 %v2061, %v3616
        %v3869 = vadd.f32 %v2063, %v3619
        %v3870 = vadd.f32 %v2065, %v3622
        %v3871 = vadd.f32 %v2067, %v3625
        %v3872 = vadd.f32 %v2069, %v3628
        %v3873 = vadd.f32 %v2071, %v3631
        %v3874 = vadd.f32 %v2073, %v3634
        %v3875 = vadd.f32 %v2075, %v3637
        %v3876 = vadd.f32 %v2077, %v3640
        %v3877 = vadd.f32 %v2079, %v3643
        %v3878 = vadd.f32 %v2081, %v3646
        %v3879 = vadd.f32 %v2083, %v3649
        %v3880 = vadd.f32 %v2085, %v3652
        %v3881 = vadd.f32 %v2087, %v3655
        %v3882 = vadd.f32 %v2089, %v3658
        %v3883 = vld [vmem:[#allocation2] sm:$0xff]
        %v3884 = vld [vmem:[%s1187] sm:$0xff]
        %v3885 = vld [vmem:[%s1187 + $0x8] sm:$0xff]
        %v3886 = vld [vmem:[%s1187 + $0x10] sm:$0xff]
        %v3887 = vld [vmem:[%s1187 + $0x18] sm:$0xff]
        %v3888 = vld [vmem:[%s1187 + $0x20] sm:$0xff]
        %v3889 = vld [vmem:[%s1187 + $0x28] sm:$0xff]
        %v3890 = vld [vmem:[%s1187 + $0x30] sm:$0xff]
        %v3891 = vld [vmem:[%s1187 + $0x38] sm:$0xff]
        %v3892 = vld [vmem:[%s1187 + $0x40] sm:$0xff]
        %v3893 = vld [vmem:[%s1187 + $0x48] sm:$0xff]
        %v3894 = vld [vmem:[%s1187 + $0x50] sm:$0xff]
        %v3895 = vld [vmem:[%s1187 + $0x58] sm:$0xff]
        %v3896 = vld [vmem:[%s1187 + $0x60] sm:$0xff]
        %v3897 = vld [vmem:[%s1187 + $0x68] sm:$0xff]
        %v3898 = vld [vmem:[%s1187 + $0x70] sm:$0xff]
        %v3899 = vld [vmem:[%s1187 + $0x78] sm:$0xff]
        %v3900 = vld [vmem:[%s1187 + $0x80] sm:$0xff]
        %v3901 = vld [vmem:[%s1187 + $0x88] sm:$0xff]
        %v3902 = vld [vmem:[%s1187 + $0x90] sm:$0xff]
        %v3903 = vld [vmem:[%s1187 + $0x98] sm:$0xff]
        %v3904 = vld [vmem:[%s1187 + $0xa0] sm:$0xff]
        %v3905 = vld [vmem:[%s1187 + $0xa8] sm:$0xff]
        %v3906 = vld [vmem:[%s1187 + $0xb0] sm:$0xff]
        %v3907 = vld [vmem:[%s1187 + $0xb8] sm:$0xff]
        %v3908 = vld [vmem:[%s1187 + $0xc0] sm:$0xff]
        %v3909 = vld [vmem:[%s1187 + $0xc8] sm:$0xff]
        %v3910 = vld [vmem:[%s1187 + $0xd0] sm:$0xff]
        %v3911 = vld [vmem:[%s1187 + $0xd8] sm:$0xff]
        %v3912 = vld [vmem:[%s1187 + $0xe0] sm:$0xff]
        %v3913 = vld [vmem:[%s1187 + $0xe8] sm:$0xff]
        %v3914 = vld [vmem:[%s1187 + $0xf0] sm:$0xff]
        %v3915 = vld [vmem:[%s1187 + $0xf8] sm:$0xff]
        %v3916 = vld [vmem:[%s1187 + $0x100] sm:$0xff]
        %v3917 = vld [vmem:[%s1187 + $0x108] sm:$0xff]
        %v3918 = vld [vmem:[%s1187 + $0x110] sm:$0xff]
        %v3919 = vld [vmem:[%s1187 + $0x118] sm:$0xff]
        %v3920 = vld [vmem:[%s1187 + $0x120] sm:$0xff]
        %v3921 = vld [vmem:[%s1187 + $0x128] sm:$0xff]
        %v3922 = vld [vmem:[%s1187 + $0x130] sm:$0xff]
        %v3923 = vld [vmem:[%s1187 + $0x138] sm:$0xff]
        %v3924 = vld [vmem:[%s1187 + $0x140] sm:$0xff]
        %v3925 = vld [vmem:[%s1187 + $0x148] sm:$0xff]
        %v3926 = vld [vmem:[%s1187 + $0x150] sm:$0xff]
        %v3927 = vld [vmem:[%s1187 + $0x158] sm:$0xff]
        %v3928 = vld [vmem:[%s1187 + $0x160] sm:$0xff]
        %v3929 = vld [vmem:[%s1187 + $0x168] sm:$0xff]
        %v3930 = vld [vmem:[%s1187 + $0x170] sm:$0xff]
        %v3931 = vld [vmem:[%s1187 + $0x178] sm:$0xff]
        %v3932 = vld [vmem:[%s1187 + $0x180] sm:$0xff]
        %v3933 = vld [vmem:[%s1187 + $0x188] sm:$0xff]
        %v3934 = vld [vmem:[%s1187 + $0x190] sm:$0xff]
        %v3935 = vld [vmem:[%s1187 + $0x198] sm:$0xff]
        %v3936 = vld [vmem:[%s1187 + $0x1a0] sm:$0xff]
        %v3937 = vld [vmem:[%s1187 + $0x1a8] sm:$0xff]
        %v3938 = vld [vmem:[%s1187 + $0x1b0] sm:$0xff]
        %v3939 = vld [vmem:[%s1187 + $0x1b8] sm:$0xff]
        %v3940 = vld [vmem:[%s1187 + $0x1c0] sm:$0xff]
        %v3941 = vld [vmem:[%s1187 + $0x1c8] sm:$0xff]
        %v3942 = vld [vmem:[%s1187 + $0x1d0] sm:$0xff]
        %v3943 = vld [vmem:[%s1187 + $0x1d8] sm:$0xff]
        %v3944 = vld [vmem:[%s1187 + $0x1e0] sm:$0xff]
        %v3945 = vld [vmem:[%s1187 + $0x1e8] sm:$0xff]
        %v3946 = vld [vmem:[%s1187 + $0x1f0] sm:$0xff]
        %v3947 = vld [vmem:[%s1187 + $0x1f8] sm:$0xff]
        %v3948 = vld [vmem:[%s1187 + $0x200] sm:$0xff]
        %v3949 = vld [vmem:[%s1187 + $0x208] sm:$0xff]
        %v3950 = vld [vmem:[%s1187 + $0x210] sm:$0xff]
        %v3951 = vld [vmem:[%s1187 + $0x218] sm:$0xff]
        %v3952 = vld [vmem:[%s1187 + $0x220] sm:$0xff]
        %v3953 = vld [vmem:[%s1187 + $0x228] sm:$0xff]
        %v3954 = vld [vmem:[%s1187 + $0x230] sm:$0xff]
        %v3955 = vld [vmem:[%s1187 + $0x238] sm:$0xff]
        %v3956 = vld [vmem:[%s1187 + $0x240] sm:$0xff]
        %v3957 = vld [vmem:[%s1187 + $0x248] sm:$0xff]
        %v3958 = vld [vmem:[%s1187 + $0x250] sm:$0xff]
        %v3959 = vld [vmem:[%s1187 + $0x258] sm:$0xff]
        %v3960 = vld [vmem:[%s1187 + $0x260] sm:$0xff]
        %v3961 = vld [vmem:[%s1187 + $0x268] sm:$0xff]
        %v3962 = vld [vmem:[%s1187 + $0x270] sm:$0xff]
        %v3963 = vld [vmem:[%s1187 + $0x278] sm:$0xff]
        %v3964 = vld [vmem:[%s1187 + $0x280] sm:$0xff]
        %v3965 = vld [vmem:[%s1187 + $0x288] sm:$0xff]
        %v3966 = vld [vmem:[%s1187 + $0x290] sm:$0xff]
        %v3967 = vld [vmem:[%s1187 + $0x298] sm:$0xff]
        %v3968 = vld [vmem:[%s1187 + $0x2a0] sm:$0xff]
        %v3969 = vld [vmem:[%s1187 + $0x2a8] sm:$0xff]
        %v3970 = vld [vmem:[%s1187 + $0x2b0] sm:$0xff]
        %v3971 = vld [vmem:[%s1187 + $0x2b8] sm:$0xff]
        %v3972 = vld [vmem:[%s1187 + $0x2c0] sm:$0xff]
        %v3973 = vld [vmem:[%s1187 + $0x2c8] sm:$0xff]
        %v3974 = vld [vmem:[%s1187 + $0x2d0] sm:$0xff]
        %v3975 = vld [vmem:[%s1187 + $0x2d8] sm:$0xff]
        %v3976 = vld [vmem:[%s1187 + $0x2e0] sm:$0xff]
        %v3977 = vld [vmem:[%s1187 + $0x2e8] sm:$0xff]
        %v3978 = vld [vmem:[%s1187 + $0x2f0] sm:$0xff]
        %v3979 = vld [vmem:[%s1187 + $0x2f8] sm:$0xff]
        %v3980 = vld [vmem:[%s1187 + $0x300] sm:$0xff]
        %v3981 = vld [vmem:[%s1187 + $0x308] sm:$0xff]
        %v3982 = vld [vmem:[%s1187 + $0x310] sm:$0xff]
        %v3983 = vld [vmem:[%s1187 + $0x318] sm:$0xff]
        %v3984 = vld [vmem:[%s1187 + $0x320] sm:$0xff]
        %v3985 = vld [vmem:[%s1187 + $0x328] sm:$0xff]
        %v3986 = vld [vmem:[%s1187 + $0x330] sm:$0xff]
        %v3987 = vld [vmem:[%s1187 + $0x338] sm:$0xff]
        %v3988 = vld [vmem:[%s1187 + $0x340] sm:$0xff]
        %v3989 = vld [vmem:[%s1187 + $0x348] sm:$0xff]
        %v3990 = vld [vmem:[%s1187 + $0x350] sm:$0xff]
        %v3991 = vld [vmem:[%s1187 + $0x358] sm:$0xff]
        %v3992 = vld [vmem:[%s1187 + $0x360] sm:$0xff]
        %v3993 = vld [vmem:[%s1187 + $0x368] sm:$0xff]
        %v3994 = vld [vmem:[%s1187 + $0x370] sm:$0xff]
        %v3995 = vld [vmem:[%s1187 + $0x378] sm:$0xff]
        %v3996 = vld [vmem:[%s1187 + $0x380] sm:$0xff]
        %v3997 = vld [vmem:[%s1187 + $0x388] sm:$0xff]
        %v3998 = vld [vmem:[%s1187 + $0x390] sm:$0xff]
        %v3999 = vld [vmem:[%s1187 + $0x398] sm:$0xff]
        %v4000 = vld [vmem:[%s1187 + $0x3a0] sm:$0xff]
        %v4001 = vld [vmem:[%s1187 + $0x3a8] sm:$0xff]
        %v4002 = vld [vmem:[%s1187 + $0x3b0] sm:$0xff]
        %v4003 = vld [vmem:[%s1187 + $0x3b8] sm:$0xff]
        %v4004 = vld [vmem:[%s1187 + $0x3c0] sm:$0xff]
        %v4005 = vld [vmem:[%s1187 + $0x3c8] sm:$0xff]
        %v4006 = vld [vmem:[%s1187 + $0x3d0] sm:$0xff]
        %v4007 = vld [vmem:[%s1187 + $0x3d8] sm:$0xff]
        %v4008 = vld [vmem:[%s1187 + $0x3e0] sm:$0xff]
        %v4009 = vld [vmem:[%s1187 + $0x3e8] sm:$0xff]
        %v4010 = vld [vmem:[%s1187 + $0x3f0] sm:$0xff]
        %v4011 = vld [vmem:[%s1187 + $0x3f8] sm:$0xff]
        %v4012 = vld [vmem:[%s1187 + $0x400] sm:$0xff]
        %v4013 = vld [vmem:[%s1187 + $0x408] sm:$0xff]
        %v4014 = vld [vmem:[%s1187 + $0x410] sm:$0xff]
        %v4015 = vld [vmem:[%s1187 + $0x418] sm:$0xff]
        %v4016 = vld [vmem:[%s1187 + $0x420] sm:$0xff]
        %v4017 = vld [vmem:[%s1187 + $0x428] sm:$0xff]
        %v4018 = vld [vmem:[%s1187 + $0x430] sm:$0xff]
        %v4019 = vld [vmem:[%s1187 + $0x438] sm:$0xff]
        %v4020 = vld [vmem:[%s1187 + $0x440] sm:$0xff]
        %v4021 = vld [vmem:[%s1187 + $0x448] sm:$0xff]
        %v4022 = vld [vmem:[%s1187 + $0x450] sm:$0xff]
        %v4023 = vld [vmem:[%s1187 + $0x458] sm:$0xff]
        %v4024 = vld [vmem:[%s1187 + $0x460] sm:$0xff]
        %v4025 = vld [vmem:[%s1187 + $0x468] sm:$0xff]
        %v4026 = vld [vmem:[%s1187 + $0x470] sm:$0xff]
        %v4027 = vld [vmem:[%s1187 + $0x478] sm:$0xff]
        %v4028 = vld [vmem:[%s1187 + $0x480] sm:$0xff]
        %v4029 = vld [vmem:[%s1187 + $0x488] sm:$0xff]
        %v4030 = vld [vmem:[%s1187 + $0x490] sm:$0xff]
        %v4031 = vld [vmem:[%s1187 + $0x498] sm:$0xff]
        %v4032 = vld [vmem:[%s1187 + $0x4a0] sm:$0xff]
        %v4033 = vld [vmem:[%s1187 + $0x4a8] sm:$0xff]
        %v4034 = vld [vmem:[%s1187 + $0x4b0] sm:$0xff]
        %v4035 = vld [vmem:[%s1187 + $0x4b8] sm:$0xff]
        %v4036 = vld [vmem:[%s1187 + $0x4c0] sm:$0xff]
        %v4037 = vld [vmem:[%s1187 + $0x4c8] sm:$0xff]
        %v4038 = vld [vmem:[%s1187 + $0x4d0] sm:$0xff]
        %v4039 = vld [vmem:[%s1187 + $0x4d8] sm:$0xff]
        %v4040 = vld [vmem:[%s1187 + $0x4e0] sm:$0xff]
        %v4041 = vld [vmem:[%s1187 + $0x4e8] sm:$0xff]
        %v4042 = vld [vmem:[%s1187 + $0x4f0] sm:$0xff]
        %v4043 = vld [vmem:[%s1187 + $0x4f8] sm:$0xff]
        %v4044 = vld [vmem:[%s1187 + $0x500] sm:$0xff]
        %v4045 = vld [vmem:[%s1187 + $0x508] sm:$0xff]
        %v4046 = vld [vmem:[%s1187 + $0x510] sm:$0xff]
        %v4047 = vld [vmem:[%s1187 + $0x518] sm:$0xff]
        %v4048 = vld [vmem:[%s1187 + $0x520] sm:$0xff]
        %v4049 = vld [vmem:[%s1187 + $0x528] sm:$0xff]
        %v4050 = vld [vmem:[%s1187 + $0x530] sm:$0xff]
        %v4051 = vld [vmem:[%s1187 + $0x538] sm:$0xff]
        %v4052 = vld [vmem:[%s1187 + $0x540] sm:$0xff]
        %v4053 = vld [vmem:[%s1187 + $0x548] sm:$0xff]
        %v4054 = vld [vmem:[%s1187 + $0x550] sm:$0xff]
        %v4055 = vld [vmem:[%s1187 + $0x558] sm:$0xff]
        %v4056 = vld [vmem:[%s1187 + $0x560] sm:$0xff]
        %v4057 = vld [vmem:[%s1187 + $0x568] sm:$0xff]
        %v4058 = vld [vmem:[%s1187 + $0x570] sm:$0xff]
        %v4059 = vld [vmem:[%s1187 + $0x578] sm:$0xff]
        %v4060 = vld [vmem:[%s1187 + $0x580] sm:$0xff]
        %v4061 = vld [vmem:[%s1187 + $0x588] sm:$0xff]
        %v4062 = vld [vmem:[%s1187 + $0x590] sm:$0xff]
        %v4063 = vld [vmem:[%s1187 + $0x598] sm:$0xff]
        %v4064 = vld [vmem:[%s1187 + $0x5a0] sm:$0xff]
        %v4065 = vld [vmem:[%s1187 + $0x5a8] sm:$0xff]
        %v4066 = vld [vmem:[%s1187 + $0x5b0] sm:$0xff]
        %v4067 = vld [vmem:[%s1187 + $0x5b8] sm:$0xff]
        %v4068 = vld [vmem:[%s1187 + $0x5c0] sm:$0xff]
        %v4069 = vld [vmem:[%s1187 + $0x5c8] sm:$0xff]
        %v4070 = vld [vmem:[%s1187 + $0x5d0] sm:$0xff]
        %v4071 = vld [vmem:[%s1187 + $0x5d8] sm:$0xff]
        %v4072 = vld [vmem:[%s1187 + $0x5e0] sm:$0xff]
        %v4073 = vld [vmem:[%s1187 + $0x5e8] sm:$0xff]
        %v4074 = vld [vmem:[%s1187 + $0x5f0] sm:$0xff]
        %v4075 = vld [vmem:[%s1187 + $0x5f8] sm:$0xff]
        %v4076 = vld [vmem:[%s1187 + $0x600] sm:$0xff]
        %v4077 = vld [vmem:[%s1187 + $0x608] sm:$0xff]
        %v4078 = vld [vmem:[%s1187 + $0x610] sm:$0xff]
        %v4079 = vld [vmem:[%s1187 + $0x618] sm:$0xff]
        %v4080 = vld [vmem:[%s1187 + $0x620] sm:$0xff]
        %v4081 = vld [vmem:[%s1187 + $0x628] sm:$0xff]
        %v4082 = vld [vmem:[%s1187 + $0x630] sm:$0xff]
        %v4083 = vld [vmem:[%s1187 + $0x638] sm:$0xff]
        %v4084 = vld [vmem:[%s1187 + $0x640] sm:$0xff]
        %v4085 = vld [vmem:[%s1187 + $0x648] sm:$0xff]
        %v4086 = vld [vmem:[%s1187 + $0x650] sm:$0xff]
        %v4087 = vld [vmem:[%s1187 + $0x658] sm:$0xff]
        %v4088 = vld [vmem:[%s1187 + $0x660] sm:$0xff]
        %v4089 = vld [vmem:[%s1187 + $0x668] sm:$0xff]
        %v4090 = vld [vmem:[%s1187 + $0x670] sm:$0xff]
        %v4091 = vld [vmem:[%s1187 + $0x678] sm:$0xff]
        %v4092 = vld [vmem:[%s1187 + $0x680] sm:$0xff]
        %v4093 = vld [vmem:[%s1187 + $0x688] sm:$0xff]
        %v4094 = vld [vmem:[%s1187 + $0x690] sm:$0xff]
        %v4095 = vld [vmem:[%s1187 + $0x698] sm:$0xff]
        %v4096 = vld [vmem:[%s1187 + $0x6a0] sm:$0xff]
        %v4097 = vld [vmem:[%s1187 + $0x6a8] sm:$0xff]
        %v4098 = vld [vmem:[%s1187 + $0x6b0] sm:$0xff]
        %v4099 = vld [vmem:[%s1187 + $0x6b8] sm:$0xff]
        %v4100 = vld [vmem:[%s1187 + $0x6c0] sm:$0xff]
        %v4101 = vld [vmem:[%s1187 + $0x6c8] sm:$0xff]
        %v4102 = vld [vmem:[%s1187 + $0x6d0] sm:$0xff]
        %v4103 = vld [vmem:[%s1187 + $0x6d8] sm:$0xff]
        %v4104 = vld [vmem:[%s1187 + $0x6e0] sm:$0xff]
        %v4105 = vld [vmem:[%s1187 + $0x6e8] sm:$0xff]
        %v4106 = vld [vmem:[%s1187 + $0x6f0] sm:$0xff]
        %v4107 = vld [vmem:[%s1187 + $0x6f8] sm:$0xff]
        %v4108 = vunpack.c.l.bf16 %v3884
        %v4109 = vunpack.c.h.bf16 %v3884
        %v4110 = vunpack.c.l.bf16 %v3885
        %v4111 = vunpack.c.h.bf16 %v3885
        %v4112 = vunpack.c.l.bf16 %v3886
        %v4113 = vunpack.c.h.bf16 %v3886
        %v4114 = vunpack.c.l.bf16 %v3887
        %v4115 = vunpack.c.h.bf16 %v3887
        %v4116 = vunpack.c.l.bf16 %v3888
        %v4117 = vunpack.c.h.bf16 %v3888
        %v4118 = vunpack.c.l.bf16 %v3889
        %v4119 = vunpack.c.h.bf16 %v3889
        %v4120 = vunpack.c.l.bf16 %v3890
        %v4121 = vunpack.c.h.bf16 %v3890
        %v4122 = vunpack.c.l.bf16 %v3891
        %v4123 = vunpack.c.h.bf16 %v3891
        %v4124 = vunpack.c.l.bf16 %v3892
        %v4125 = vunpack.c.h.bf16 %v3892
        %v4126 = vunpack.c.l.bf16 %v3893
        %v4127 = vunpack.c.h.bf16 %v3893
        %v4128 = vunpack.c.l.bf16 %v3894
        %v4129 = vunpack.c.h.bf16 %v3894
        %v4130 = vunpack.c.l.bf16 %v3895
        %v4131 = vunpack.c.h.bf16 %v3895
        %v4132 = vunpack.c.l.bf16 %v3896
        %v4133 = vunpack.c.h.bf16 %v3896
        %v4134 = vunpack.c.l.bf16 %v3897
        %v4135 = vunpack.c.h.bf16 %v3897
        %v4136 = vunpack.c.l.bf16 %v3898
        %v4137 = vunpack.c.h.bf16 %v3898
        %v4138 = vunpack.c.l.bf16 %v3899
        %v4139 = vunpack.c.h.bf16 %v3899
        %v4140 = vunpack.c.l.bf16 %v3900
        %v4141 = vunpack.c.h.bf16 %v3900
        %v4142 = vunpack.c.l.bf16 %v3901
        %v4143 = vunpack.c.h.bf16 %v3901
        %v4144 = vunpack.c.l.bf16 %v3902
        %v4145 = vunpack.c.h.bf16 %v3902
        %v4146 = vunpack.c.l.bf16 %v3903
        %v4147 = vunpack.c.h.bf16 %v3903
        %v4148 = vunpack.c.l.bf16 %v3904
        %v4149 = vunpack.c.h.bf16 %v3904
        %v4150 = vunpack.c.l.bf16 %v3905
        %v4151 = vunpack.c.h.bf16 %v3905
        %v4152 = vunpack.c.l.bf16 %v3906
        %v4153 = vunpack.c.h.bf16 %v3906
        %v4154 = vunpack.c.l.bf16 %v3907
        %v4155 = vunpack.c.h.bf16 %v3907
        %v4156 = vunpack.c.l.bf16 %v3908
        %v4157 = vunpack.c.h.bf16 %v3908
        %v4158 = vunpack.c.l.bf16 %v3909
        %v4159 = vunpack.c.h.bf16 %v3909
        %v4160 = vunpack.c.l.bf16 %v3910
        %v4161 = vunpack.c.h.bf16 %v3910
        %v4162 = vunpack.c.l.bf16 %v3911
        %v4163 = vunpack.c.h.bf16 %v3911
        %v4164 = vunpack.c.l.bf16 %v3912
        %v4165 = vunpack.c.h.bf16 %v3912
        %v4166 = vunpack.c.l.bf16 %v3913
        %v4167 = vunpack.c.h.bf16 %v3913
        %v4168 = vunpack.c.l.bf16 %v3914
        %v4169 = vunpack.c.h.bf16 %v3914
        %v4170 = vunpack.c.l.bf16 %v3915
        %v4171 = vunpack.c.h.bf16 %v3915
        %v4172 = vunpack.c.l.bf16 %v3916
        %v4173 = vunpack.c.h.bf16 %v3916
        %v4174 = vunpack.c.l.bf16 %v3917
        %v4175 = vunpack.c.h.bf16 %v3917
        %v4176 = vunpack.c.l.bf16 %v3918
        %v4177 = vunpack.c.h.bf16 %v3918
        %v4178 = vunpack.c.l.bf16 %v3919
        %v4179 = vunpack.c.h.bf16 %v3919
        %v4180 = vunpack.c.l.bf16 %v3920
        %v4181 = vunpack.c.h.bf16 %v3920
        %v4182 = vunpack.c.l.bf16 %v3921
        %v4183 = vunpack.c.h.bf16 %v3921
        %v4184 = vunpack.c.l.bf16 %v3922
        %v4185 = vunpack.c.h.bf16 %v3922
        %v4186 = vunpack.c.l.bf16 %v3923
        %v4187 = vunpack.c.h.bf16 %v3923
        %v4188 = vunpack.c.l.bf16 %v3924
        %v4189 = vunpack.c.h.bf16 %v3924
        %v4190 = vunpack.c.l.bf16 %v3925
        %v4191 = vunpack.c.h.bf16 %v3925
        %v4192 = vunpack.c.l.bf16 %v3926
        %v4193 = vunpack.c.h.bf16 %v3926
        %v4194 = vunpack.c.l.bf16 %v3927
        %v4195 = vunpack.c.h.bf16 %v3927
        %v4196 = vunpack.c.l.bf16 %v3928
        %v4197 = vunpack.c.h.bf16 %v3928
        %v4198 = vunpack.c.l.bf16 %v3929
        %v4199 = vunpack.c.h.bf16 %v3929
        %v4200 = vunpack.c.l.bf16 %v3930
        %v4201 = vunpack.c.h.bf16 %v3930
        %v4202 = vunpack.c.l.bf16 %v3931
        %v4203 = vunpack.c.h.bf16 %v3931
        %v4204 = vunpack.c.l.bf16 %v3932
        %v4205 = vunpack.c.h.bf16 %v3932
        %v4206 = vunpack.c.l.bf16 %v3933
        %v4207 = vunpack.c.h.bf16 %v3933
        %v4208 = vunpack.c.l.bf16 %v3934
        %v4209 = vunpack.c.h.bf16 %v3934
        %v4210 = vunpack.c.l.bf16 %v3935
        %v4211 = vunpack.c.h.bf16 %v3935
        %v4212 = vunpack.c.l.bf16 %v3936
        %v4213 = vunpack.c.h.bf16 %v3936
        %v4214 = vunpack.c.l.bf16 %v3937
        %v4215 = vunpack.c.h.bf16 %v3937
        %v4216 = vunpack.c.l.bf16 %v3938
        %v4217 = vunpack.c.h.bf16 %v3938
        %v4218 = vunpack.c.l.bf16 %v3939
        %v4219 = vunpack.c.h.bf16 %v3939
        %v4220 = vunpack.c.l.bf16 %v3940
        %v4221 = vunpack.c.h.bf16 %v3940
        %v4222 = vunpack.c.l.bf16 %v3941
        %v4223 = vunpack.c.h.bf16 %v3941
        %v4224 = vunpack.c.l.bf16 %v3942
        %v4225 = vunpack.c.h.bf16 %v3942
        %v4226 = vunpack.c.l.bf16 %v3943
        %v4227 = vunpack.c.h.bf16 %v3943
        %v4228 = vunpack.c.l.bf16 %v3944
        %v4229 = vunpack.c.h.bf16 %v3944
        %v4230 = vunpack.c.l.bf16 %v3945
        %v4231 = vunpack.c.h.bf16 %v3945
        %v4232 = vunpack.c.l.bf16 %v3946
        %v4233 = vunpack.c.h.bf16 %v3946
        %v4234 = vunpack.c.l.bf16 %v3947
        %v4235 = vunpack.c.h.bf16 %v3947
        %v4236 = vunpack.c.l.bf16 %v3948
        %v4237 = vunpack.c.h.bf16 %v3948
        %v4238 = vunpack.c.l.bf16 %v3949
        %v4239 = vunpack.c.h.bf16 %v3949
        %v4240 = vunpack.c.l.bf16 %v3950
        %v4241 = vunpack.c.h.bf16 %v3950
        %v4242 = vunpack.c.l.bf16 %v3951
        %v4243 = vunpack.c.h.bf16 %v3951
        %v4244 = vunpack.c.l.bf16 %v3952
        %v4245 = vunpack.c.h.bf16 %v3952
        %v4246 = vunpack.c.l.bf16 %v3953
        %v4247 = vunpack.c.h.bf16 %v3953
        %v4248 = vunpack.c.l.bf16 %v3954
        %v4249 = vunpack.c.h.bf16 %v3954
        %v4250 = vunpack.c.l.bf16 %v3955
        %v4251 = vunpack.c.h.bf16 %v3955
        %v4252 = vunpack.c.l.bf16 %v3956
        %v4253 = vunpack.c.h.bf16 %v3956
        %v4254 = vunpack.c.l.bf16 %v3957
        %v4255 = vunpack.c.h.bf16 %v3957
        %v4256 = vunpack.c.l.bf16 %v3958
        %v4257 = vunpack.c.h.bf16 %v3958
        %v4258 = vunpack.c.l.bf16 %v3959
        %v4259 = vunpack.c.h.bf16 %v3959
        %v4260 = vunpack.c.l.bf16 %v3960
        %v4261 = vunpack.c.h.bf16 %v3960
        %v4262 = vunpack.c.l.bf16 %v3961
        %v4263 = vunpack.c.h.bf16 %v3961
        %v4264 = vunpack.c.l.bf16 %v3962
        %v4265 = vunpack.c.h.bf16 %v3962
        %v4266 = vunpack.c.l.bf16 %v3963
        %v4267 = vunpack.c.h.bf16 %v3963
        %v4268 = vunpack.c.l.bf16 %v3964
        %v4269 = vunpack.c.h.bf16 %v3964
        %v4270 = vunpack.c.l.bf16 %v3965
        %v4271 = vunpack.c.h.bf16 %v3965
        %v4272 = vunpack.c.l.bf16 %v3966
        %v4273 = vunpack.c.h.bf16 %v3966
        %v4274 = vunpack.c.l.bf16 %v3967
        %v4275 = vunpack.c.h.bf16 %v3967
        %v4276 = vunpack.c.l.bf16 %v3968
        %v4277 = vunpack.c.h.bf16 %v3968
        %v4278 = vunpack.c.l.bf16 %v3969
        %v4279 = vunpack.c.h.bf16 %v3969
        %v4280 = vunpack.c.l.bf16 %v3970
        %v4281 = vunpack.c.h.bf16 %v3970
        %v4282 = vunpack.c.l.bf16 %v3971
        %v4283 = vunpack.c.h.bf16 %v3971
        %v4284 = vunpack.c.l.bf16 %v3972
        %v4285 = vunpack.c.h.bf16 %v3972
        %v4286 = vunpack.c.l.bf16 %v3973
        %v4287 = vunpack.c.h.bf16 %v3973
        %v4288 = vunpack.c.l.bf16 %v3974
        %v4289 = vunpack.c.h.bf16 %v3974
        %v4290 = vunpack.c.l.bf16 %v3975
        %v4291 = vunpack.c.h.bf16 %v3975
        %v4292 = vunpack.c.l.bf16 %v3976
        %v4293 = vunpack.c.h.bf16 %v3976
        %v4294 = vunpack.c.l.bf16 %v3977
        %v4295 = vunpack.c.h.bf16 %v3977
        %v4296 = vunpack.c.l.bf16 %v3978
        %v4297 = vunpack.c.h.bf16 %v3978
        %v4298 = vunpack.c.l.bf16 %v3979
        %v4299 = vunpack.c.h.bf16 %v3979
        %v4300 = vunpack.c.l.bf16 %v3980
        %v4301 = vunpack.c.h.bf16 %v3980
        %v4302 = vunpack.c.l.bf16 %v3981
        %v4303 = vunpack.c.h.bf16 %v3981
        %v4304 = vunpack.c.l.bf16 %v3982
        %v4305 = vunpack.c.h.bf16 %v3982
        %v4306 = vunpack.c.l.bf16 %v3983
        %v4307 = vunpack.c.h.bf16 %v3983
        %v4308 = vunpack.c.l.bf16 %v3984
        %v4309 = vunpack.c.h.bf16 %v3984
        %v4310 = vunpack.c.l.bf16 %v3985
        %v4311 = vunpack.c.h.bf16 %v3985
        %v4312 = vunpack.c.l.bf16 %v3986
        %v4313 = vunpack.c.h.bf16 %v3986
        %v4314 = vunpack.c.l.bf16 %v3987
        %v4315 = vunpack.c.h.bf16 %v3987
        %v4316 = vunpack.c.l.bf16 %v3988
        %v4317 = vunpack.c.h.bf16 %v3988
        %v4318 = vunpack.c.l.bf16 %v3989
        %v4319 = vunpack.c.h.bf16 %v3989
        %v4320 = vunpack.c.l.bf16 %v3990
        %v4321 = vunpack.c.h.bf16 %v3990
        %v4322 = vunpack.c.l.bf16 %v3991
        %v4323 = vunpack.c.h.bf16 %v3991
        %v4324 = vunpack.c.l.bf16 %v3992
        %v4325 = vunpack.c.h.bf16 %v3992
        %v4326 = vunpack.c.l.bf16 %v3993
        %v4327 = vunpack.c.h.bf16 %v3993
        %v4328 = vunpack.c.l.bf16 %v3994
        %v4329 = vunpack.c.h.bf16 %v3994
        %v4330 = vunpack.c.l.bf16 %v3995
        %v4331 = vunpack.c.h.bf16 %v3995
        %v4332 = vunpack.c.l.bf16 %v3996
        %v4333 = vunpack.c.h.bf16 %v3996
        %v4334 = vunpack.c.l.bf16 %v3997
        %v4335 = vunpack.c.h.bf16 %v3997
        %v4336 = vunpack.c.l.bf16 %v3998
        %v4337 = vunpack.c.h.bf16 %v3998
        %v4338 = vunpack.c.l.bf16 %v3999
        %v4339 = vunpack.c.h.bf16 %v3999
        %v4340 = vunpack.c.l.bf16 %v4000
        %v4341 = vunpack.c.h.bf16 %v4000
        %v4342 = vunpack.c.l.bf16 %v4001
        %v4343 = vunpack.c.h.bf16 %v4001
        %v4344 = vunpack.c.l.bf16 %v4002
        %v4345 = vunpack.c.h.bf16 %v4002
        %v4346 = vunpack.c.l.bf16 %v4003
        %v4347 = vunpack.c.h.bf16 %v4003
        %v4348 = vunpack.c.l.bf16 %v4004
        %v4349 = vunpack.c.h.bf16 %v4004
        %v4350 = vunpack.c.l.bf16 %v4005
        %v4351 = vunpack.c.h.bf16 %v4005
        %v4352 = vunpack.c.l.bf16 %v4006
        %v4353 = vunpack.c.h.bf16 %v4006
        %v4354 = vunpack.c.l.bf16 %v4007
        %v4355 = vunpack.c.h.bf16 %v4007
        %v4356 = vunpack.c.l.bf16 %v4008
        %v4357 = vunpack.c.h.bf16 %v4008
        %v4358 = vunpack.c.l.bf16 %v4009
        %v4359 = vunpack.c.h.bf16 %v4009
        %v4360 = vunpack.c.l.bf16 %v4010
        %v4361 = vunpack.c.h.bf16 %v4010
        %v4362 = vunpack.c.l.bf16 %v4011
        %v4363 = vunpack.c.h.bf16 %v4011
        %v4364 = vunpack.c.l.bf16 %v4012
        %v4365 = vunpack.c.h.bf16 %v4012
        %v4366 = vunpack.c.l.bf16 %v4013
        %v4367 = vunpack.c.h.bf16 %v4013
        %v4368 = vunpack.c.l.bf16 %v4014
        %v4369 = vunpack.c.h.bf16 %v4014
        %v4370 = vunpack.c.l.bf16 %v4015
        %v4371 = vunpack.c.h.bf16 %v4015
        %v4372 = vunpack.c.l.bf16 %v4016
        %v4373 = vunpack.c.h.bf16 %v4016
        %v4374 = vunpack.c.l.bf16 %v4017
        %v4375 = vunpack.c.h.bf16 %v4017
        %v4376 = vunpack.c.l.bf16 %v4018
        %v4377 = vunpack.c.h.bf16 %v4018
        %v4378 = vunpack.c.l.bf16 %v4019
        %v4379 = vunpack.c.h.bf16 %v4019
        %v4380 = vunpack.c.l.bf16 %v4020
        %v4381 = vunpack.c.h.bf16 %v4020
        %v4382 = vunpack.c.l.bf16 %v4021
        %v4383 = vunpack.c.h.bf16 %v4021
        %v4384 = vunpack.c.l.bf16 %v4022
        %v4385 = vunpack.c.h.bf16 %v4022
        %v4386 = vunpack.c.l.bf16 %v4023
        %v4387 = vunpack.c.h.bf16 %v4023
        %v4388 = vunpack.c.l.bf16 %v4024
        %v4389 = vunpack.c.h.bf16 %v4024
        %v4390 = vunpack.c.l.bf16 %v4025
        %v4391 = vunpack.c.h.bf16 %v4025
        %v4392 = vunpack.c.l.bf16 %v4026
        %v4393 = vunpack.c.h.bf16 %v4026
        %v4394 = vunpack.c.l.bf16 %v4027
        %v4395 = vunpack.c.h.bf16 %v4027
        %v4396 = vunpack.c.l.bf16 %v4028
        %v4397 = vunpack.c.h.bf16 %v4028
        %v4398 = vunpack.c.l.bf16 %v4029
        %v4399 = vunpack.c.h.bf16 %v4029
        %v4400 = vunpack.c.l.bf16 %v4030
        %v4401 = vunpack.c.h.bf16 %v4030
        %v4402 = vunpack.c.l.bf16 %v4031
        %v4403 = vunpack.c.h.bf16 %v4031
        %v4404 = vunpack.c.l.bf16 %v4032
        %v4405 = vunpack.c.h.bf16 %v4032
        %v4406 = vunpack.c.l.bf16 %v4033
        %v4407 = vunpack.c.h.bf16 %v4033
        %v4408 = vunpack.c.l.bf16 %v4034
        %v4409 = vunpack.c.h.bf16 %v4034
        %v4410 = vunpack.c.l.bf16 %v4035
        %v4411 = vunpack.c.h.bf16 %v4035
        %v4412 = vunpack.c.l.bf16 %v4036
        %v4413 = vunpack.c.h.bf16 %v4036
        %v4414 = vunpack.c.l.bf16 %v4037
        %v4415 = vunpack.c.h.bf16 %v4037
        %v4416 = vunpack.c.l.bf16 %v4038
        %v4417 = vunpack.c.h.bf16 %v4038
        %v4418 = vunpack.c.l.bf16 %v4039
        %v4419 = vunpack.c.h.bf16 %v4039
        %v4420 = vunpack.c.l.bf16 %v4040
        %v4421 = vunpack.c.h.bf16 %v4040
        %v4422 = vunpack.c.l.bf16 %v4041
        %v4423 = vunpack.c.h.bf16 %v4041
        %v4424 = vunpack.c.l.bf16 %v4042
        %v4425 = vunpack.c.h.bf16 %v4042
        %v4426 = vunpack.c.l.bf16 %v4043
        %v4427 = vunpack.c.h.bf16 %v4043
        %v4428 = vunpack.c.l.bf16 %v4044
        %v4429 = vunpack.c.h.bf16 %v4044
        %v4430 = vunpack.c.l.bf16 %v4045
        %v4431 = vunpack.c.h.bf16 %v4045
        %v4432 = vunpack.c.l.bf16 %v4046
        %v4433 = vunpack.c.h.bf16 %v4046
        %v4434 = vunpack.c.l.bf16 %v4047
        %v4435 = vunpack.c.h.bf16 %v4047
        %v4436 = vunpack.c.l.bf16 %v4048
        %v4437 = vunpack.c.h.bf16 %v4048
        %v4438 = vunpack.c.l.bf16 %v4049
        %v4439 = vunpack.c.h.bf16 %v4049
        %v4440 = vunpack.c.l.bf16 %v4050
        %v4441 = vunpack.c.h.bf16 %v4050
        %v4442 = vunpack.c.l.bf16 %v4051
        %v4443 = vunpack.c.h.bf16 %v4051
        %v4444 = vunpack.c.l.bf16 %v4052
        %v4445 = vunpack.c.h.bf16 %v4052
        %v4446 = vunpack.c.l.bf16 %v4053
        %v4447 = vunpack.c.h.bf16 %v4053
        %v4448 = vunpack.c.l.bf16 %v4054
        %v4449 = vunpack.c.h.bf16 %v4054
        %v4450 = vunpack.c.l.bf16 %v4055
        %v4451 = vunpack.c.h.bf16 %v4055
        %v4452 = vunpack.c.l.bf16 %v4056
        %v4453 = vunpack.c.h.bf16 %v4056
        %v4454 = vunpack.c.l.bf16 %v4057
        %v4455 = vunpack.c.h.bf16 %v4057
        %v4456 = vunpack.c.l.bf16 %v4058
        %v4457 = vunpack.c.h.bf16 %v4058
        %v4458 = vunpack.c.l.bf16 %v4059
        %v4459 = vunpack.c.h.bf16 %v4059
        %v4460 = vunpack.c.l.bf16 %v4060
        %v4461 = vunpack.c.h.bf16 %v4060
        %v4462 = vunpack.c.l.bf16 %v4061
        %v4463 = vunpack.c.h.bf16 %v4061
        %v4464 = vunpack.c.l.bf16 %v4062
        %v4465 = vunpack.c.h.bf16 %v4062
        %v4466 = vunpack.c.l.bf16 %v4063
        %v4467 = vunpack.c.h.bf16 %v4063
        %v4468 = vunpack.c.l.bf16 %v4064
        %v4469 = vunpack.c.h.bf16 %v4064
        %v4470 = vunpack.c.l.bf16 %v4065
        %v4471 = vunpack.c.h.bf16 %v4065
        %v4472 = vunpack.c.l.bf16 %v4066
        %v4473 = vunpack.c.h.bf16 %v4066
        %v4474 = vunpack.c.l.bf16 %v4067
        %v4475 = vunpack.c.h.bf16 %v4067
        %v4476 = vunpack.c.l.bf16 %v4068
        %v4477 = vunpack.c.h.bf16 %v4068
        %v4478 = vunpack.c.l.bf16 %v4069
        %v4479 = vunpack.c.h.bf16 %v4069
        %v4480 = vunpack.c.l.bf16 %v4070
        %v4481 = vunpack.c.h.bf16 %v4070
        %v4482 = vunpack.c.l.bf16 %v4071
        %v4483 = vunpack.c.h.bf16 %v4071
        %v4484 = vunpack.c.l.bf16 %v4072
        %v4485 = vunpack.c.h.bf16 %v4072
        %v4486 = vunpack.c.l.bf16 %v4073
        %v4487 = vunpack.c.h.bf16 %v4073
        %v4488 = vunpack.c.l.bf16 %v4074
        %v4489 = vunpack.c.h.bf16 %v4074
        %v4490 = vunpack.c.l.bf16 %v4075
        %v4491 = vunpack.c.h.bf16 %v4075
        %v4492 = vunpack.c.l.bf16 %v4076
        %v4493 = vunpack.c.h.bf16 %v4076
        %v4494 = vunpack.c.l.bf16 %v4077
        %v4495 = vunpack.c.h.bf16 %v4077
        %v4496 = vunpack.c.l.bf16 %v4078
        %v4497 = vunpack.c.h.bf16 %v4078
        %v4498 = vunpack.c.l.bf16 %v4079
        %v4499 = vunpack.c.h.bf16 %v4079
        %v4500 = vunpack.c.l.bf16 %v4080
        %v4501 = vunpack.c.h.bf16 %v4080
        %v4502 = vunpack.c.l.bf16 %v4081
        %v4503 = vunpack.c.h.bf16 %v4081
        %v4504 = vunpack.c.l.bf16 %v4082
        %v4505 = vunpack.c.h.bf16 %v4082
        %v4506 = vunpack.c.l.bf16 %v4083
        %v4507 = vunpack.c.h.bf16 %v4083
        %v4508 = vunpack.c.l.bf16 %v4084
        %v4509 = vunpack.c.h.bf16 %v4084
        %v4510 = vunpack.c.l.bf16 %v4085
        %v4511 = vunpack.c.h.bf16 %v4085
        %v4512 = vunpack.c.l.bf16 %v4086
        %v4513 = vunpack.c.h.bf16 %v4086
        %v4514 = vunpack.c.l.bf16 %v4087
        %v4515 = vunpack.c.h.bf16 %v4087
        %v4516 = vunpack.c.l.bf16 %v4088
        %v4517 = vunpack.c.h.bf16 %v4088
        %v4518 = vunpack.c.l.bf16 %v4089
        %v4519 = vunpack.c.h.bf16 %v4089
        %v4520 = vunpack.c.l.bf16 %v4090
        %v4521 = vunpack.c.h.bf16 %v4090
        %v4522 = vunpack.c.l.bf16 %v4091
        %v4523 = vunpack.c.h.bf16 %v4091
        %v4524 = vunpack.c.l.bf16 %v4092
        %v4525 = vunpack.c.h.bf16 %v4092
        %v4526 = vunpack.c.l.bf16 %v4093
        %v4527 = vunpack.c.h.bf16 %v4093
        %v4528 = vunpack.c.l.bf16 %v4094
        %v4529 = vunpack.c.h.bf16 %v4094
        %v4530 = vunpack.c.l.bf16 %v4095
        %v4531 = vunpack.c.h.bf16 %v4095
        %v4532 = vunpack.c.l.bf16 %v4096
        %v4533 = vunpack.c.h.bf16 %v4096
        %v4534 = vunpack.c.l.bf16 %v4097
        %v4535 = vunpack.c.h.bf16 %v4097
        %v4536 = vunpack.c.l.bf16 %v4098
        %v4537 = vunpack.c.h.bf16 %v4098
        %v4538 = vunpack.c.l.bf16 %v4099
        %v4539 = vunpack.c.h.bf16 %v4099
        %v4540 = vunpack.c.l.bf16 %v4100
        %v4541 = vunpack.c.h.bf16 %v4100
        %v4542 = vunpack.c.l.bf16 %v4101
        %v4543 = vunpack.c.h.bf16 %v4101
        %v4544 = vunpack.c.l.bf16 %v4102
        %v4545 = vunpack.c.h.bf16 %v4102
        %v4546 = vunpack.c.l.bf16 %v4103
        %v4547 = vunpack.c.h.bf16 %v4103
        %v4548 = vunpack.c.l.bf16 %v4104
        %v4549 = vunpack.c.h.bf16 %v4104
        %v4550 = vunpack.c.l.bf16 %v4105
        %v4551 = vunpack.c.h.bf16 %v4105
        %v4552 = vunpack.c.l.bf16 %v4106
        %v4553 = vunpack.c.h.bf16 %v4106
        %v4554 = vunpack.c.l.bf16 %v4107
        %v4555 = vunpack.c.h.bf16 %v4107
        %v4780 = vlaneseq
        %v4781 = vand.u32 %v4780, 127
        %v4782 = vperm.slane %v3659, %v4781
        %v4783 = vadd.s32 %v4781, 4294967288
        %v4784 = vperm.slane %v3660, %v4783
        %vm4785 = vcmask 130112
        %v4786 = vsel %vm4785, %v4784, %v4782
        %v4787 = vadd.s32 %v4781, 4294967280
        %v4788 = vperm.slane %v3661, %v4787
        %vm4789 = vcmask 195712
        %v4790 = vsel %vm4789, %v4788, %v4786
        %v4791 = vadd.s32 %v4781, 4294967272
        %v4792 = vperm.slane %v3662, %v4791
        %vm4793 = vcmask 261312
        %v4794 = vsel %vm4793, %v4792, %v4790
        %v4795 = vadd.s32 %v4781, 4294967264
        %v4796 = vperm.slane %v3663, %v4795
        %vm4797 = vcmask 326912
        %v4798 = vsel %vm4797, %v4796, %v4794
        %v4799 = vadd.s32 %v4781, 4294967256
        %v4800 = vperm.slane %v3664, %v4799
        %vm4801 = vcmask 392512
        %v4802 = vsel %vm4801, %v4800, %v4798
        %v4803 = vadd.s32 %v4781, 4294967248
        %v4804 = vperm.slane %v3665, %v4803
        %vm4805 = vcmask 458112
        %v4806 = vsel %vm4805, %v4804, %v4802
        %v4807 = vadd.s32 %v4781, 4294967240
        %v4808 = vperm.slane %v3666, %v4807
        %vm4809 = vcmask 523712
        %v4810 = vsel %vm4809, %v4808, %v4806
        %v4811 = vadd.s32 %v4781, 4294967232
        %v4812 = vperm.slane %v3667, %v4811
        %vm4813 = vcmask 589312
        %v4814 = vsel %vm4813, %v4812, %v4810
        %v4815 = vadd.s32 %v4781, 4294967224
        %v4816 = vperm.slane %v3668, %v4815
        %vm4817 = vcmask 654912
        %v4818 = vsel %vm4817, %v4816, %v4814
        %v4819 = vadd.s32 %v4781, 4294967216
        %v4820 = vperm.slane %v3669, %v4819
        %vm4821 = vcmask 720512
        %v4822 = vsel %vm4821, %v4820, %v4818
        %v4823 = vadd.s32 %v4781, 4294967208
        %v4824 = vperm.slane %v3670, %v4823
        %vm4825 = vcmask 786112
        %v4826 = vsel %vm4825, %v4824, %v4822
        %v4827 = vadd.s32 %v4781, 4294967200
        %v4828 = vperm.slane %v3671, %v4827
        %vm4829 = vcmask 851712
        %v4830 = vsel %vm4829, %v4828, %v4826
        %v4831 = vadd.s32 %v4781, 4294967192
        %v4832 = vperm.slane %v3672, %v4831
        %vm4833 = vcmask 917312
        %v4834 = vsel %vm4833, %v4832, %v4830
        %v4835 = vadd.s32 %v4781, 4294967184
        %v4836 = vperm.slane %v3673, %v4835
        %vm4837 = vcmask 982912
        %v4838 = vsel %vm4837, %v4836, %v4834
        %v4839 = vadd.s32 %v4781, 4294967176
        %v4840 = vperm.slane %v3674, %v4839
        %vm4841 = vcmask 1048512
        %v4842 = vsel %vm4841, %v4840, %v4838
        %v4843 = vperm.slane %v3675, %v4781
        %v4844 = vperm.slane %v3676, %v4783
        %v4845 = vsel %vm4785, %v4844, %v4843
        %v4846 = vperm.slane %v3677, %v4787
        %v4847 = vsel %vm4789, %v4846, %v4845
        %v4848 = vperm.slane %v3678, %v4791
        %v4849 = vsel %vm4793, %v4848, %v4847
        %v4850 = vperm.slane %v3679, %v4795
        %v4851 = vsel %vm4797, %v4850, %v4849
        %v4852 = vperm.slane %v3680, %v4799
        %v4853 = vsel %vm4801, %v4852, %v4851
        %v4854 = vperm.slane %v3681, %v4803
        %v4855 = vsel %vm4805, %v4854, %v4853
        %v4856 = vperm.slane %v3682, %v4807
        %v4857 = vsel %vm4809, %v4856, %v4855
        %v4858 = vperm.slane %v3683, %v4811
        %v4859 = vsel %vm4813, %v4858, %v4857
        %v4860 = vperm.slane %v3684, %v4815
        %v4861 = vsel %vm4817, %v4860, %v4859
        %v4862 = vperm.slane %v3685, %v4819
        %v4863 = vsel %vm4821, %v4862, %v4861
        %v4864 = vperm.slane %v3686, %v4823
        %v4865 = vsel %vm4825, %v4864, %v4863
        %v4866 = vperm.slane %v3687, %v4827
        %v4867 = vsel %vm4829, %v4866, %v4865
        %v4868 = vperm.slane %v3688, %v4831
        %v4869 = vsel %vm4833, %v4868, %v4867
        %v4870 = vperm.slane %v3689, %v4835
        %v4871 = vsel %vm4837, %v4870, %v4869
        %v4872 = vperm.slane %v3690, %v4839
        %v4873 = vsel %vm4841, %v4872, %v4871
        %v4874 = vperm.slane %v3691, %v4781
        %v4875 = vperm.slane %v3692, %v4783
        %v4876 = vsel %vm4785, %v4875, %v4874
        %v4877 = vperm.slane %v3693, %v4787
        %v4878 = vsel %vm4789, %v4877, %v4876
        %v4879 = vperm.slane %v3694, %v4791
        %v4880 = vsel %vm4793, %v4879, %v4878
        %v4881 = vperm.slane %v3695, %v4795
        %v4882 = vsel %vm4797, %v4881, %v4880
        %v4883 = vperm.slane %v3696, %v4799
        %v4884 = vsel %vm4801, %v4883, %v4882
        %v4885 = vperm.slane %v3697, %v4803
        %v4886 = vsel %vm4805, %v4885, %v4884
        %v4887 = vperm.slane %v3698, %v4807
        %v4888 = vsel %vm4809, %v4887, %v4886
        %v4889 = vperm.slane %v3699, %v4811
        %v4890 = vsel %vm4813, %v4889, %v4888
        %v4891 = vperm.slane %v3700, %v4815
        %v4892 = vsel %vm4817, %v4891, %v4890
        %v4893 = vperm.slane %v3701, %v4819
        %v4894 = vsel %vm4821, %v4893, %v4892
        %v4895 = vperm.slane %v3702, %v4823
        %v4896 = vsel %vm4825, %v4895, %v4894
        %v4897 = vperm.slane %v3703, %v4827
        %v4898 = vsel %vm4829, %v4897, %v4896
        %v4899 = vperm.slane %v3704, %v4831
        %v4900 = vsel %vm4833, %v4899, %v4898
        %v4901 = vperm.slane %v3705, %v4835
        %v4902 = vsel %vm4837, %v4901, %v4900
        %v4903 = vperm.slane %v3706, %v4839
        %v4904 = vsel %vm4841, %v4903, %v4902
        %v4905 = vperm.slane %v3707, %v4781
        %v4906 = vperm.slane %v3708, %v4783
        %v4907 = vsel %vm4785, %v4906, %v4905
        %v4908 = vperm.slane %v3709, %v4787
        %v4909 = vsel %vm4789, %v4908, %v4907
        %v4910 = vperm.slane %v3710, %v4791
        %v4911 = vsel %vm4793, %v4910, %v4909
        %v4912 = vperm.slane %v3711, %v4795
        %v4913 = vsel %vm4797, %v4912, %v4911
        %v4914 = vperm.slane %v3712, %v4799
        %v4915 = vsel %vm4801, %v4914, %v4913
        %v4916 = vperm.slane %v3713, %v4803
        %v4917 = vsel %vm4805, %v4916, %v4915
        %v4918 = vperm.slane %v3714, %v4807
        %v4919 = vsel %vm4809, %v4918, %v4917
        %v4920 = vperm.slane %v3715, %v4811
        %v4921 = vsel %vm4813, %v4920, %v4919
        %v4922 = vperm.slane %v3716, %v4815
        %v4923 = vsel %vm4817, %v4922, %v4921
        %v4924 = vperm.slane %v3717, %v4819
        %v4925 = vsel %vm4821, %v4924, %v4923
        %v4926 = vperm.slane %v3718, %v4823
        %v4927 = vsel %vm4825, %v4926, %v4925
        %v4928 = vperm.slane %v3719, %v4827
        %v4929 = vsel %vm4829, %v4928, %v4927
        %v4930 = vperm.slane %v3720, %v4831
        %v4931 = vsel %vm4833, %v4930, %v4929
        %v4932 = vperm.slane %v3721, %v4835
        %v4933 = vsel %vm4837, %v4932, %v4931
        %v4934 = vperm.slane %v3722, %v4839
        %v4935 = vsel %vm4841, %v4934, %v4933
        %v4936 = vperm.slane %v3723, %v4781
        %v4937 = vperm.slane %v3724, %v4783
        %v4938 = vsel %vm4785, %v4937, %v4936
        %v4939 = vperm.slane %v3725, %v4787
        %v4940 = vsel %vm4789, %v4939, %v4938
        %v4941 = vperm.slane %v3726, %v4791
        %v4942 = vsel %vm4793, %v4941, %v4940
        %v4943 = vperm.slane %v3727, %v4795
        %v4944 = vsel %vm4797, %v4943, %v4942
        %v4945 = vperm.slane %v3728, %v4799
        %v4946 = vsel %vm4801, %v4945, %v4944
        %v4947 = vperm.slane %v3729, %v4803
        %v4948 = vsel %vm4805, %v4947, %v4946
        %v4949 = vperm.slane %v3730, %v4807
        %v4950 = vsel %vm4809, %v4949, %v4948
        %v4951 = vperm.slane %v3731, %v4811
        %v4952 = vsel %vm4813, %v4951, %v4950
        %v4953 = vperm.slane %v3732, %v4815
        %v4954 = vsel %vm4817, %v4953, %v4952
        %v4955 = vperm.slane %v3733, %v4819
        %v4956 = vsel %vm4821, %v4955, %v4954
        %v4957 = vperm.slane %v3734, %v4823
        %v4958 = vsel %vm4825, %v4957, %v4956
        %v4959 = vperm.slane %v3735, %v4827
        %v4960 = vsel %vm4829, %v4959, %v4958
        %v4961 = vperm.slane %v3736, %v4831
        %v4962 = vsel %vm4833, %v4961, %v4960
        %v4963 = vperm.slane %v3737, %v4835
        %v4964 = vsel %vm4837, %v4963, %v4962
        %v4965 = vperm.slane %v3738, %v4839
        %v4966 = vsel %vm4841, %v4965, %v4964
        %v4967 = vperm.slane %v3739, %v4781
        %v4968 = vperm.slane %v3740, %v4783
        %v4969 = vsel %vm4785, %v4968, %v4967
        %v4970 = vperm.slane %v3741, %v4787
        %v4971 = vsel %vm4789, %v4970, %v4969
        %v4972 = vperm.slane %v3742, %v4791
        %v4973 = vsel %vm4793, %v4972, %v4971
        %v4974 = vperm.slane %v3743, %v4795
        %v4975 = vsel %vm4797, %v4974, %v4973
        %v4976 = vperm.slane %v3744, %v4799
        %v4977 = vsel %vm4801, %v4976, %v4975
        %v4978 = vperm.slane %v3745, %v4803
        %v4979 = vsel %vm4805, %v4978, %v4977
        %v4980 = vperm.slane %v3746, %v4807
        %v4981 = vsel %vm4809, %v4980, %v4979
        %v4982 = vperm.slane %v3747, %v4811
        %v4983 = vsel %vm4813, %v4982, %v4981
        %v4984 = vperm.slane %v3748, %v4815
        %v4985 = vsel %vm4817, %v4984, %v4983
        %v4986 = vperm.slane %v3749, %v4819
        %v4987 = vsel %vm4821, %v4986, %v4985
        %v4988 = vperm.slane %v3750, %v4823
        %v4989 = vsel %vm4825, %v4988, %v4987
        %v4990 = vperm.slane %v3751, %v4827
        %v4991 = vsel %vm4829, %v4990, %v4989
        %v4992 = vperm.slane %v3752, %v4831
        %v4993 = vsel %vm4833, %v4992, %v4991
        %v4994 = vperm.slane %v3753, %v4835
        %v4995 = vsel %vm4837, %v4994, %v4993
        %v4996 = vperm.slane %v3754, %v4839
        %v4997 = vsel %vm4841, %v4996, %v4995
        %v4998 = vperm.slane %v3755, %v4781
        %v4999 = vperm.slane %v3756, %v4783
        %v5000 = vsel %vm4785, %v4999, %v4998
        %v5001 = vperm.slane %v3757, %v4787
        %v5002 = vsel %vm4789, %v5001, %v5000
        %v5003 = vperm.slane %v3758, %v4791
        %v5004 = vsel %vm4793, %v5003, %v5002
        %v5005 = vperm.slane %v3759, %v4795
        %v5006 = vsel %vm4797, %v5005, %v5004
        %v5007 = vperm.slane %v3760, %v4799
        %v5008 = vsel %vm4801, %v5007, %v5006
        %v5009 = vperm.slane %v3761, %v4803
        %v5010 = vsel %vm4805, %v5009, %v5008
        %v5011 = vperm.slane %v3762, %v4807
        %v5012 = vsel %vm4809, %v5011, %v5010
        %v5013 = vperm.slane %v3763, %v4811
        %v5014 = vsel %vm4813, %v5013, %v5012
        %v5015 = vperm.slane %v3764, %v4815
        %v5016 = vsel %vm4817, %v5015, %v5014
        %v5017 = vperm.slane %v3765, %v4819
        %v5018 = vsel %vm4821, %v5017, %v5016
        %v5019 = vperm.slane %v3766, %v4823
        %v5020 = vsel %vm4825, %v5019, %v5018
        %v5021 = vperm.slane %v3767, %v4827
        %v5022 = vsel %vm4829, %v5021, %v5020
        %v5023 = vperm.slane %v3768, %v4831
        %v5024 = vsel %vm4833, %v5023, %v5022
        %v5025 = vperm.slane %v3769, %v4835
        %v5026 = vsel %vm4837, %v5025, %v5024
        %v5027 = vperm.slane %v3770, %v4839
        %v5028 = vsel %vm4841, %v5027, %v5026
        %v5029 = vperm.slane %v3771, %v4781
        %v5030 = vperm.slane %v3772, %v4783
        %v5031 = vsel %vm4785, %v5030, %v5029
        %v5032 = vperm.slane %v3773, %v4787
        %v5033 = vsel %vm4789, %v5032, %v5031
        %v5034 = vperm.slane %v3774, %v4791
        %v5035 = vsel %vm4793, %v5034, %v5033
        %v5036 = vperm.slane %v3775, %v4795
        %v5037 = vsel %vm4797, %v5036, %v5035
        %v5038 = vperm.slane %v3776, %v4799
        %v5039 = vsel %vm4801, %v5038, %v5037
        %v5040 = vperm.slane %v3777, %v4803
        %v5041 = vsel %vm4805, %v5040, %v5039
        %v5042 = vperm.slane %v3778, %v4807
        %v5043 = vsel %vm4809, %v5042, %v5041
        %v5044 = vperm.slane %v3779, %v4811
        %v5045 = vsel %vm4813, %v5044, %v5043
        %v5046 = vperm.slane %v3780, %v4815
        %v5047 = vsel %vm4817, %v5046, %v5045
        %v5048 = vperm.slane %v3781, %v4819
        %v5049 = vsel %vm4821, %v5048, %v5047
        %v5050 = vperm.slane %v3782, %v4823
        %v5051 = vsel %vm4825, %v5050, %v5049
        %v5052 = vperm.slane %v3783, %v4827
        %v5053 = vsel %vm4829, %v5052, %v5051
        %v5054 = vperm.slane %v3784, %v4831
        %v5055 = vsel %vm4833, %v5054, %v5053
        %v5056 = vperm.slane %v3785, %v4835
        %v5057 = vsel %vm4837, %v5056, %v5055
        %v5058 = vperm.slane %v3786, %v4839
        %v5059 = vsel %vm4841, %v5058, %v5057
        %v5060 = vperm.slane %v3787, %v4781
        %v5061 = vperm.slane %v3788, %v4783
        %v5062 = vsel %vm4785, %v5061, %v5060
        %v5063 = vperm.slane %v3789, %v4787
        %v5064 = vsel %vm4789, %v5063, %v5062
        %v5065 = vperm.slane %v3790, %v4791
        %v5066 = vsel %vm4793, %v5065, %v5064
        %v5067 = vperm.slane %v3791, %v4795
        %v5068 = vsel %vm4797, %v5067, %v5066
        %v5069 = vperm.slane %v3792, %v4799
        %v5070 = vsel %vm4801, %v5069, %v5068
        %v5071 = vperm.slane %v3793, %v4803
        %v5072 = vsel %vm4805, %v5071, %v5070
        %v5073 = vperm.slane %v3794, %v4807
        %v5074 = vsel %vm4809, %v5073, %v5072
        %v5075 = vperm.slane %v3795, %v4811
        %v5076 = vsel %vm4813, %v5075, %v5074
        %v5077 = vperm.slane %v3796, %v4815
        %v5078 = vsel %vm4817, %v5077, %v5076
        %v5079 = vperm.slane %v3797, %v4819
        %v5080 = vsel %vm4821, %v5079, %v5078
        %v5081 = vperm.slane %v3798, %v4823
        %v5082 = vsel %vm4825, %v5081, %v5080
        %v5083 = vperm.slane %v3799, %v4827
        %v5084 = vsel %vm4829, %v5083, %v5082
        %v5085 = vperm.slane %v3800, %v4831
        %v5086 = vsel %vm4833, %v5085, %v5084
        %v5087 = vperm.slane %v3801, %v4835
        %v5088 = vsel %vm4837, %v5087, %v5086
        %v5089 = vperm.slane %v3802, %v4839
        %v5090 = vsel %vm4841, %v5089, %v5088
        %v5091 = vperm.slane %v3803, %v4781
        %v5092 = vperm.slane %v3804, %v4783
        %v5093 = vsel %vm4785, %v5092, %v5091
        %v5094 = vperm.slane %v3805, %v4787
        %v5095 = vsel %vm4789, %v5094, %v5093
        %v5096 = vperm.slane %v3806, %v4791
        %v5097 = vsel %vm4793, %v5096, %v5095
        %v5098 = vperm.slane %v3807, %v4795
        %v5099 = vsel %vm4797, %v5098, %v5097
        %v5100 = vperm.slane %v3808, %v4799
        %v5101 = vsel %vm4801, %v5100, %v5099
        %v5102 = vperm.slane %v3809, %v4803
        %v5103 = vsel %vm4805, %v5102, %v5101
        %v5104 = vperm.slane %v3810, %v4807
        %v5105 = vsel %vm4809, %v5104, %v5103
        %v5106 = vperm.slane %v3811, %v4811
        %v5107 = vsel %vm4813, %v5106, %v5105
        %v5108 = vperm.slane %v3812, %v4815
        %v5109 = vsel %vm4817, %v5108, %v5107
        %v5110 = vperm.slane %v3813, %v4819
        %v5111 = vsel %vm4821, %v5110, %v5109
        %v5112 = vperm.slane %v3814, %v4823
        %v5113 = vsel %vm4825, %v5112, %v5111
        %v5114 = vperm.slane %v3815, %v4827
        %v5115 = vsel %vm4829, %v5114, %v5113
        %v5116 = vperm.slane %v3816, %v4831
        %v5117 = vsel %vm4833, %v5116, %v5115
        %v5118 = vperm.slane %v3817, %v4835
        %v5119 = vsel %vm4837, %v5118, %v5117
        %v5120 = vperm.slane %v3818, %v4839
        %v5121 = vsel %vm4841, %v5120, %v5119
        %v5122 = vperm.slane %v3819, %v4781
        %v5123 = vperm.slane %v3820, %v4783
        %v5124 = vsel %vm4785, %v5123, %v5122
        %v5125 = vperm.slane %v3821, %v4787
        %v5126 = vsel %vm4789, %v5125, %v5124
        %v5127 = vperm.slane %v3822, %v4791
        %v5128 = vsel %vm4793, %v5127, %v5126
        %v5129 = vperm.slane %v3823, %v4795
        %v5130 = vsel %vm4797, %v5129, %v5128
        %v5131 = vperm.slane %v3824, %v4799
        %v5132 = vsel %vm4801, %v5131, %v5130
        %v5133 = vperm.slane %v3825, %v4803
        %v5134 = vsel %vm4805, %v5133, %v5132
        %v5135 = vperm.slane %v3826, %v4807
        %v5136 = vsel %vm4809, %v5135, %v5134
        %v5137 = vperm.slane %v3827, %v4811
        %v5138 = vsel %vm4813, %v5137, %v5136
        %v5139 = vperm.slane %v3828, %v4815
        %v5140 = vsel %vm4817, %v5139, %v5138
        %v5141 = vperm.slane %v3829, %v4819
        %v5142 = vsel %vm4821, %v5141, %v5140
        %v5143 = vperm.slane %v3830, %v4823
        %v5144 = vsel %vm4825, %v5143, %v5142
        %v5145 = vperm.slane %v3831, %v4827
        %v5146 = vsel %vm4829, %v5145, %v5144
        %v5147 = vperm.slane %v3832, %v4831
        %v5148 = vsel %vm4833, %v5147, %v5146
        %v5149 = vperm.slane %v3833, %v4835
        %v5150 = vsel %vm4837, %v5149, %v5148
        %v5151 = vperm.slane %v3834, %v4839
        %v5152 = vsel %vm4841, %v5151, %v5150
        %v5153 = vperm.slane %v3835, %v4781
        %v5154 = vperm.slane %v3836, %v4783
        %v5155 = vsel %vm4785, %v5154, %v5153
        %v5156 = vperm.slane %v3837, %v4787
        %v5157 = vsel %vm4789, %v5156, %v5155
        %v5158 = vperm.slane %v3838, %v4791
        %v5159 = vsel %vm4793, %v5158, %v5157
        %v5160 = vperm.slane %v3839, %v4795
        %v5161 = vsel %vm4797, %v5160, %v5159
        %v5162 = vperm.slane %v3840, %v4799
        %v5163 = vsel %vm4801, %v5162, %v5161
        %v5164 = vperm.slane %v3841, %v4803
        %v5165 = vsel %vm4805, %v5164, %v5163
        %v5166 = vperm.slane %v3842, %v4807
        %v5167 = vsel %vm4809, %v5166, %v5165
        %v5168 = vperm.slane %v3843, %v4811
        %v5169 = vsel %vm4813, %v5168, %v5167
        %v5170 = vperm.slane %v3844, %v4815
        %v5171 = vsel %vm4817, %v5170, %v5169
        %v5172 = vperm.slane %v3845, %v4819
        %v5173 = vsel %vm4821, %v5172, %v5171
        %v5174 = vperm.slane %v3846, %v4823
        %v5175 = vsel %vm4825, %v5174, %v5173
        %v5176 = vperm.slane %v3847, %v4827
        %v5177 = vsel %vm4829, %v5176, %v5175
        %v5178 = vperm.slane %v3848, %v4831
        %v5179 = vsel %vm4833, %v5178, %v5177
        %v5180 = vperm.slane %v3849, %v4835
        %v5181 = vsel %vm4837, %v5180, %v5179
        %v5182 = vperm.slane %v3850, %v4839
        %v5183 = vsel %vm4841, %v5182, %v5181
        %v5184 = vperm.slane %v3851, %v4781
        %v5185 = vperm.slane %v3852, %v4783
        %v5186 = vsel %vm4785, %v5185, %v5184
        %v5187 = vperm.slane %v3853, %v4787
        %v5188 = vsel %vm4789, %v5187, %v5186
        %v5189 = vperm.slane %v3854, %v4791
        %v5190 = vsel %vm4793, %v5189, %v5188
        %v5191 = vperm.slane %v3855, %v4795
        %v5192 = vsel %vm4797, %v5191, %v5190
        %v5193 = vperm.slane %v3856, %v4799
        %v5194 = vsel %vm4801, %v5193, %v5192
        %v5195 = vperm.slane %v3857, %v4803
        %v5196 = vsel %vm4805, %v5195, %v5194
        %v5197 = vperm.slane %v3858, %v4807
        %v5198 = vsel %vm4809, %v5197, %v5196
        %v5199 = vperm.slane %v3859, %v4811
        %v5200 = vsel %vm4813, %v5199, %v5198
        %v5201 = vperm.slane %v3860, %v4815
        %v5202 = vsel %vm4817, %v5201, %v5200
        %v5203 = vperm.slane %v3861, %v4819
        %v5204 = vsel %vm4821, %v5203, %v5202
        %v5205 = vperm.slane %v3862, %v4823
        %v5206 = vsel %vm4825, %v5205, %v5204
        %v5207 = vperm.slane %v3863, %v4827
        %v5208 = vsel %vm4829, %v5207, %v5206
        %v5209 = vperm.slane %v3864, %v4831
        %v5210 = vsel %vm4833, %v5209, %v5208
        %v5211 = vperm.slane %v3865, %v4835
        %v5212 = vsel %vm4837, %v5211, %v5210
        %v5213 = vperm.slane %v3866, %v4839
        %v5214 = vsel %vm4841, %v5213, %v5212
        %v5215 = vperm.slane %v3867, %v4781
        %v5216 = vperm.slane %v3868, %v4783
        %v5217 = vsel %vm4785, %v5216, %v5215
        %v5218 = vperm.slane %v3869, %v4787
        %v5219 = vsel %vm4789, %v5218, %v5217
        %v5220 = vperm.slane %v3870, %v4791
        %v5221 = vsel %vm4793, %v5220, %v5219
        %v5222 = vperm.slane %v3871, %v4795
        %v5223 = vsel %vm4797, %v5222, %v5221
        %v5224 = vperm.slane %v3872, %v4799
        %v5225 = vsel %vm4801, %v5224, %v5223
        %v5226 = vperm.slane %v3873, %v4803
        %v5227 = vsel %vm4805, %v5226, %v5225
        %v5228 = vperm.slane %v3874, %v4807
        %v5229 = vsel %vm4809, %v5228, %v5227
        %v5230 = vperm.slane %v3875, %v4811
        %v5231 = vsel %vm4813, %v5230, %v5229
        %v5232 = vperm.slane %v3876, %v4815
        %v5233 = vsel %vm4817, %v5232, %v5231
        %v5234 = vperm.slane %v3877, %v4819
        %v5235 = vsel %vm4821, %v5234, %v5233
        %v5236 = vperm.slane %v3878, %v4823
        %v5237 = vsel %vm4825, %v5236, %v5235
        %v5238 = vperm.slane %v3879, %v4827
        %v5239 = vsel %vm4829, %v5238, %v5237
        %v5240 = vperm.slane %v3880, %v4831
        %v5241 = vsel %vm4833, %v5240, %v5239
        %v5242 = vperm.slane %v3881, %v4835
        %v5243 = vsel %vm4837, %v5242, %v5241
        %v5244 = vperm.slane %v3882, %v4839
        %v5245 = vsel %vm4841, %v5244, %v5243
        %vm5246 = vcmask 1041409
        %v5247 = vsel %vm5246, %v5059, %v4842
        %v5248 = vsel %vm5246, %v5090, %v4873
        %v5249 = vsel %vm5246, %v5121, %v4904
        %v5250 = vsel %vm5246, %v5152, %v4935
        %v5251 = vsel %vm5246, %v5183, %v4966
        %v5252 = vsel %vm5246, %v5214, %v4997
        %v5253 = vsel %vm5246, %v5245, %v5028
        %5261 = vmatpush.msra.mxu0 %v4168
        %5262 = vmatpush.msra.mxu0 %v4164
        %5263 = vmatpush.msra.mxu0 %v4160
        %5264 = vmatpush.msra.mxu0 %v4156
        %5265 = vmatpush.msra.mxu0 %v4152
        %5266 = vmatpush.msra.mxu0 %v4148
        %5267 = vmatpush.msra.mxu0 %v4144
        %5268 = vmatpush.msra.mxu0 %v4140
        %5269 = vmatpush.msra.mxu0 %v4136
        %5270 = vmatpush.msra.mxu0 %v4132
        %5271 = vmatpush.msra.mxu0 %v4128
        %5272 = vmatpush.msra.mxu0 %v4124
        %5273 = vmatpush.msra.mxu0 %v4120
        %5274 = vmatpush.msra.mxu0 %v4116
        %5275 = vmatpush.msra.mxu0 %v4112
        %5276 = vmatpush.msra.mxu0 %v4108
        %5277 = vmatmul.f32.gmra.mxu0 %v5247
        %v5278 = vpop.f32.mrf.mxu0
        %v5279 = vadd.f32 0.0, %v5278
        %5280 = vdwg.mxu0
        %5281 = vmatpush.msra.mxu0 %v4232
        %5282 = vmatpush.msra.mxu0 %v4228
        %5283 = vmatpush.msra.mxu0 %v4224
        %5284 = vmatpush.msra.mxu0 %v4220
        %5285 = vmatpush.msra.mxu0 %v4216
        %5286 = vmatpush.msra.mxu0 %v4212
        %5287 = vmatpush.msra.mxu0 %v4208
        %5288 = vmatpush.msra.mxu0 %v4204
        %5289 = vmatpush.msra.mxu0 %v4200
        %5290 = vmatpush.msra.mxu0 %v4196
        %5291 = vmatpush.msra.mxu0 %v4192
        %5292 = vmatpush.msra.mxu0 %v4188
        %5293 = vmatpush.msra.mxu0 %v4184
        %5294 = vmatpush.msra.mxu0 %v4180
        %5295 = vmatpush.msra.mxu0 %v4176
        %5296 = vmatpush.msra.mxu0 %v4172
        %5297 = vmatmul.f32.gmra.mxu0 %v5248
        %v5298 = vpop.f32.mrf.mxu0
        %v5299 = vadd.f32 %v5279, %v5298
        %5300 = vdwg.mxu0
        %5301 = vmatpush.msra.mxu0 %v4296
        %5302 = vmatpush.msra.mxu0 %v4292
        %5303 = vmatpush.msra.mxu0 %v4288
        %5304 = vmatpush.msra.mxu0 %v4284
        %5305 = vmatpush.msra.mxu0 %v4280
        %5306 = vmatpush.msra.mxu0 %v4276
        %5307 = vmatpush.msra.mxu0 %v4272
        %5308 = vmatpush.msra.mxu0 %v4268
        %5309 = vmatpush.msra.mxu0 %v4264
        %5310 = vmatpush.msra.mxu0 %v4260
        %5311 = vmatpush.msra.mxu0 %v4256
        %5312 = vmatpush.msra.mxu0 %v4252
        %5313 = vmatpush.msra.mxu0 %v4248
        %5314 = vmatpush.msra.mxu0 %v4244
        %5315 = vmatpush.msra.mxu0 %v4240
        %5316 = vmatpush.msra.mxu0 %v4236
        %5317 = vmatmul.f32.gmra.mxu0 %v5249
        %v5318 = vpop.f32.mrf.mxu0
        %v5319 = vadd.f32 %v5299, %v5318
        %5320 = vdwg.mxu0
        %5321 = vmatpush.msra.mxu0 %v4360
        %5322 = vmatpush.msra.mxu0 %v4356
        %5323 = vmatpush.msra.mxu0 %v4352
        %5324 = vmatpush.msra.mxu0 %v4348
        %5325 = vmatpush.msra.mxu0 %v4344
        %5326 = vmatpush.msra.mxu0 %v4340
        %5327 = vmatpush.msra.mxu0 %v4336
        %5328 = vmatpush.msra.mxu0 %v4332
        %5329 = vmatpush.msra.mxu0 %v4328
        %5330 = vmatpush.msra.mxu0 %v4324
        %5331 = vmatpush.msra.mxu0 %v4320
        %5332 = vmatpush.msra.mxu0 %v4316
        %5333 = vmatpush.msra.mxu0 %v4312
        %5334 = vmatpush.msra.mxu0 %v4308
        %5335 = vmatpush.msra.mxu0 %v4304
        %5336 = vmatpush.msra.mxu0 %v4300
        %5337 = vmatmul.f32.gmra.mxu0 %v5250
        %v5338 = vpop.f32.mrf.mxu0
        %v5339 = vadd.f32 %v5319, %v5338
        %5340 = vdwg.mxu0
        %5341 = vmatpush.msra.mxu0 %v4424
        %5342 = vmatpush.msra.mxu0 %v4420
        %5343 = vmatpush.msra.mxu0 %v4416
        %5344 = vmatpush.msra.mxu0 %v4412
        %5345 = vmatpush.msra.mxu0 %v4408
        %5346 = vmatpush.msra.mxu0 %v4404
        %5347 = vmatpush.msra.mxu0 %v4400
        %5348 = vmatpush.msra.mxu0 %v4396
        %5349 = vmatpush.msra.mxu0 %v4392
        %5350 = vmatpush.msra.mxu0 %v4388
        %5351 = vmatpush.msra.mxu0 %v4384
        %5352 = vmatpush.msra.mxu0 %v4380
        %5353 = vmatpush.msra.mxu0 %v4376
        %5354 = vmatpush.msra.mxu0 %v4372
        %5355 = vmatpush.msra.mxu0 %v4368
        %5356 = vmatpush.msra.mxu0 %v4364
        %5357 = vmatmul.f32.gmra.mxu0 %v5251
        %v5358 = vpop.f32.mrf.mxu0
        %v5359 = vadd.f32 %v5339, %v5358
        %5360 = vdwg.mxu0
        %5361 = vmatpush.msra.mxu0 %v4488
        %5362 = vmatpush.msra.mxu0 %v4484
        %5363 = vmatpush.msra.mxu0 %v4480
        %5364 = vmatpush.msra.mxu0 %v4476
        %5365 = vmatpush.msra.mxu0 %v4472
        %5366 = vmatpush.msra.mxu0 %v4468
        %5367 = vmatpush.msra.mxu0 %v4464
        %5368 = vmatpush.msra.mxu0 %v4460
        %5369 = vmatpush.msra.mxu0 %v4456
        %5370 = vmatpush.msra.mxu0 %v4452
        %5371 = vmatpush.msra.mxu0 %v4448
        %5372 = vmatpush.msra.mxu0 %v4444
        %5373 = vmatpush.msra.mxu0 %v4440
        %5374 = vmatpush.msra.mxu0 %v4436
        %5375 = vmatpush.msra.mxu0 %v4432
        %5376 = vmatpush.msra.mxu0 %v4428
        %5377 = vmatmul.f32.gmra.mxu0 %v5252
        %v5378 = vpop.f32.mrf.mxu0
        %v5379 = vadd.f32 %v5359, %v5378
        %5380 = vdwg.mxu0
        %5381 = vmatpush.msra.mxu0 %v4552
        %5382 = vmatpush.msra.mxu0 %v4548
        %5383 = vmatpush.msra.mxu0 %v4544
        %5384 = vmatpush.msra.mxu0 %v4540
        %5385 = vmatpush.msra.mxu0 %v4536
        %5386 = vmatpush.msra.mxu0 %v4532
        %5387 = vmatpush.msra.mxu0 %v4528
        %5388 = vmatpush.msra.mxu0 %v4524
        %5389 = vmatpush.msra.mxu0 %v4520
        %5390 = vmatpush.msra.mxu0 %v4516
        %5391 = vmatpush.msra.mxu0 %v4512
        %5392 = vmatpush.msra.mxu0 %v4508
        %5393 = vmatpush.msra.mxu0 %v4504
        %5394 = vmatpush.msra.mxu0 %v4500
        %5395 = vmatpush.msra.mxu0 %v4496
        %5396 = vmatpush.msra.mxu0 %v4492
        %5397 = vmatmul.f32.gmra.mxu0 %v5253
        %v5398 = vpop.f32.mrf.mxu0
        %v5399 = vadd.f32 %v5379, %v5398
        %5400 = vdwg.mxu0
        %5401 = vmatpush.msra.mxu0 %v4169
        %5402 = vmatpush.msra.mxu0 %v4165
        %5403 = vmatpush.msra.mxu0 %v4161
        %5404 = vmatpush.msra.mxu0 %v4157
        %5405 = vmatpush.msra.mxu0 %v4153
        %5406 = vmatpush.msra.mxu0 %v4149
        %5407 = vmatpush.msra.mxu0 %v4145
        %5408 = vmatpush.msra.mxu0 %v4141
        %5409 = vmatpush.msra.mxu0 %v4137
        %5410 = vmatpush.msra.mxu0 %v4133
        %5411 = vmatpush.msra.mxu0 %v4129
        %5412 = vmatpush.msra.mxu0 %v4125
        %5413 = vmatpush.msra.mxu0 %v4121
        %5414 = vmatpush.msra.mxu0 %v4117
        %5415 = vmatpush.msra.mxu0 %v4113
        %5416 = vmatpush.msra.mxu0 %v4109
        %5417 = vmatmul.f32.gmra.mxu0 %v5247
        %v5418 = vpop.f32.mrf.mxu0
        %v5419 = vadd.f32 0.0, %v5418
        %5420 = vdwg.mxu0
        %5421 = vmatpush.msra.mxu0 %v4233
        %5422 = vmatpush.msra.mxu0 %v4229
        %5423 = vmatpush.msra.mxu0 %v4225
        %5424 = vmatpush.msra.mxu0 %v4221
        %5425 = vmatpush.msra.mxu0 %v4217
        %5426 = vmatpush.msra.mxu0 %v4213
        %5427 = vmatpush.msra.mxu0 %v4209
        %5428 = vmatpush.msra.mxu0 %v4205
        %5429 = vmatpush.msra.mxu0 %v4201
        %5430 = vmatpush.msra.mxu0 %v4197
        %5431 = vmatpush.msra.mxu0 %v4193
        %5432 = vmatpush.msra.mxu0 %v4189
        %5433 = vmatpush.msra.mxu0 %v4185
        %5434 = vmatpush.msra.mxu0 %v4181
        %5435 = vmatpush.msra.mxu0 %v4177
        %5436 = vmatpush.msra.mxu0 %v4173
        %5437 = vmatmul.f32.gmra.mxu0 %v5248
        %v5438 = vpop.f32.mrf.mxu0
        %v5439 = vadd.f32 %v5419, %v5438
        %5440 = vdwg.mxu0
        %5441 = vmatpush.msra.mxu0 %v4297
        %5442 = vmatpush.msra.mxu0 %v4293
        %5443 = vmatpush.msra.mxu0 %v4289
        %5444 = vmatpush.msra.mxu0 %v4285
        %5445 = vmatpush.msra.mxu0 %v4281
        %5446 = vmatpush.msra.mxu0 %v4277
        %5447 = vmatpush.msra.mxu0 %v4273
        %5448 = vmatpush.msra.mxu0 %v4269
        %5449 = vmatpush.msra.mxu0 %v4265
        %5450 = vmatpush.msra.mxu0 %v4261
        %5451 = vmatpush.msra.mxu0 %v4257
        %5452 = vmatpush.msra.mxu0 %v4253
        %5453 = vmatpush.msra.mxu0 %v4249
        %5454 = vmatpush.msra.mxu0 %v4245
        %5455 = vmatpush.msra.mxu0 %v4241
        %5456 = vmatpush.msra.mxu0 %v4237
        %5457 = vmatmul.f32.gmra.mxu0 %v5249
        %v5458 = vpop.f32.mrf.mxu0
        %v5459 = vadd.f32 %v5439, %v5458
        %5460 = vdwg.mxu0
        %5461 = vmatpush.msra.mxu0 %v4361
        %5462 = vmatpush.msra.mxu0 %v4357
        %5463 = vmatpush.msra.mxu0 %v4353
        %5464 = vmatpush.msra.mxu0 %v4349
        %5465 = vmatpush.msra.mxu0 %v4345
        %5466 = vmatpush.msra.mxu0 %v4341
        %5467 = vmatpush.msra.mxu0 %v4337
        %5468 = vmatpush.msra.mxu0 %v4333
        %5469 = vmatpush.msra.mxu0 %v4329
        %5470 = vmatpush.msra.mxu0 %v4325
        %5471 = vmatpush.msra.mxu0 %v4321
        %5472 = vmatpush.msra.mxu0 %v4317
        %5473 = vmatpush.msra.mxu0 %v4313
        %5474 = vmatpush.msra.mxu0 %v4309
        %5475 = vmatpush.msra.mxu0 %v4305
        %5476 = vmatpush.msra.mxu0 %v4301
        %5477 = vmatmul.f32.gmra.mxu0 %v5250
        %v5478 = vpop.f32.mrf.mxu0
        %v5479 = vadd.f32 %v5459, %v5478
        %5480 = vdwg.mxu0
        %5481 = vmatpush.msra.mxu0 %v4425
        %5482 = vmatpush.msra.mxu0 %v4421
        %5483 = vmatpush.msra.mxu0 %v4417
        %5484 = vmatpush.msra.mxu0 %v4413
        %5485 = vmatpush.msra.mxu0 %v4409
        %5486 = vmatpush.msra.mxu0 %v4405
        %5487 = vmatpush.msra.mxu0 %v4401
        %5488 = vmatpush.msra.mxu0 %v4397
        %5489 = vmatpush.msra.mxu0 %v4393
        %5490 = vmatpush.msra.mxu0 %v4389
        %5491 = vmatpush.msra.mxu0 %v4385
        %5492 = vmatpush.msra.mxu0 %v4381
        %5493 = vmatpush.msra.mxu0 %v4377
        %5494 = vmatpush.msra.mxu0 %v4373
        %5495 = vmatpush.msra.mxu0 %v4369
        %5496 = vmatpush.msra.mxu0 %v4365
        %5497 = vmatmul.f32.gmra.mxu0 %v5251
        %v5498 = vpop.f32.mrf.mxu0
        %v5499 = vadd.f32 %v5479, %v5498
        %5500 = vdwg.mxu0
        %5501 = vmatpush.msra.mxu0 %v4489
        %5502 = vmatpush.msra.mxu0 %v4485
        %5503 = vmatpush.msra.mxu0 %v4481
        %5504 = vmatpush.msra.mxu0 %v4477
        %5505 = vmatpush.msra.mxu0 %v4473
        %5506 = vmatpush.msra.mxu0 %v4469
        %5507 = vmatpush.msra.mxu0 %v4465
        %5508 = vmatpush.msra.mxu0 %v4461
        %5509 = vmatpush.msra.mxu0 %v4457
        %5510 = vmatpush.msra.mxu0 %v4453
        %5511 = vmatpush.msra.mxu0 %v4449
        %5512 = vmatpush.msra.mxu0 %v4445
        %5513 = vmatpush.msra.mxu0 %v4441
        %5514 = vmatpush.msra.mxu0 %v4437
        %5515 = vmatpush.msra.mxu0 %v4433
        %5516 = vmatpush.msra.mxu0 %v4429
        %5517 = vmatmul.f32.gmra.mxu0 %v5252
        %v5518 = vpop.f32.mrf.mxu0
        %v5519 = vadd.f32 %v5499, %v5518
        %5520 = vdwg.mxu0
        %5521 = vmatpush.msra.mxu0 %v4553
        %5522 = vmatpush.msra.mxu0 %v4549
        %5523 = vmatpush.msra.mxu0 %v4545
        %5524 = vmatpush.msra.mxu0 %v4541
        %5525 = vmatpush.msra.mxu0 %v4537
        %5526 = vmatpush.msra.mxu0 %v4533
        %5527 = vmatpush.msra.mxu0 %v4529
        %5528 = vmatpush.msra.mxu0 %v4525
        %5529 = vmatpush.msra.mxu0 %v4521
        %5530 = vmatpush.msra.mxu0 %v4517
        %5531 = vmatpush.msra.mxu0 %v4513
        %5532 = vmatpush.msra.mxu0 %v4509
        %5533 = vmatpush.msra.mxu0 %v4505
        %5534 = vmatpush.msra.mxu0 %v4501
        %5535 = vmatpush.msra.mxu0 %v4497
        %5536 = vmatpush.msra.mxu0 %v4493
        %5537 = vmatmul.f32.gmra.mxu0 %v5253
        %v5538 = vpop.f32.mrf.mxu0
        %v5539 = vadd.f32 %v5519, %v5538
        %5540 = vdwg.mxu0
        %5541 = vmatpush.msra.mxu0 %v4170
        %5542 = vmatpush.msra.mxu0 %v4166
        %5543 = vmatpush.msra.mxu0 %v4162
        %5544 = vmatpush.msra.mxu0 %v4158
        %5545 = vmatpush.msra.mxu0 %v4154
        %5546 = vmatpush.msra.mxu0 %v4150
        %5547 = vmatpush.msra.mxu0 %v4146
        %5548 = vmatpush.msra.mxu0 %v4142
        %5549 = vmatpush.msra.mxu0 %v4138
        %5550 = vmatpush.msra.mxu0 %v4134
        %5551 = vmatpush.msra.mxu0 %v4130
        %5552 = vmatpush.msra.mxu0 %v4126
        %5553 = vmatpush.msra.mxu0 %v4122
        %5554 = vmatpush.msra.mxu0 %v4118
        %5555 = vmatpush.msra.mxu0 %v4114
        %5556 = vmatpush.msra.mxu0 %v4110
        %5557 = vmatmul.f32.gmra.mxu0 %v5247
        %v5558 = vpop.f32.mrf.mxu0
        %v5559 = vadd.f32 0.0, %v5558
        %5560 = vdwg.mxu0
        %5561 = vmatpush.msra.mxu0 %v4234
        %5562 = vmatpush.msra.mxu0 %v4230
        %5563 = vmatpush.msra.mxu0 %v4226
        %5564 = vmatpush.msra.mxu0 %v4222
        %5565 = vmatpush.msra.mxu0 %v4218
        %5566 = vmatpush.msra.mxu0 %v4214
        %5567 = vmatpush.msra.mxu0 %v4210
        %5568 = vmatpush.msra.mxu0 %v4206
        %5569 = vmatpush.msra.mxu0 %v4202
        %5570 = vmatpush.msra.mxu0 %v4198
        %5571 = vmatpush.msra.mxu0 %v4194
        %5572 = vmatpush.msra.mxu0 %v4190
        %5573 = vmatpush.msra.mxu0 %v4186
        %5574 = vmatpush.msra.mxu0 %v4182
        %5575 = vmatpush.msra.mxu0 %v4178
        %5576 = vmatpush.msra.mxu0 %v4174
        %5577 = vmatmul.f32.gmra.mxu0 %v5248
        %v5578 = vpop.f32.mrf.mxu0
        %v5579 = vadd.f32 %v5559, %v5578
        %5580 = vdwg.mxu0
        %5581 = vmatpush.msra.mxu0 %v4298
        %5582 = vmatpush.msra.mxu0 %v4294
        %5583 = vmatpush.msra.mxu0 %v4290
        %5584 = vmatpush.msra.mxu0 %v4286
        %5585 = vmatpush.msra.mxu0 %v4282
        %5586 = vmatpush.msra.mxu0 %v4278
        %5587 = vmatpush.msra.mxu0 %v4274
        %5588 = vmatpush.msra.mxu0 %v4270
        %5589 = vmatpush.msra.mxu0 %v4266
        %5590 = vmatpush.msra.mxu0 %v4262
        %5591 = vmatpush.msra.mxu0 %v4258
        %5592 = vmatpush.msra.mxu0 %v4254
        %5593 = vmatpush.msra.mxu0 %v4250
        %5594 = vmatpush.msra.mxu0 %v4246
        %5595 = vmatpush.msra.mxu0 %v4242
        %5596 = vmatpush.msra.mxu0 %v4238
        %5597 = vmatmul.f32.gmra.mxu0 %v5249
        %v5598 = vpop.f32.mrf.mxu0
        %v5599 = vadd.f32 %v5579, %v5598
        %5600 = vdwg.mxu0
        %5601 = vmatpush.msra.mxu0 %v4362
        %5602 = vmatpush.msra.mxu0 %v4358
        %5603 = vmatpush.msra.mxu0 %v4354
        %5604 = vmatpush.msra.mxu0 %v4350
        %5605 = vmatpush.msra.mxu0 %v4346
        %5606 = vmatpush.msra.mxu0 %v4342
        %5607 = vmatpush.msra.mxu0 %v4338
        %5608 = vmatpush.msra.mxu0 %v4334
        %5609 = vmatpush.msra.mxu0 %v4330
        %5610 = vmatpush.msra.mxu0 %v4326
        %5611 = vmatpush.msra.mxu0 %v4322
        %5612 = vmatpush.msra.mxu0 %v4318
        %5613 = vmatpush.msra.mxu0 %v4314
        %5614 = vmatpush.msra.mxu0 %v4310
        %5615 = vmatpush.msra.mxu0 %v4306
        %5616 = vmatpush.msra.mxu0 %v4302
        %5617 = vmatmul.f32.gmra.mxu0 %v5250
        %v5618 = vpop.f32.mrf.mxu0
        %v5619 = vadd.f32 %v5599, %v5618
        %5620 = vdwg.mxu0
        %5621 = vmatpush.msra.mxu0 %v4426
        %5622 = vmatpush.msra.mxu0 %v4422
        %5623 = vmatpush.msra.mxu0 %v4418
        %5624 = vmatpush.msra.mxu0 %v4414
        %5625 = vmatpush.msra.mxu0 %v4410
        %5626 = vmatpush.msra.mxu0 %v4406
        %5627 = vmatpush.msra.mxu0 %v4402
        %5628 = vmatpush.msra.mxu0 %v4398
        %5629 = vmatpush.msra.mxu0 %v4394
        %5630 = vmatpush.msra.mxu0 %v4390
        %5631 = vmatpush.msra.mxu0 %v4386
        %5632 = vmatpush.msra.mxu0 %v4382
        %5633 = vmatpush.msra.mxu0 %v4378
        %5634 = vmatpush.msra.mxu0 %v4374
        %5635 = vmatpush.msra.mxu0 %v4370
        %5636 = vmatpush.msra.mxu0 %v4366
        %5637 = vmatmul.f32.gmra.mxu0 %v5251
        %v5638 = vpop.f32.mrf.mxu0
        %v5639 = vadd.f32 %v5619, %v5638
        %5640 = vdwg.mxu0
        %5641 = vmatpush.msra.mxu0 %v4490
        %5642 = vmatpush.msra.mxu0 %v4486
        %5643 = vmatpush.msra.mxu0 %v4482
        %5644 = vmatpush.msra.mxu0 %v4478
        %5645 = vmatpush.msra.mxu0 %v4474
        %5646 = vmatpush.msra.mxu0 %v4470
        %5647 = vmatpush.msra.mxu0 %v4466
        %5648 = vmatpush.msra.mxu0 %v4462
        %5649 = vmatpush.msra.mxu0 %v4458
        %5650 = vmatpush.msra.mxu0 %v4454
        %5651 = vmatpush.msra.mxu0 %v4450
        %5652 = vmatpush.msra.mxu0 %v4446
        %5653 = vmatpush.msra.mxu0 %v4442
        %5654 = vmatpush.msra.mxu0 %v4438
        %5655 = vmatpush.msra.mxu0 %v4434
        %5656 = vmatpush.msra.mxu0 %v4430
        %5657 = vmatmul.f32.gmra.mxu0 %v5252
        %v5658 = vpop.f32.mrf.mxu0
        %v5659 = vadd.f32 %v5639, %v5658
        %5660 = vdwg.mxu0
        %5661 = vmatpush.msra.mxu0 %v4554
        %5662 = vmatpush.msra.mxu0 %v4550
        %5663 = vmatpush.msra.mxu0 %v4546
        %5664 = vmatpush.msra.mxu0 %v4542
        %5665 = vmatpush.msra.mxu0 %v4538
        %5666 = vmatpush.msra.mxu0 %v4534
        %5667 = vmatpush.msra.mxu0 %v4530
        %5668 = vmatpush.msra.mxu0 %v4526
        %5669 = vmatpush.msra.mxu0 %v4522
        %5670 = vmatpush.msra.mxu0 %v4518
        %5671 = vmatpush.msra.mxu0 %v4514
        %5672 = vmatpush.msra.mxu0 %v4510
        %5673 = vmatpush.msra.mxu0 %v4506
        %5674 = vmatpush.msra.mxu0 %v4502
        %5675 = vmatpush.msra.mxu0 %v4498
        %5676 = vmatpush.msra.mxu0 %v4494
        %5677 = vmatmul.f32.gmra.mxu0 %v5253
        %v5678 = vpop.f32.mrf.mxu0
        %v5679 = vadd.f32 %v5659, %v5678
        %5680 = vdwg.mxu0
        %5681 = vmatpush.msra.mxu0 %v4171
        %5682 = vmatpush.msra.mxu0 %v4167
        %5683 = vmatpush.msra.mxu0 %v4163
        %5684 = vmatpush.msra.mxu0 %v4159
        %5685 = vmatpush.msra.mxu0 %v4155
        %5686 = vmatpush.msra.mxu0 %v4151
        %5687 = vmatpush.msra.mxu0 %v4147
        %5688 = vmatpush.msra.mxu0 %v4143
        %5689 = vmatpush.msra.mxu0 %v4139
        %5690 = vmatpush.msra.mxu0 %v4135
        %5691 = vmatpush.msra.mxu0 %v4131
        %5692 = vmatpush.msra.mxu0 %v4127
        %5693 = vmatpush.msra.mxu0 %v4123
        %5694 = vmatpush.msra.mxu0 %v4119
        %5695 = vmatpush.msra.mxu0 %v4115
        %5696 = vmatpush.msra.mxu0 %v4111
        %5697 = vmatmul.f32.gmra.mxu0 %v5247
        %v5698 = vpop.f32.mrf.mxu0
        %v5699 = vadd.f32 0.0, %v5698
        %5700 = vdwg.mxu0
        %5701 = vmatpush.msra.mxu0 %v4235
        %5702 = vmatpush.msra.mxu0 %v4231
        %5703 = vmatpush.msra.mxu0 %v4227
        %5704 = vmatpush.msra.mxu0 %v4223
        %5705 = vmatpush.msra.mxu0 %v4219
        %5706 = vmatpush.msra.mxu0 %v4215
        %5707 = vmatpush.msra.mxu0 %v4211
        %5708 = vmatpush.msra.mxu0 %v4207
        %5709 = vmatpush.msra.mxu0 %v4203
        %5710 = vmatpush.msra.mxu0 %v4199
        %5711 = vmatpush.msra.mxu0 %v4195
        %5712 = vmatpush.msra.mxu0 %v4191
        %5713 = vmatpush.msra.mxu0 %v4187
        %5714 = vmatpush.msra.mxu0 %v4183
        %5715 = vmatpush.msra.mxu0 %v4179
        %5716 = vmatpush.msra.mxu0 %v4175
        %5717 = vmatmul.f32.gmra.mxu0 %v5248
        %v5718 = vpop.f32.mrf.mxu0
        %v5719 = vadd.f32 %v5699, %v5718
        %5720 = vdwg.mxu0
        %5721 = vmatpush.msra.mxu0 %v4299
        %5722 = vmatpush.msra.mxu0 %v4295
        %5723 = vmatpush.msra.mxu0 %v4291
        %5724 = vmatpush.msra.mxu0 %v4287
        %5725 = vmatpush.msra.mxu0 %v4283
        %5726 = vmatpush.msra.mxu0 %v4279
        %5727 = vmatpush.msra.mxu0 %v4275
        %5728 = vmatpush.msra.mxu0 %v4271
        %5729 = vmatpush.msra.mxu0 %v4267
        %5730 = vmatpush.msra.mxu0 %v4263
        %5731 = vmatpush.msra.mxu0 %v4259
        %5732 = vmatpush.msra.mxu0 %v4255
        %5733 = vmatpush.msra.mxu0 %v4251
        %5734 = vmatpush.msra.mxu0 %v4247
        %5735 = vmatpush.msra.mxu0 %v4243
        %5736 = vmatpush.msra.mxu0 %v4239
        %5737 = vmatmul.f32.gmra.mxu0 %v5249
        %v5738 = vpop.f32.mrf.mxu0
        %v5739 = vadd.f32 %v5719, %v5738
        %5740 = vdwg.mxu0
        %5741 = vmatpush.msra.mxu0 %v4363
        %5742 = vmatpush.msra.mxu0 %v4359
        %5743 = vmatpush.msra.mxu0 %v4355
        %5744 = vmatpush.msra.mxu0 %v4351
        %5745 = vmatpush.msra.mxu0 %v4347
        %5746 = vmatpush.msra.mxu0 %v4343
        %5747 = vmatpush.msra.mxu0 %v4339
        %5748 = vmatpush.msra.mxu0 %v4335
        %5749 = vmatpush.msra.mxu0 %v4331
        %5750 = vmatpush.msra.mxu0 %v4327
        %5751 = vmatpush.msra.mxu0 %v4323
        %5752 = vmatpush.msra.mxu0 %v4319
        %5753 = vmatpush.msra.mxu0 %v4315
        %5754 = vmatpush.msra.mxu0 %v4311
        %5755 = vmatpush.msra.mxu0 %v4307
        %5756 = vmatpush.msra.mxu0 %v4303
        %5757 = vmatmul.f32.gmra.mxu0 %v5250
        %v5758 = vpop.f32.mrf.mxu0
        %v5759 = vadd.f32 %v5739, %v5758
        %5760 = vdwg.mxu0
        %5761 = vmatpush.msra.mxu0 %v4427
        %5762 = vmatpush.msra.mxu0 %v4423
        %5763 = vmatpush.msra.mxu0 %v4419
        %5764 = vmatpush.msra.mxu0 %v4415
        %5765 = vmatpush.msra.mxu0 %v4411
        %5766 = vmatpush.msra.mxu0 %v4407
        %5767 = vmatpush.msra.mxu0 %v4403
        %5768 = vmatpush.msra.mxu0 %v4399
        %5769 = vmatpush.msra.mxu0 %v4395
        %5770 = vmatpush.msra.mxu0 %v4391
        %5771 = vmatpush.msra.mxu0 %v4387
        %5772 = vmatpush.msra.mxu0 %v4383
        %5773 = vmatpush.msra.mxu0 %v4379
        %5774 = vmatpush.msra.mxu0 %v4375
        %5775 = vmatpush.msra.mxu0 %v4371
        %5776 = vmatpush.msra.mxu0 %v4367
        %5777 = vmatmul.f32.gmra.mxu0 %v5251
        %v5778 = vpop.f32.mrf.mxu0
        %v5779 = vadd.f32 %v5759, %v5778
        %5780 = vdwg.mxu0
        %5781 = vmatpush.msra.mxu0 %v4491
        %5782 = vmatpush.msra.mxu0 %v4487
        %5783 = vmatpush.msra.mxu0 %v4483
        %5784 = vmatpush.msra.mxu0 %v4479
        %5785 = vmatpush.msra.mxu0 %v4475
        %5786 = vmatpush.msra.mxu0 %v4471
        %5787 = vmatpush.msra.mxu0 %v4467
        %5788 = vmatpush.msra.mxu0 %v4463
        %5789 = vmatpush.msra.mxu0 %v4459
        %5790 = vmatpush.msra.mxu0 %v4455
        %5791 = vmatpush.msra.mxu0 %v4451
        %5792 = vmatpush.msra.mxu0 %v4447
        %5793 = vmatpush.msra.mxu0 %v4443
        %5794 = vmatpush.msra.mxu0 %v4439
        %5795 = vmatpush.msra.mxu0 %v4435
        %5796 = vmatpush.msra.mxu0 %v4431
        %5797 = vmatmul.f32.gmra.mxu0 %v5252
        %v5798 = vpop.f32.mrf.mxu0
        %v5799 = vadd.f32 %v5779, %v5798
        %5800 = vdwg.mxu0
        %5801 = vmatpush.msra.mxu0 %v4555
        %5802 = vmatpush.msra.mxu0 %v4551
        %5803 = vmatpush.msra.mxu0 %v4547
        %5804 = vmatpush.msra.mxu0 %v4543
        %5805 = vmatpush.msra.mxu0 %v4539
        %5806 = vmatpush.msra.mxu0 %v4535
        %5807 = vmatpush.msra.mxu0 %v4531
        %5808 = vmatpush.msra.mxu0 %v4527
        %5809 = vmatpush.msra.mxu0 %v4523
        %5810 = vmatpush.msra.mxu0 %v4519
        %5811 = vmatpush.msra.mxu0 %v4515
        %5812 = vmatpush.msra.mxu0 %v4511
        %5813 = vmatpush.msra.mxu0 %v4507
        %5814 = vmatpush.msra.mxu0 %v4503
        %5815 = vmatpush.msra.mxu0 %v4499
        %5816 = vmatpush.msra.mxu0 %v4495
        %5817 = vmatmul.f32.gmra.mxu0 %v5253
        %v5818 = vpop.f32.mrf.mxu0
        %v5819 = vadd.f32 %v5799, %v5818
        %5820 = vdwg.mxu0
        %v5825 = vrot.slane %v5539, 6
        %v5826 = vrot.slane %v5679, 4
        %v5827 = vrot.slane %v5819, 2
        %vm5828 = vcmask 1041408
        %v5829 = vsel %vm5828, %v5399, %v5825
        %vm5830 = vcmask 1045508
        %v5831 = vsel %vm5830, %v5826, %v5827
        %vm5832 = vcmask 1043456
        %v5833 = vsel %vm5832, %v5829, %v5831
        %v5835 = vadd.f32 %v3883, %v5833
        %5836 = vst [vmem:[#allocation2] sm:$0xff] %v5835
        %p5837 = scmp.eq.s32.totalorder %s22, 1
        // Predicated region
        $region83: #{tpu_custom_call.1} parent=73 // pred_check
          %p5838 = pneg %p5837
        $region84: #{tpu_custom_call.1} parent=73 // pred_check_branch
          %5840 = sbr.rel (%p5838) target = $region86
        $region85: #{tpu_custom_call.1} parent=73 // pred_region
          %v5841 = vld [vmem:[#allocation2] sm:$0xff]
          %v5842 = vmul.f32 %v5841, 0.0069444445
          %v5843 = vld [vmem:[%s2] sm:$0xf]
          %v5845 = vperm.slane %v5843, 0
          %v5846 = vperm.slane %v5843, 1
          %v5847 = vperm.slane %v5843, 2
          %v5848 = vperm.slane %v5843, 3
          %v5849 = vrot.slane %v5846, 6
          %v5850 = vrot.slane %v5847, 4
          %v5851 = vrot.slane %v5848, 2
          %v5852 = vsel %vm5828, %v5845, %v5849
          %v5853 = vsel %vm5830, %v5850, %v5851
          %v5854 = vsel %vm5832, %v5852, %v5853
          %v5856 = vadd.f32 %v5842, %v5854
          %v5857 = vmax.f32 %v5856, 0.0
          %v5858 = vld [vmem:[%s3] sm:$0xff]
          %v5859 = vld [vmem:[%s3 + $0x8] sm:$0xff]
          %v5860 = vld [vmem:[%s3 + $0x10] sm:$0xff]
          %v5861 = vld [vmem:[%s3 + $0x18] sm:$0xff]
          %v5862 = vld [vmem:[%s3 + $0x20] sm:$0xff]
          %v5863 = vld [vmem:[%s3 + $0x28] sm:$0xff]
          %v5864 = vld [vmem:[%s3 + $0x30] sm:$0xff]
          %v5865 = vld [vmem:[%s3 + $0x38] sm:$0xff]
          %v5866 = vld [vmem:[%s3 + $0x40] sm:$0xff]
          %v5867 = vld [vmem:[%s3 + $0x48] sm:$0xff]
          %v5868 = vld [vmem:[%s3 + $0x50] sm:$0xff]
          %v5869 = vld [vmem:[%s3 + $0x58] sm:$0xff]
          %v5870 = vld [vmem:[%s3 + $0x60] sm:$0xff]
          %v5871 = vld [vmem:[%s3 + $0x68] sm:$0xff]
          %v5872 = vld [vmem:[%s3 + $0x70] sm:$0xff]
          %v5873 = vld [vmem:[%s3 + $0x78] sm:$0xff]
          %v5874 = vld [vmem:[%s3 + $0x80] sm:$0xff]
          %v5875 = vld [vmem:[%s3 + $0x88] sm:$0xff]
          %v5876 = vld [vmem:[%s3 + $0x90] sm:$0xff]
          %v5877 = vld [vmem:[%s3 + $0x98] sm:$0xff]
          %v5878 = vld [vmem:[%s3 + $0xa0] sm:$0xff]
          %v5879 = vld [vmem:[%s3 + $0xa8] sm:$0xff]
          %v5880 = vld [vmem:[%s3 + $0xb0] sm:$0xff]
          %v5881 = vld [vmem:[%s3 + $0xb8] sm:$0xff]
          %v5882 = vld [vmem:[%s3 + $0xc0] sm:$0xff]
          %v5883 = vld [vmem:[%s3 + $0xc8] sm:$0xff]
          %v5884 = vld [vmem:[%s3 + $0xd0] sm:$0xff]
          %v5885 = vld [vmem:[%s3 + $0xd8] sm:$0xff]
          %v5886 = vld [vmem:[%s3 + $0xe0] sm:$0xff]
          %v5887 = vld [vmem:[%s3 + $0xe8] sm:$0xff]
          %v5888 = vld [vmem:[%s3 + $0xf0] sm:$0xff]
          %v5889 = vld [vmem:[%s3 + $0xf8] sm:$0xff]
          %v5890 = vld [vmem:[%s3 + $0x100] sm:$0xff]
          %v5891 = vld [vmem:[%s3 + $0x108] sm:$0xff]
          %v5892 = vld [vmem:[%s3 + $0x110] sm:$0xff]
          %v5893 = vld [vmem:[%s3 + $0x118] sm:$0xff]
          %v5894 = vld [vmem:[%s3 + $0x120] sm:$0xff]
          %v5895 = vld [vmem:[%s3 + $0x128] sm:$0xff]
          %v5896 = vld [vmem:[%s3 + $0x130] sm:$0xff]
          %v5897 = vld [vmem:[%s3 + $0x138] sm:$0xff]
          %v5898 = vld [vmem:[%s3 + $0x140] sm:$0xff]
          %v5899 = vld [vmem:[%s3 + $0x148] sm:$0xff]
          %v5900 = vld [vmem:[%s3 + $0x150] sm:$0xff]
          %v5901 = vld [vmem:[%s3 + $0x158] sm:$0xff]
          %v5902 = vld [vmem:[%s3 + $0x160] sm:$0xff]
          %v5903 = vld [vmem:[%s3 + $0x168] sm:$0xff]
          %v5904 = vld [vmem:[%s3 + $0x170] sm:$0xff]
          %v5905 = vld [vmem:[%s3 + $0x178] sm:$0xff]
          %v5906 = vld [vmem:[%s3 + $0x180] sm:$0xff]
          %v5907 = vld [vmem:[%s3 + $0x188] sm:$0xff]
          %v5908 = vld [vmem:[%s3 + $0x190] sm:$0xff]
          %v5909 = vld [vmem:[%s3 + $0x198] sm:$0xff]
          %v5910 = vld [vmem:[%s3 + $0x1a0] sm:$0xff]
          %v5911 = vld [vmem:[%s3 + $0x1a8] sm:$0xff]
          %v5912 = vld [vmem:[%s3 + $0x1b0] sm:$0xff]
          %v5913 = vld [vmem:[%s3 + $0x1b8] sm:$0xff]
          %v5914 = vld [vmem:[%s3 + $0x1c0] sm:$0xff]
          %v5915 = vld [vmem:[%s3 + $0x1c8] sm:$0xff]
          %v5916 = vld [vmem:[%s3 + $0x1d0] sm:$0xff]
          %v5917 = vld [vmem:[%s3 + $0x1d8] sm:$0xff]
          %v5918 = vld [vmem:[%s3 + $0x1e0] sm:$0xff]
          %v5919 = vld [vmem:[%s3 + $0x1e8] sm:$0xff]
          %v5920 = vld [vmem:[%s3 + $0x1f0] sm:$0xff]
          %v5921 = vld [vmem:[%s3 + $0x1f8] sm:$0xff]
          %v5922 = vld [vmem:[%s4] sm:$0x1]
          %v5924 = vperm.slane %v5922, 0
          %5927 = vst [vmem:[#allocation1] ss:$4 sm:$0xff] %v5857
          %v5928 = vld.sshfl [vmem:[#allocation1] sm:$0xff pattern:$0x73625140]
          %v5929 = vld.sshfl [vmem:[#allocation1 + $0x8] sm:$0xff pattern:$0x73625140]
          %v5930 = vld.sshfl [vmem:[#allocation1 + $0x10] sm:$0xff pattern:$0x73625140]
          %v5931 = vld.sshfl [vmem:[#allocation1 + $0x18] sm:$0xff pattern:$0x73625140]
          %5936 = vmatpush.msra.mxu0 %v5873
          %5937 = vmatpush.msra.mxu0 %v5872
          %5938 = vmatpush.msra.mxu0 %v5871
          %5939 = vmatpush.msra.mxu0 %v5870
          %5940 = vmatpush.msra.mxu0 %v5869
          %5941 = vmatpush.msra.mxu0 %v5868
          %5942 = vmatpush.msra.mxu0 %v5867
          %5943 = vmatpush.msra.mxu0 %v5866
          %5944 = vmatpush.msra.mxu0 %v5865
          %5945 = vmatpush.msra.mxu0 %v5864
          %5946 = vmatpush.msra.mxu0 %v5863
          %5947 = vmatpush.msra.mxu0 %v5862
          %5948 = vmatpush.msra.mxu0 %v5861
          %5949 = vmatpush.msra.mxu0 %v5860
          %5950 = vmatpush.msra.mxu0 %v5859
          %5951 = vmatpush.msra.mxu0 %v5858
          %5952 = vmatmul.f32.gmra.mxu0 %v5928
          %v5953 = vpop.f32.mrf.mxu0
          %v5954 = vadd.f32 %v5924, %v5953
          %5955 = vdwg.mxu0
          %5956 = vmatpush.msra.mxu0 %v5889
          %5957 = vmatpush.msra.mxu0 %v5888
          %5958 = vmatpush.msra.mxu0 %v5887
          %5959 = vmatpush.msra.mxu0 %v5886
          %5960 = vmatpush.msra.mxu0 %v5885
          %5961 = vmatpush.msra.mxu0 %v5884
          %5962 = vmatpush.msra.mxu0 %v5883
          %5963 = vmatpush.msra.mxu0 %v5882
          %5964 = vmatpush.msra.mxu0 %v5881
          %5965 = vmatpush.msra.mxu0 %v5880
          %5966 = vmatpush.msra.mxu0 %v5879
          %5967 = vmatpush.msra.mxu0 %v5878
          %5968 = vmatpush.msra.mxu0 %v5877
          %5969 = vmatpush.msra.mxu0 %v5876
          %5970 = vmatpush.msra.mxu0 %v5875
          %5971 = vmatpush.msra.mxu0 %v5874
          %5972 = vmatmul.f32.gmra.mxu0 %v5929
          %v5973 = vpop.f32.mrf.mxu0
          %v5974 = vadd.f32 %v5954, %v5973
          %5975 = vdwg.mxu0
          %5976 = vmatpush.msra.mxu0 %v5905
          %5977 = vmatpush.msra.mxu0 %v5904
          %5978 = vmatpush.msra.mxu0 %v5903
          %5979 = vmatpush.msra.mxu0 %v5902
          %5980 = vmatpush.msra.mxu0 %v5901
          %5981 = vmatpush.msra.mxu0 %v5900
          %5982 = vmatpush.msra.mxu0 %v5899
          %5983 = vmatpush.msra.mxu0 %v5898
          %5984 = vmatpush.msra.mxu0 %v5897
          %5985 = vmatpush.msra.mxu0 %v5896
          %5986 = vmatpush.msra.mxu0 %v5895
          %5987 = vmatpush.msra.mxu0 %v5894
          %5988 = vmatpush.msra.mxu0 %v5893
          %5989 = vmatpush.msra.mxu0 %v5892
          %5990 = vmatpush.msra.mxu0 %v5891
          %5991 = vmatpush.msra.mxu0 %v5890
          %5992 = vmatmul.f32.gmra.mxu0 %v5930
          %v5993 = vpop.f32.mrf.mxu0
          %v5994 = vadd.f32 %v5974, %v5993
          %5995 = vdwg.mxu0
          %5996 = vmatpush.msra.mxu0 %v5921
          %5997 = vmatpush.msra.mxu0 %v5920
          %5998 = vmatpush.msra.mxu0 %v5919
          %5999 = vmatpush.msra.mxu0 %v5918
          %6000 = vmatpush.msra.mxu0 %v5917
          %6001 = vmatpush.msra.mxu0 %v5916
          %6002 = vmatpush.msra.mxu0 %v5915
          %6003 = vmatpush.msra.mxu0 %v5914
          %6004 = vmatpush.msra.mxu0 %v5913
          %6005 = vmatpush.msra.mxu0 %v5912
          %6006 = vmatpush.msra.mxu0 %v5911
          %6007 = vmatpush.msra.mxu0 %v5910
          %6008 = vmatpush.msra.mxu0 %v5909
          %6009 = vmatpush.msra.mxu0 %v5908
          %6010 = vmatpush.msra.mxu0 %v5907
          %6011 = vmatpush.msra.mxu0 %v5906
          %6012 = vmatmul.f32.gmra.mxu0 %v5931
          %v6013 = vpop.f32.mrf.mxu0
          %v6014 = vadd.f32 %v5994, %v6013
          %6015 = vdwg.mxu0
          %v6016 = vmul.f32 %v6014, %v6014
          %v6017 = vsel %vm5828, %v6016, 0.0
          %6018 = vadd.xlane.f32.xlu0 %v6017
          %v6019 = vpop.xlane.xlu0 %6018
          %v6020 = vmax.f32 %v6019, 1e-24
          %v6021 = vrsqrt.pop %v6020
          %v6022 = vmul.f32 %v6021, %v6020
          %v6023 = vmul.f32 %v6022, %v6021
          %v6024 = vmul.f32 0.5, %v6023
          %v6025 = vsub.f32 1.5, %v6024
          %v6026 = vmul.f32 %v6021, %v6025
          %vm6027 = vweird.f32 %v6020
          %vm6028 = vweird.f32 %v6021
          %vm6029 = vmor %vm6027, %vm6028
          %v6030 = vsel %vm6029, %v6021, %v6026
          %v6031 = vmul.f32 %v6014, %v6030
          %6032 = vst [vmem:[#allocation4] sm:$0x3] %v6031
        $region86: #{tpu_custom_call.1} parent=73 // pred_fallthru
          _
        // Predicated region
        $region87: #{tpu_custom_call.1} parent=73 // pred_check
          %p6033 = pneg %p164
        $region88: #{tpu_custom_call.1} parent=73 // pred_check_branch
          %6035 = sbr.rel (%p6033) target = $region90
        $region89: #{tpu_custom_call.1} parent=73 // pred_region
          %6037 = vsyncadd [#allocation5], 0
          %s6038 = smul.addr %s21, 2
          %s6039 = scalar_lea.hbm %s5, %s6038
          %s6041 = sshll.u32 [#allocation4], 4
          %s6042 = int_to_ptr.vmem [resolvable:$true] %s6041
          %s6043 = sshll.u32 %s6039, 4
          %s6044 = int_to_ptr.hbm [resolvable:$true] %s6043
          %6046 = dma.vmem_to_hbm [thread:$0]  %s6042, 32, %s6044, [#allocation5]
        $region90: #{tpu_custom_call.1} parent=73 // pred_fallthru
          _
        // Predicated region
        $region91: #{tpu_custom_call.1} parent=73 // pred_check
          %p6047 = pneg %p164
        $region92: #{tpu_custom_call.1} parent=73 // pred_check_branch
          %6049 = sbr.rel (%p6047) target = $region94
        $region93: #{tpu_custom_call.1} parent=73 // pred_region
          %6051 = dma.done [#allocation5], 32
        $region94: #{tpu_custom_call.1} parent=73 // pred_fallthru
          _
      $region74: #{tpu_custom_call.1} parent=5 // pred_fallthru
        _
      %p6052 = scmp.le.s32.totalorder 2, %s12
      // Predicated region
      $region95: #{tpu_custom_call.1} parent=5 // pred_check
        %p6053 = pneg %p6052
      $region96: #{tpu_custom_call.1} parent=5 // pred_check_branch
        %6055 = sbr.rel (%p6053) target = $region98
      $region97: #{tpu_custom_call.1} parent=5 // pred_region
        %s6056 = ssub.s32 %s12, 2
      $region98: #{tpu_custom_call.1} parent=5 // pred_fallthru
        _
    $region6: #{tpu_custom_call.1} parent=1 // loop_footer
      %s16 = sadd.s32 1, %s12
    $region7: #{tpu_custom_call.1} parent=1 // loop_footer_branch
      %11 = sbr.rel target = $region3
    $region8: #{tpu_custom_call.1} parent=1 // loop_exit
      _
    %6057 = vsyncpa [#allocation5], 1
    %s6058 = scalar_lea.sflag [#allocation5], 1
    %6059 = vsyncpa %s6058, 1

</llo_original>
